<compile_context>
chip_gen: v7x
topology: tpu7x:2x2x1
jax: 0.10.0
libtpu: 0.0.40
codegen_flags: <defaults>
</compile_context>

<pallas_src>
import jax
import jax.numpy as jnp
import numpy as np
from jax import lax
from jax.experimental import pallas as pl
from jax.experimental.pallas import tpu as pltpu

_EPS2 = 1e-16  # eps**2 with eps=1e-8, as in torch.nn.CosineSimilarity(dim=-1)


def edge_encoder_kernel(pw_ref, mtf_ref, etf_ref,
                        mof_ref, mos_ref, eof_ref, eos_ref,
                        mtet_ref, miei_ref):
    f32 = jnp.float32
    tb, c = mtet_ref.shape
    c_oe = eos_ref.shape[1]
    oe = c_oe // c

    # ---- mention text encoding: precomputed span-mean weights -> weighted sum
    pw = pw_ref[...]                                     # (TB, L)
    mtf = mtf_ref[...].astype(f32)                       # (TB, L, D)
    m_enc = jnp.sum(mtf * pw[:, :, None], axis=1)        # (TB, D)

    # ---- mtet: cosine(mention_text_encoded, entity_text_encoded) ------------
    etf = etf_ref[...].astype(f32)                       # (TB, C, D)
    m_inv = lax.rsqrt(jnp.maximum(
        jnp.sum(m_enc * m_enc, axis=-1, keepdims=True), _EPS2))        # (TB, 1)
    e_inv = lax.rsqrt(jnp.maximum(jnp.sum(etf * etf, axis=-1), _EPS2))  # (TB, C)
    dots = jnp.sum(etf * m_enc[:, None, :], axis=-1)                    # (TB, C)
    mtet_ref[...] = dots * e_inv * m_inv

    # ---- miei: score-weighted average of pairwise object cosine sims --------
    mof = mof_ref[...].astype(f32)                       # (TB, Om, Do)
    mos = mos_ref[...]                                   # (TB, Om)
    eof = eof_ref[...].astype(f32)                       # (TB, C*Oe, Do)
    eos = eos_ref[...]                                   # (TB, C*Oe)

    # fold inverse norms into the score weights (rsqrt on EUP; no Do-wide divides)
    w_m = mos * lax.rsqrt(jnp.maximum(jnp.sum(mof * mof, axis=-1), _EPS2))  # (TB, Om)
    w_e = eos * lax.rsqrt(jnp.maximum(jnp.sum(eof * eof, axis=-1), _EPS2))  # (TB, C*Oe)

    wm = jnp.sum(mof * w_m[:, :, None], axis=1)          # (TB, Do)
    pair_dot = jnp.sum(eof * wm[:, None, :], axis=-1)    # (TB, C*Oe)
    pair_sim = w_e * pair_dot                            # (TB, C*Oe)

    similarity = jnp.sum(pair_sim.reshape(tb, c, oe), axis=-1)          # (TB, C)
    score_sum = (jnp.sum(mos, axis=-1, keepdims=True)
                 * jnp.sum(eos.reshape(tb, c, oe), axis=-1))            # (TB, C)
    miei_ref[...] = similarity * pl.reciprocal(score_sum + 1e-9, approx=True)


def _round_up(x, m):
    return (x + m - 1) // m * m


@jax.jit
def edge_encoder_forward(mention_text_feature, mention_start_pos, mention_end_pos,
                         mention_object_feature, mention_object_score,
                         entity_text_feature, entity_object_feature,
                         entity_object_score):
    # ---- glue: rank normalization, mirrors the torch branches ---------------
    if entity_text_feature.ndim == 4:
        entity_text_feature = entity_text_feature[:, :, 0]
    if mention_object_feature.ndim == 4:
        mention_object_feature = jnp.mean(mention_object_feature, axis=-2)
    if entity_object_feature.ndim == 5:
        entity_object_feature = jnp.mean(entity_object_feature, axis=-2)

    B, L, D = mention_text_feature.shape
    C = entity_text_feature.shape[1]                 # num_candidates_model
    Om, Do = mention_object_feature.shape[1:]
    Oe = entity_object_feature.shape[2]

    # span-mean pooling weights precomputed here (drops the scalar-prefetch path)
    idx = jnp.arange(L, dtype=jnp.int32)[None, :]
    start = mention_start_pos.astype(jnp.int32)[:, None]
    end = mention_end_pos.astype(jnp.int32)[:, None]
    mask = jnp.logical_and(idx >= start, idx <= end).astype(jnp.float32)  # (B, L)
    count = jnp.maximum(jnp.sum(mask, axis=-1, keepdims=True), 1.0)
    pool_w = mask / count                                                  # (B, L)

    # lane-dense score layouts, flattened entity objects
    mos = mention_object_score.reshape(B, Om).astype(jnp.float32)
    eos = entity_object_score.reshape(B, C * Oe).astype(jnp.float32)
    eof = entity_object_feature.reshape(B, C * Oe, Do)

    # Batch-block size: amortizes per-step overhead. Even at TB=128 the
    # double-buffered blocks here are only a few MiB, safely under the
    # v7x 64 MiB VMEM (v5e/v6e have 128 MiB); re-derive if L/D/C grow a lot.
    TB = min(128, _round_up(B, 8))
    if _round_up(B, TB) // TB < 2 and B > 8:
        # keep >= 2 grid steps so both v7x TensorCores get work
        TB = max(8, _round_up(TB // 2, 8))
    B_pad = _round_up(B, TB)
    grid = (B_pad // TB,)

    def pad_b(x):
        if B_pad == B:
            return x
        return jnp.pad(x, ((0, B_pad - B),) + ((0, 0),) * (x.ndim - 1))

    args = tuple(pad_b(x) for x in
                 (pool_w, mention_text_feature, entity_text_feature,
                  mention_object_feature, mos, eof, eos))

    grid_spec = pltpu.PrefetchScalarGridSpec(
        num_scalar_prefetch=0,
        grid=grid,
        in_specs=[
            pl.BlockSpec((TB, L), lambda b: (b, 0)),              # pooling weights
            pl.BlockSpec((TB, L, D), lambda b: (b, 0, 0)),        # mention text
            pl.BlockSpec((TB, C, D), lambda b: (b, 0, 0)),        # entity text
            pl.BlockSpec((TB, Om, Do), lambda b: (b, 0, 0)),      # mention objects
            pl.BlockSpec((TB, Om), lambda b: (b, 0)),             # mention obj scores
            pl.BlockSpec((TB, C * Oe, Do), lambda b: (b, 0, 0)),  # entity objects (flat)
            pl.BlockSpec((TB, C * Oe), lambda b: (b, 0)),         # entity obj scores
        ],
        out_specs=[
            pl.BlockSpec((TB, C), lambda b: (b, 0)),              # mtet
            pl.BlockSpec((TB, C), lambda b: (b, 0)),              # miei
        ],
    )

    mtet, miei = pl.pallas_call(
        edge_encoder_kernel,
        out_shape=(jax.ShapeDtypeStruct((B_pad, C), jnp.float32),
                   jax.ShapeDtypeStruct((B_pad, C), jnp.float32)),
        grid_spec=grid_spec,
        compiler_params=pltpu.CompilerParams(dimension_semantics=("parallel",)),
    )(*args)

    return mtet[:B], miei[:B]


# ----------------------------- pure-JAX reference ----------------------------
def _cosine_sim(x1, x2, eps=1e-8):
    n1 = jnp.sqrt(jnp.maximum(jnp.sum(x1 * x1, -1), eps * eps))
    n2 = jnp.sqrt(jnp.maximum(jnp.sum(x2 * x2, -1), eps * eps))
    return jnp.sum(x1 * x2, -1) / (n1 * n2)


def reference_forward(mtf, start, end, mof, mos, etf, eof, eos):
    B, L, D = mtf.shape
    C = etf.shape[1]
    idx = jnp.arange(L)[None, :]
    mask = ((idx >= start[:, None]) & (idx <= end[:, None])).astype(jnp.float32)
    m_enc = jnp.sum(mtf * mask[:, :, None], axis=1) / jnp.sum(mask, axis=1, keepdims=True)
    mtet = _cosine_sim(jnp.broadcast_to(m_enc[:, None, :], etf.shape), etf)

    Om, Oe, Do = mof.shape[1], eof.shape[2], mof.shape[-1]
    similarity = jnp.zeros((B, C), jnp.float32)
    scores = jnp.zeros((B, C), jnp.float32)
    for i in range(Om):
        mo_i = jnp.broadcast_to(mof[:, i][:, None, :], (B, C, Do))
        ms_i = mos[:, i][:, None]
        for j in range(Oe):
            sim = _cosine_sim(mo_i, eof[:, :, j])
            sc = ms_i * eos[:, :, j]
            similarity = similarity + sim * sc
            scores = scores + sc
    miei = similarity / (scores + 1e-9)
    return mtet, miei


if __name__ == "__main__":
    B, C, L, D = 50, 4, 8, 128    # batch, num_candidates, seq_len, text hidden
    Om, Oe, Do = 3, 5, 64         # mention objects, entity objects, object hidden

    key = jax.random.PRNGKey(0)
    ks = jax.random.split(key, 8)
    mention_text_feature = jax.random.normal(ks[0], (B, L, D), jnp.float32)
    mention_start_pos = jax.random.randint(ks[1], (B,), 0, L // 2)
    mention_end_pos = mention_start_pos + jax.random.randint(ks[2], (B,), 0, L // 2)
    mention_object_feature = jax.random.normal(ks[3], (B, Om, Do), jnp.float32)
    mention_object_score = jax.nn.softmax(jax.random.normal(ks[4], (B, Om)), axis=-1)
    entity_text_feature = jax.random.normal(ks[5], (B, C, D), jnp.float32)
    entity_object_feature = jax.random.normal(ks[6], (B, C, Oe, Do), jnp.float32)
    entity_object_score = jax.nn.softmax(jax.random.normal(ks[7], (B, C, Oe)), axis=-1)

    mtet, miei = edge_encoder_forward(
        mention_text_feature, mention_start_pos, mention_end_pos,
        mention_object_feature, mention_object_score,
        entity_text_feature, entity_object_feature, entity_object_score)
    jax.block_until_ready((mtet, miei))

    mtet_ref, miei_ref = reference_forward(
        mention_text_feature, mention_start_pos, mention_end_pos,
        mention_object_feature, mention_object_score,
        entity_text_feature, entity_object_feature, entity_object_score)

    np.testing.assert_allclose(np.asarray(mtet), np.asarray(mtet_ref), rtol=1e-5, atol=1e-5)
    # miei uses pl.reciprocal(approx=True) for the final divide -> slightly looser
    np.testing.assert_allclose(np.asarray(miei), np.asarray(miei_ref), rtol=5e-3, atol=5e-3)
    print("KERNEL_OK")
</pallas_src>

<mosaic_0001>
module attributes {stable_mosaic.version = 11 : i64} {
  func.func @edge_encoder_kernel(%arg0: i32, %arg1: memref<32x8xf32, #tpu.memory_space<vmem>>, %arg2: memref<32x8x128xf32, #tpu.memory_space<vmem>>, %arg3: memref<32x4x128xf32, #tpu.memory_space<vmem>>, %arg4: memref<32x3x64xf32, #tpu.memory_space<vmem>>, %arg5: memref<32x3xf32, #tpu.memory_space<vmem>>, %arg6: memref<32x20x64xf32, #tpu.memory_space<vmem>>, %arg7: memref<32x20xf32, #tpu.memory_space<vmem>>, %arg8: memref<32x4xf32, #tpu.memory_space<vmem>>, %arg9: memref<32x4xf32, #tpu.memory_space<vmem>>) attributes {dimension_semantics = [#tpu.dimension_semantics<parallel>], iteration_bounds = array<i64: 2>, scalar_prefetch = 0 : i64, scratch_operands = 0 : i64, tpu.core_type = #tpu.core_type<tc>, window_params = [{transform_indices = @transform_0, window_bounds = array<i64: 32, 8>}, {transform_indices = @transform_1, window_bounds = array<i64: 32, 8, 128>}, {transform_indices = @transform_2, window_bounds = array<i64: 32, 4, 128>}, {transform_indices = @transform_3, window_bounds = array<i64: 32, 3, 64>}, {transform_indices = @transform_4, window_bounds = array<i64: 32, 3>}, {transform_indices = @transform_5, window_bounds = array<i64: 32, 20, 64>}, {transform_indices = @transform_6, window_bounds = array<i64: 32, 20>}, {transform_indices = @transform_7, window_bounds = array<i64: 32, 4>}, {transform_indices = @transform_8, window_bounds = array<i64: 32, 4>}]} {
    %c0 = arith.constant 0 : index
    %c0_0 = arith.constant 0 : index
    %0 = vector.load %arg1[%c0, %c0_0] : memref<32x8xf32, #tpu.memory_space<vmem>>, vector<32x8xf32>
    %c0_1 = arith.constant 0 : index
    %c0_2 = arith.constant 0 : index
    %c0_3 = arith.constant 0 : index
    %1 = vector.load %arg2[%c0_1, %c0_2, %c0_3] : memref<32x8x128xf32, #tpu.memory_space<vmem>>, vector<32x8x128xf32>
    %2 = vector.shape_cast %0 : vector<32x8xf32> to vector<32x8x1xf32>
    %3 = vector.broadcast %2 : vector<32x8x1xf32> to vector<32x8x128xf32>
    %4 = arith.mulf %1, %3 : vector<32x8x128xf32>
    %cst = arith.constant dense<0.000000e+00> : vector<32x128xf32>
    %5 = vector.multi_reduction <add>, %4, %cst [1] : vector<32x8x128xf32> to vector<32x128xf32>
    %c0_4 = arith.constant 0 : index
    %c0_5 = arith.constant 0 : index
    %c0_6 = arith.constant 0 : index
    %6 = vector.load %arg3[%c0_4, %c0_5, %c0_6] : memref<32x4x128xf32, #tpu.memory_space<vmem>>, vector<32x4x128xf32>
    %7 = arith.mulf %5, %5 : vector<32x128xf32>
    %cst_7 = arith.constant dense<0.000000e+00> : vector<32xf32>
    %8 = vector.multi_reduction <add>, %7, %cst_7 [1] : vector<32x128xf32> to vector<32xf32>
    %9 = vector.shape_cast %8 : vector<32xf32> to vector<32x1xf32>
    %cst_8 = arith.constant 1.000000e-16 : f32
    %10 = vector.broadcast %cst_8 : f32 to vector<32x1xf32>
    %11 = arith.maximumf %9, %10 : vector<32x1xf32>
    %12 = math.rsqrt %11 : vector<32x1xf32>
    %13 = arith.mulf %6, %6 : vector<32x4x128xf32>
    %cst_9 = arith.constant dense<0.000000e+00> : vector<32x4xf32>
    %14 = vector.multi_reduction <add>, %13, %cst_9 [2] : vector<32x4x128xf32> to vector<32x4xf32>
    %cst_10 = arith.constant 1.000000e-16 : f32
    %15 = vector.broadcast %cst_10 : f32 to vector<32x4xf32>
    %16 = arith.maximumf %14, %15 : vector<32x4xf32>
    %17 = math.rsqrt %16 : vector<32x4xf32>
    %18 = vector.shape_cast %5 : vector<32x128xf32> to vector<32x1x128xf32>
    %19 = vector.broadcast %18 : vector<32x1x128xf32> to vector<32x4x128xf32>
    %20 = arith.mulf %6, %19 : vector<32x4x128xf32>
    %cst_11 = arith.constant dense<0.000000e+00> : vector<32x4xf32>
    %21 = vector.multi_reduction <add>, %20, %cst_11 [2] : vector<32x4x128xf32> to vector<32x4xf32>
    %22 = arith.mulf %21, %17 : vector<32x4xf32>
    %23 = vector.broadcast %12 : vector<32x1xf32> to vector<32x4xf32>
    %24 = arith.mulf %22, %23 : vector<32x4xf32>
    %c0_12 = arith.constant 0 : index
    %c0_13 = arith.constant 0 : index
    %25 = vector.load %arg8[%c0_12, %c0_13] : memref<32x4xf32, #tpu.memory_space<vmem>>, vector<32x4xf32>
    tpu.vector_store %arg8[%c0_12, %c0_13], %24 {strides = array<i32>} : memref<32x4xf32, #tpu.memory_space<vmem>>, vector<32x4xf32>,
    %c0_14 = arith.constant 0 : index
    %c0_15 = arith.constant 0 : index
    %c0_16 = arith.constant 0 : index
    %26 = vector.load %arg4[%c0_14, %c0_15, %c0_16] : memref<32x3x64xf32, #tpu.memory_space<vmem>>, vector<32x3x64xf32>
    %c0_17 = arith.constant 0 : index
    %c0_18 = arith.constant 0 : index
    %27 = vector.load %arg5[%c0_17, %c0_18] : memref<32x3xf32, #tpu.memory_space<vmem>>, vector<32x3xf32>
    %c0_19 = arith.constant 0 : index
    %c0_20 = arith.constant 0 : index
    %c0_21 = arith.constant 0 : index
    %28 = vector.load %arg6[%c0_19, %c0_20, %c0_21] : memref<32x20x64xf32, #tpu.memory_space<vmem>>, vector<32x20x64xf32>
    %c0_22 = arith.constant 0 : index
    %c0_23 = arith.constant 0 : index
    %29 = vector.load %arg7[%c0_22, %c0_23] : memref<32x20xf32, #tpu.memory_space<vmem>>, vector<32x20xf32>
    %30 = arith.mulf %26, %26 : vector<32x3x64xf32>
    %cst_24 = arith.constant dense<0.000000e+00> : vector<32x3xf32>
    %31 = vector.multi_reduction <add>, %30, %cst_24 [2] : vector<32x3x64xf32> to vector<32x3xf32>
    %cst_25 = arith.constant 1.000000e-16 : f32
    %32 = vector.broadcast %cst_25 : f32 to vector<32x3xf32>
    %33 = arith.maximumf %31, %32 : vector<32x3xf32>
    %34 = math.rsqrt %33 : vector<32x3xf32>
    %35 = arith.mulf %27, %34 : vector<32x3xf32>
    %36 = arith.mulf %28, %28 : vector<32x20x64xf32>
    %cst_26 = arith.constant dense<0.000000e+00> : vector<32x20xf32>
    %37 = vector.multi_reduction <add>, %36, %cst_26 [2] : vector<32x20x64xf32> to vector<32x20xf32>
    %cst_27 = arith.constant 1.000000e-16 : f32
    %38 = vector.broadcast %cst_27 : f32 to vector<32x20xf32>
    %39 = arith.maximumf %37, %38 : vector<32x20xf32>
    %40 = math.rsqrt %39 : vector<32x20xf32>
    %41 = arith.mulf %29, %40 : vector<32x20xf32>
    %42 = vector.shape_cast %35 : vector<32x3xf32> to vector<32x3x1xf32>
    %43 = vector.broadcast %42 : vector<32x3x1xf32> to vector<32x3x64xf32>
    %44 = arith.mulf %26, %43 : vector<32x3x64xf32>
    %cst_28 = arith.constant dense<0.000000e+00> : vector<32x64xf32>
    %45 = vector.multi_reduction <add>, %44, %cst_28 [1] : vector<32x3x64xf32> to vector<32x64xf32>
    %46 = vector.shape_cast %45 : vector<32x64xf32> to vector<32x1x64xf32>
    %47 = vector.broadcast %46 : vector<32x1x64xf32> to vector<32x20x64xf32>
    %48 = arith.mulf %28, %47 : vector<32x20x64xf32>
    %cst_29 = arith.constant dense<0.000000e+00> : vector<32x20xf32>
    %49 = vector.multi_reduction <add>, %48, %cst_29 [2] : vector<32x20x64xf32> to vector<32x20xf32>
    %50 = arith.mulf %41, %49 : vector<32x20xf32>
    %51 = vector.shape_cast %50 : vector<32x20xf32> to vector<32x4x5xf32>
    %cst_30 = arith.constant dense<0.000000e+00> : vector<32x4xf32>
    %52 = vector.multi_reduction <add>, %51, %cst_30 [2] : vector<32x4x5xf32> to vector<32x4xf32>
    %cst_31 = arith.constant dense<0.000000e+00> : vector<32xf32>
    %53 = vector.multi_reduction <add>, %27, %cst_31 [1] : vector<32x3xf32> to vector<32xf32>
    %54 = vector.shape_cast %53 : vector<32xf32> to vector<32x1xf32>
    %55 = vector.shape_cast %29 : vector<32x20xf32> to vector<32x4x5xf32>
    %cst_32 = arith.constant dense<0.000000e+00> : vector<32x4xf32>
    %56 = vector.multi_reduction <add>, %55, %cst_32 [2] : vector<32x4x5xf32> to vector<32x4xf32>
    %57 = vector.broadcast %54 : vector<32x1xf32> to vector<32x4xf32>
    %58 = arith.mulf %57, %56 : vector<32x4xf32>
    %cst_33 = arith.constant 9.99999971E-10 : f32
    %59 = vector.broadcast %cst_33 : f32 to vector<32x4xf32>
    %60 = arith.addf %58, %59 : vector<32x4xf32>
    %61 = tpu.reciprocal %60 {approx = true} : vector<32x4xf32> -> vector<32x4xf32>
    %62 = arith.mulf %52, %61 : vector<32x4xf32>
    %c0_34 = arith.constant 0 : index
    %c0_35 = arith.constant 0 : index
    %63 = vector.load %arg9[%c0_34, %c0_35] : memref<32x4xf32, #tpu.memory_space<vmem>>, vector<32x4xf32>
    tpu.vector_store %arg9[%c0_34, %c0_35], %62 {strides = array<i32>} : memref<32x4xf32, #tpu.memory_space<vmem>>, vector<32x4xf32>,
    return
  }
  func.func @transform_0(%arg0: i32) -> (i32, i32) {
    %c0_i32 = arith.constant 0 : i32
    %c0_i32_0 = arith.constant 0 : i32
    return %arg0, %c0_i32 : i32, i32
  }
  func.func @transform_1(%arg0: i32) -> (i32, i32, i32) {
    %c0_i32 = arith.constant 0 : i32
    %c0_i32_0 = arith.constant 0 : i32
    %c0_i32_1 = arith.constant 0 : i32
    return %arg0, %c0_i32, %c0_i32_0 : i32, i32, i32
  }
  func.func @transform_2(%arg0: i32) -> (i32, i32, i32) {
    %c0_i32 = arith.constant 0 : i32
    %c0_i32_0 = arith.constant 0 : i32
    %c0_i32_1 = arith.constant 0 : i32
    return %arg0, %c0_i32, %c0_i32_0 : i32, i32, i32
  }
  func.func @transform_3(%arg0: i32) -> (i32, i32, i32) {
    %c0_i32 = arith.constant 0 : i32
    %c0_i32_0 = arith.constant 0 : i32
    %c0_i32_1 = arith.constant 0 : i32
    return %arg0, %c0_i32, %c0_i32_0 : i32, i32, i32
  }
  func.func @transform_4(%arg0: i32) -> (i32, i32) {
    %c0_i32 = arith.constant 0 : i32
    %c0_i32_0 = arith.constant 0 : i32
    return %arg0, %c0_i32 : i32, i32
  }
  func.func @transform_5(%arg0: i32) -> (i32, i32, i32) {
    %c0_i32 = arith.constant 0 : i32
    %c0_i32_0 = arith.constant 0 : i32
    %c0_i32_1 = arith.constant 0 : i32
    return %arg0, %c0_i32, %c0_i32_0 : i32, i32, i32
  }
  func.func @transform_6(%arg0: i32) -> (i32, i32) {
    %c0_i32 = arith.constant 0 : i32
    %c0_i32_0 = arith.constant 0 : i32
    return %arg0, %c0_i32 : i32, i32
  }
  func.func @transform_7(%arg0: i32) -> (i32, i32) {
    %c0_i32 = arith.constant 0 : i32
    %c0_i32_0 = arith.constant 0 : i32
    return %arg0, %c0_i32 : i32, i32
  }
  func.func @transform_8(%arg0: i32) -> (i32, i32) {
    %c0_i32 = arith.constant 0 : i32
    %c0_i32_0 = arith.constant 0 : i32
    return %arg0, %c0_i32 : i32, i32
  }
}

</mosaic_0001>

<llo_original>
// kernel: edge_encoder_forward.1
$region0: #{edge_encoder_forward.1}
  #allocation0 [shape = 'u32[]', space=smem, size = 0x4, offset = 0x4, fixed_abs, tag = 'smem constant byte address 0x4 - core index']
  #allocation1 [shape = 'u32[144,128]{1,0:T(1,128)}', space=vmem, size = 0x12000, scoped, tag = 'internal scratch']
  %s0 = inlined_call_operand.vmem [shape: f32[64,8], index: 0, kind: input, shape index: {}]
  %s1 = inlined_call_operand.vmem [shape: f32[64,8,128], index: 1, kind: input, shape index: {}]
  %s2 = inlined_call_operand.vmem [shape: f32[64,4,128], index: 2, kind: input, shape index: {}]
  %s3 = inlined_call_operand.vmem [shape: f32[64,3,64], index: 3, kind: input, shape index: {}]
  %s4 = inlined_call_operand.vmem [shape: f32[64,3], index: 4, kind: input, shape index: {}]
  %s5 = inlined_call_operand.vmem [shape: f32[64,20,64], index: 5, kind: input, shape index: {}]
  %s6 = inlined_call_operand.vmem [shape: f32[64,20], index: 6, kind: input, shape index: {}]
  %s7 = inlined_call_operand.vmem [shape: f32[64,4], index: 7, kind: output, shape index: {0}]
  %s8 = inlined_call_operand.vmem [shape: f32[64,4], index: 8, kind: output, shape index: {1}]
  %9 = xla_tuple %s7, %s8
  %s10 = sld [smem:[#allocation0]]
  $region69: #{edge_encoder_forward.1} parent=0
    _
  %s12 = ssub.s32 1, %s10
  %s13 = scalar_select 0, %s12, %s10
  loop: start=0, step=1, limit=4
  $region2: #{edge_encoder_forward.1} parent=0 // loop_pre_header
    _
  $region3: #{edge_encoder_forward.1} parent=0 // loop_header
    %s15 = sphi 0, %s19
    %p16 = scmp.ge.s32.totalorder %s15, 4
    %s25 = sphi 0, %s27
    %s28 = sphi 0, %s25
    %s29 = sphi 0, %s28
    %s45 = sphi 0, %s29
    %s51 = sphi 0, %s53
    %s54 = sphi 0, %s51
    %s55 = sphi 0, %s54
    %s71 = sphi 0, %s55
    %s77 = sphi 0, %s79
    %s80 = sphi 0, %s77
    %s81 = sphi 0, %s80
    %s97 = sphi 0, %s81
    %s103 = sphi 0, %s105
    %s106 = sphi 0, %s103
    %s107 = sphi 0, %s106
    %s123 = sphi 0, %s107
    %s129 = sphi 0, %s131
    %s132 = sphi 0, %s129
    %s133 = sphi 0, %s132
    %s149 = sphi 0, %s133
    %s155 = sphi 0, %s157
    %s158 = sphi 0, %s155
    %s159 = sphi 0, %s158
    %s175 = sphi 0, %s159
    %s181 = sphi 0, %s183
    %s184 = sphi 0, %s181
    %s185 = sphi 0, %s184
    %s201 = sphi 0, %s185
    %s207 = sphi 0, %s209
    %s210 = sphi 0, %s207
    %s211 = sphi 0, %s210
    %s227 = sphi 0, %s211
    %s233 = sphi 0, %s235
    %s236 = sphi 0, %s233
    %s237 = sphi 0, %s236
    %s253 = sphi 0, %s237
  $region4: #{edge_encoder_forward.1} parent=0 // loop_header_branch
    %18 = sbr.rel (%p16) target = $region8
  $region5: #{edge_encoder_forward.1} parent=0 // loop_body
    %s20 = ssub.s32 %s15, 1
    %s21 = ssub.s32 %s15, 2
    %s22 = sadd.s32 %s15, 1
    %s23 = ssub.s32 %s15, %s22
    %p24 = scmp.eq.s32.totalorder %s23, 0
    %s26 = sadd.s32 %s25, 1
    %s27 = scalar_select %p24, %s25, %s26
    %p30 = pneg %p24
    %p31 = scmp.eq.s32.totalorder %s15, 1
    %p32 = por %p30, %p31
    %p33 = scmp.ne.s32.totalorder %s25, %s28
    %p34 = scmp.eq.s32.totalorder %s15, 0
    %p35 = por %p33, %p34
    %p36 = scmp.ne.s32.totalorder %s25, %s28
    %p37 = scmp.eq.s32.totalorder %s20, 1
    %p38 = por %p36, %p37
    %p39 = scmp.ne.s32.totalorder %s28, %s29
    %p40 = scmp.eq.s32.totalorder %s20, 0
    %p41 = por %p39, %p40
    %p42 = scmp.ne.s32.totalorder %s28, %s29
    %p43 = scmp.eq.s32.totalorder %s21, 1
    %p44 = por %p42, %p43
    %p46 = scmp.ne.s32.totalorder %s29, %s45
    %p47 = scmp.eq.s32.totalorder %s21, 0
    %p48 = por %p46, %p47
    %s49 = ssub.s32 %s15, %s22
    %p50 = scmp.eq.s32.totalorder %s49, 0
    %s52 = sadd.s32 %s51, 1
    %s53 = scalar_select %p50, %s51, %s52
    %p56 = pneg %p50
    %p57 = scmp.eq.s32.totalorder %s15, 1
    %p58 = por %p56, %p57
    %p59 = scmp.ne.s32.totalorder %s51, %s54
    %p60 = scmp.eq.s32.totalorder %s15, 0
    %p61 = por %p59, %p60
    %p62 = scmp.ne.s32.totalorder %s51, %s54
    %p63 = scmp.eq.s32.totalorder %s20, 1
    %p64 = por %p62, %p63
    %p65 = scmp.ne.s32.totalorder %s54, %s55
    %p66 = scmp.eq.s32.totalorder %s20, 0
    %p67 = por %p65, %p66
    %p68 = scmp.ne.s32.totalorder %s54, %s55
    %p69 = scmp.eq.s32.totalorder %s21, 1
    %p70 = por %p68, %p69
    %p72 = scmp.ne.s32.totalorder %s55, %s71
    %p73 = scmp.eq.s32.totalorder %s21, 0
    %p74 = por %p72, %p73
    %s75 = ssub.s32 %s15, %s22
    %p76 = scmp.eq.s32.totalorder %s75, 0
    %s78 = sadd.s32 %s77, 1
    %s79 = scalar_select %p76, %s77, %s78
    %p82 = pneg %p76
    %p83 = scmp.eq.s32.totalorder %s15, 1
    %p84 = por %p82, %p83
    %p85 = scmp.ne.s32.totalorder %s77, %s80
    %p86 = scmp.eq.s32.totalorder %s15, 0
    %p87 = por %p85, %p86
    %p88 = scmp.ne.s32.totalorder %s77, %s80
    %p89 = scmp.eq.s32.totalorder %s20, 1
    %p90 = por %p88, %p89
    %p91 = scmp.ne.s32.totalorder %s80, %s81
    %p92 = scmp.eq.s32.totalorder %s20, 0
    %p93 = por %p91, %p92
    %p94 = scmp.ne.s32.totalorder %s80, %s81
    %p95 = scmp.eq.s32.totalorder %s21, 1
    %p96 = por %p94, %p95
    %p98 = scmp.ne.s32.totalorder %s81, %s97
    %p99 = scmp.eq.s32.totalorder %s21, 0
    %p100 = por %p98, %p99
    %s101 = ssub.s32 %s15, %s22
    %p102 = scmp.eq.s32.totalorder %s101, 0
    %s104 = sadd.s32 %s103, 1
    %s105 = scalar_select %p102, %s103, %s104
    %p108 = pneg %p102
    %p109 = scmp.eq.s32.totalorder %s15, 1
    %p110 = por %p108, %p109
    %p111 = scmp.ne.s32.totalorder %s103, %s106
    %p112 = scmp.eq.s32.totalorder %s15, 0
    %p113 = por %p111, %p112
    %p114 = scmp.ne.s32.totalorder %s103, %s106
    %p115 = scmp.eq.s32.totalorder %s20, 1
    %p116 = por %p114, %p115
    %p117 = scmp.ne.s32.totalorder %s106, %s107
    %p118 = scmp.eq.s32.totalorder %s20, 0
    %p119 = por %p117, %p118
    %p120 = scmp.ne.s32.totalorder %s106, %s107
    %p121 = scmp.eq.s32.totalorder %s21, 1
    %p122 = por %p120, %p121
    %p124 = scmp.ne.s32.totalorder %s107, %s123
    %p125 = scmp.eq.s32.totalorder %s21, 0
    %p126 = por %p124, %p125
    %s127 = ssub.s32 %s15, %s22
    %p128 = scmp.eq.s32.totalorder %s127, 0
    %s130 = sadd.s32 %s129, 1
    %s131 = scalar_select %p128, %s129, %s130
    %p134 = pneg %p128
    %p135 = scmp.eq.s32.totalorder %s15, 1
    %p136 = por %p134, %p135
    %p137 = scmp.ne.s32.totalorder %s129, %s132
    %p138 = scmp.eq.s32.totalorder %s15, 0
    %p139 = por %p137, %p138
    %p140 = scmp.ne.s32.totalorder %s129, %s132
    %p141 = scmp.eq.s32.totalorder %s20, 1
    %p142 = por %p140, %p141
    %p143 = scmp.ne.s32.totalorder %s132, %s133
    %p144 = scmp.eq.s32.totalorder %s20, 0
    %p145 = por %p143, %p144
    %p146 = scmp.ne.s32.totalorder %s132, %s133
    %p147 = scmp.eq.s32.totalorder %s21, 1
    %p148 = por %p146, %p147
    %p150 = scmp.ne.s32.totalorder %s133, %s149
    %p151 = scmp.eq.s32.totalorder %s21, 0
    %p152 = por %p150, %p151
    %s153 = ssub.s32 %s15, %s22
    %p154 = scmp.eq.s32.totalorder %s153, 0
    %s156 = sadd.s32 %s155, 1
    %s157 = scalar_select %p154, %s155, %s156
    %p160 = pneg %p154
    %p161 = scmp.eq.s32.totalorder %s15, 1
    %p162 = por %p160, %p161
    %p163 = scmp.ne.s32.totalorder %s155, %s158
    %p164 = scmp.eq.s32.totalorder %s15, 0
    %p165 = por %p163, %p164
    %p166 = scmp.ne.s32.totalorder %s155, %s158
    %p167 = scmp.eq.s32.totalorder %s20, 1
    %p168 = por %p166, %p167
    %p169 = scmp.ne.s32.totalorder %s158, %s159
    %p170 = scmp.eq.s32.totalorder %s20, 0
    %p171 = por %p169, %p170
    %p172 = scmp.ne.s32.totalorder %s158, %s159
    %p173 = scmp.eq.s32.totalorder %s21, 1
    %p174 = por %p172, %p173
    %p176 = scmp.ne.s32.totalorder %s159, %s175
    %p177 = scmp.eq.s32.totalorder %s21, 0
    %p178 = por %p176, %p177
    %s179 = ssub.s32 %s15, %s22
    %p180 = scmp.eq.s32.totalorder %s179, 0
    %s182 = sadd.s32 %s181, 1
    %s183 = scalar_select %p180, %s181, %s182
    %p186 = pneg %p180
    %p187 = scmp.eq.s32.totalorder %s15, 1
    %p188 = por %p186, %p187
    %p189 = scmp.ne.s32.totalorder %s181, %s184
    %p190 = scmp.eq.s32.totalorder %s15, 0
    %p191 = por %p189, %p190
    %p192 = scmp.ne.s32.totalorder %s181, %s184
    %p193 = scmp.eq.s32.totalorder %s20, 1
    %p194 = por %p192, %p193
    %p195 = scmp.ne.s32.totalorder %s184, %s185
    %p196 = scmp.eq.s32.totalorder %s20, 0
    %p197 = por %p195, %p196
    %p198 = scmp.ne.s32.totalorder %s184, %s185
    %p199 = scmp.eq.s32.totalorder %s21, 1
    %p200 = por %p198, %p199
    %p202 = scmp.ne.s32.totalorder %s185, %s201
    %p203 = scmp.eq.s32.totalorder %s21, 0
    %p204 = por %p202, %p203
    %s205 = ssub.s32 %s15, %s22
    %p206 = scmp.eq.s32.totalorder %s205, 0
    %s208 = sadd.s32 %s207, 1
    %s209 = scalar_select %p206, %s207, %s208
    %p212 = pneg %p206
    %p213 = scmp.eq.s32.totalorder %s15, 1
    %p214 = por %p212, %p213
    %p215 = scmp.ne.s32.totalorder %s207, %s210
    %p216 = scmp.eq.s32.totalorder %s15, 0
    %p217 = por %p215, %p216
    %p218 = scmp.ne.s32.totalorder %s207, %s210
    %p219 = scmp.eq.s32.totalorder %s20, 1
    %p220 = por %p218, %p219
    %p221 = scmp.ne.s32.totalorder %s210, %s211
    %p222 = scmp.eq.s32.totalorder %s20, 0
    %p223 = por %p221, %p222
    %p224 = scmp.ne.s32.totalorder %s210, %s211
    %p225 = scmp.eq.s32.totalorder %s21, 1
    %p226 = por %p224, %p225
    %p228 = scmp.ne.s32.totalorder %s211, %s227
    %p229 = scmp.eq.s32.totalorder %s21, 0
    %p230 = por %p228, %p229
    %s231 = ssub.s32 %s15, %s22
    %p232 = scmp.eq.s32.totalorder %s231, 0
    %s234 = sadd.s32 %s233, 1
    %s235 = scalar_select %p232, %s233, %s234
    %p238 = pneg %p232
    %p239 = scmp.eq.s32.totalorder %s15, 1
    %p240 = por %p238, %p239
    %p241 = scmp.ne.s32.totalorder %s233, %s236
    %p242 = scmp.eq.s32.totalorder %s15, 0
    %p243 = por %p241, %p242
    %p244 = scmp.ne.s32.totalorder %s233, %s236
    %p245 = scmp.eq.s32.totalorder %s20, 1
    %p246 = por %p244, %p245
    %p247 = scmp.ne.s32.totalorder %s236, %s237
    %p248 = scmp.eq.s32.totalorder %s20, 0
    %p249 = por %p247, %p248
    %p250 = scmp.ne.s32.totalorder %s236, %s237
    %p251 = scmp.eq.s32.totalorder %s21, 1
    %p252 = por %p250, %p251
    %p254 = scmp.ne.s32.totalorder %s237, %s253
    %p255 = scmp.eq.s32.totalorder %s21, 0
    %p256 = por %p254, %p255
    %p257 = scmp.le.s32.totalorder 1, %s15
    %p258 = scmp.lt.s32.totalorder %s15, 3
    %p259 = pnand %p257, %p258
    %p260 = pneg %p259
    // Predicated region
    $region9: #{edge_encoder_forward.1} parent=5 // pred_check
      _
    $region10: #{edge_encoder_forward.1} parent=5 // pred_check_branch
      %262 = sbr.rel (%p259) target = $region12
    $region11: #{edge_encoder_forward.1} parent=5 // pred_region
      %s263 = ssub.s32 %s15, 1
    $region12: #{edge_encoder_forward.1} parent=5 // pred_fallthru
      _
    %p264 = scmp.lt.s32.totalorder %s15, 2
    // Predicated region
    $region13: #{edge_encoder_forward.1} parent=5 // pred_check
      %p265 = pneg %p264
    $region14: #{edge_encoder_forward.1} parent=5 // pred_check_branch
      %267 = sbr.rel (%p265) target = $region16
    $region15: #{edge_encoder_forward.1} parent=5 // pred_region
      // Predicated region
      $region17: #{edge_encoder_forward.1} parent=15 // pred_check
        %p268 = pneg %p35
      $region18: #{edge_encoder_forward.1} parent=15 // pred_check_branch
        %270 = sbr.rel (%p268) target = $region20
      $region19: #{edge_encoder_forward.1} parent=15 // pred_region
        %s271 = smul.u32 4, %s15
        %p272 = scmp.lt.s32.totalorder %s271, 7
        %s273 = scalar_select %p272, %s271, 7
        %s274 = smul.addr %s273, 8
        %s275 = scalar_lea.vmem %s0, %s274
        %s276 = smul.u32 4, %s15
      $region20: #{edge_encoder_forward.1} parent=15 // pred_fallthru
        _
      // Predicated region
      $region21: #{edge_encoder_forward.1} parent=15 // pred_check
        %p277 = pneg %p61
      $region22: #{edge_encoder_forward.1} parent=15 // pred_check_branch
        %279 = sbr.rel (%p277) target = $region24
      $region23: #{edge_encoder_forward.1} parent=15 // pred_region
        %s280 = smul.u32 32, %s15
        %p281 = scmp.lt.s32.totalorder %s280, 63
        %s282 = scalar_select %p281, %s280, 63
        %s283 = smul.addr %s282, 8
        %s284 = scalar_lea.vmem %s1, %s283
        %s285 = smul.u32 32, %s15
      $region24: #{edge_encoder_forward.1} parent=15 // pred_fallthru
        _
      // Predicated region
      $region25: #{edge_encoder_forward.1} parent=15 // pred_check
        %p286 = pneg %p87
      $region26: #{edge_encoder_forward.1} parent=15 // pred_check_branch
        %288 = sbr.rel (%p286) target = $region28
      $region27: #{edge_encoder_forward.1} parent=15 // pred_region
        %s289 = smul.u32 32, %s15
        %p290 = scmp.lt.s32.totalorder %s289, 63
        %s291 = scalar_select %p290, %s289, 63
        %s292 = smul.addr %s291, 4
        %s293 = scalar_lea.vmem %s2, %s292
        %s294 = smul.u32 32, %s15
      $region28: #{edge_encoder_forward.1} parent=15 // pred_fallthru
        _
      // Predicated region
      $region29: #{edge_encoder_forward.1} parent=15 // pred_check
        %p295 = pneg %p113
      $region30: #{edge_encoder_forward.1} parent=15 // pred_check_branch
        %297 = sbr.rel (%p295) target = $region32
      $region31: #{edge_encoder_forward.1} parent=15 // pred_region
        %s298 = smul.u32 32, %s15
        %p299 = scmp.lt.s32.totalorder %s298, 63
        %s300 = scalar_select %p299, %s298, 63
        %s301 = smul.addr %s300, 4
        %s302 = scalar_lea.vmem %s3, %s301
        %s303 = smul.u32 32, %s15
      $region32: #{edge_encoder_forward.1} parent=15 // pred_fallthru
        _
      // Predicated region
      $region33: #{edge_encoder_forward.1} parent=15 // pred_check
        %p304 = pneg %p139
      $region34: #{edge_encoder_forward.1} parent=15 // pred_check_branch
        %306 = sbr.rel (%p304) target = $region36
      $region35: #{edge_encoder_forward.1} parent=15 // pred_region
        %s307 = smul.u32 4, %s15
        %p308 = scmp.lt.s32.totalorder %s307, 7
        %s309 = scalar_select %p308, %s307, 7
        %s310 = smul.addr %s309, 8
        %s311 = scalar_lea.vmem %s4, %s310
        %s312 = smul.u32 4, %s15
      $region36: #{edge_encoder_forward.1} parent=15 // pred_fallthru
        _
      // Predicated region
      $region37: #{edge_encoder_forward.1} parent=15 // pred_check
        %p313 = pneg %p165
      $region38: #{edge_encoder_forward.1} parent=15 // pred_check_branch
        %315 = sbr.rel (%p313) target = $region40
      $region39: #{edge_encoder_forward.1} parent=15 // pred_region
        %s316 = smul.u32 32, %s15
        %p317 = scmp.lt.s32.totalorder %s316, 63
        %s318 = scalar_select %p317, %s316, 63
        %s319 = smul.addr %s318, 3
        %s320 = smul.addr %s319, 8
        %s321 = scalar_lea.vmem %s5, %s320
        %s322 = smul.u32 32, %s15
      $region40: #{edge_encoder_forward.1} parent=15 // pred_fallthru
        _
      // Predicated region
      $region41: #{edge_encoder_forward.1} parent=15 // pred_check
        %p323 = pneg %p191
      $region42: #{edge_encoder_forward.1} parent=15 // pred_check_branch
        %325 = sbr.rel (%p323) target = $region44
      $region43: #{edge_encoder_forward.1} parent=15 // pred_region
        %s326 = smul.u32 4, %s15
        %p327 = scmp.lt.s32.totalorder %s326, 7
        %s328 = scalar_select %p327, %s326, 7
        %s329 = smul.addr %s328, 8
        %s330 = scalar_lea.vmem %s6, %s329
        %s331 = smul.u32 4, %s15
      $region44: #{edge_encoder_forward.1} parent=15 // pred_fallthru
        _
    $region16: #{edge_encoder_forward.1} parent=5 // pred_fallthru
      _
    %p332 = scmp.le.s32.totalorder 1, %s15
    %p333 = scmp.lt.s32.totalorder %s15, 3
    %p334 = pnand %p332, %p333
    %p335 = pneg %p334
    // Predicated region
    $region45: #{edge_encoder_forward.1} parent=5 // pred_check
      _
    $region46: #{edge_encoder_forward.1} parent=5 // pred_check_branch
      %337 = sbr.rel (%p334) target = $region48
    $region47: #{edge_encoder_forward.1} parent=5 // pred_region
      %s338 = ssub.s32 %s15, 1
      %s339 = smul.u32 4, %s20
      %p340 = scmp.lt.s32.totalorder %s339, 7
      %s341 = scalar_select %p340, %s339, 7
      %s342 = smul.addr %s341, 8
      %s343 = scalar_lea.vmem %s0, %s342
      %p344 = pneg %p41
      %p345 = pneg %p38
      %s346 = smul.u32 32, %s20
      %p347 = scmp.lt.s32.totalorder %s346, 63
      %s348 = scalar_select %p347, %s346, 63
      %s349 = smul.addr %s348, 8
      %s350 = scalar_lea.vmem %s1, %s349
      %p351 = pneg %p67
      %p352 = pneg %p64
      %s353 = smul.u32 32, %s20
      %p354 = scmp.lt.s32.totalorder %s353, 63
      %s355 = scalar_select %p354, %s353, 63
      %s356 = smul.addr %s355, 4
      %s357 = scalar_lea.vmem %s2, %s356
      %p358 = pneg %p93
      %p359 = pneg %p90
      %s360 = smul.u32 32, %s20
      %p361 = scmp.lt.s32.totalorder %s360, 63
      %s362 = scalar_select %p361, %s360, 63
      %s363 = smul.addr %s362, 4
      %s364 = scalar_lea.vmem %s3, %s363
      %p365 = pneg %p119
      %p366 = pneg %p116
      %s367 = smul.u32 4, %s20
      %p368 = scmp.lt.s32.totalorder %s367, 7
      %s369 = scalar_select %p368, %s367, 7
      %s370 = smul.addr %s369, 8
      %s371 = scalar_lea.vmem %s4, %s370
      %p372 = pneg %p145
      %p373 = pneg %p142
      %s374 = smul.u32 32, %s20
      %p375 = scmp.lt.s32.totalorder %s374, 63
      %s376 = scalar_select %p375, %s374, 63
      %s377 = smul.addr %s376, 3
      %s378 = smul.addr %s377, 8
      %s379 = scalar_lea.vmem %s5, %s378
      %p380 = pneg %p171
      %p381 = pneg %p168
      %s382 = smul.u32 4, %s20
      %p383 = scmp.lt.s32.totalorder %s382, 7
      %s384 = scalar_select %p383, %s382, 7
      %s385 = smul.addr %s384, 8
      %s386 = scalar_lea.vmem %s6, %s385
      %p387 = pneg %p197
      %p388 = pneg %p194
      %p389 = pneg %p223
      %p390 = pneg %p220
      %s391 = smul.u32 4, %s20
      %p392 = scmp.lt.s32.totalorder %s391, 7
      %s393 = scalar_select %p392, %s391, 7
      %s394 = smul.addr %s393, 8
      %s395 = scalar_lea.vmem %s7, %s394
      %p396 = pneg %p249
      %p397 = pneg %p246
      %s398 = smul.u32 4, %s20
      %p399 = scmp.lt.s32.totalorder %s398, 7
      %s400 = scalar_select %p399, %s398, 7
      %s401 = smul.addr %s400, 8
      %s402 = scalar_lea.vmem %s8, %s401
      %s403 = smul.u32 4, %s20
      %p404 = scmp.lt.s32.totalorder %s403, 7
      %s405 = scalar_select %p404, %s403, 7
      %s406 = smul.addr %s405, 8
      %s407 = scalar_lea.vmem %s0, %s406
      %s408 = smul.u32 4, %s20
      %s409 = smul.u32 32, %s20
      %p410 = scmp.lt.s32.totalorder %s409, 63
      %s411 = scalar_select %p410, %s409, 63
      %s412 = smul.addr %s411, 8
      %s413 = scalar_lea.vmem %s1, %s412
      %s414 = smul.u32 32, %s20
      %s415 = smul.u32 32, %s20
      %p416 = scmp.lt.s32.totalorder %s415, 63
      %s417 = scalar_select %p416, %s415, 63
      %s418 = smul.addr %s417, 4
      %s419 = scalar_lea.vmem %s2, %s418
      %s420 = smul.u32 32, %s20
      %s421 = smul.u32 32, %s20
      %p422 = scmp.lt.s32.totalorder %s421, 63
      %s423 = scalar_select %p422, %s421, 63
      %s424 = smul.addr %s423, 4
      %s425 = scalar_lea.vmem %s3, %s424
      %s426 = smul.u32 32, %s20
      %s427 = smul.u32 4, %s20
      %p428 = scmp.lt.s32.totalorder %s427, 7
      %s429 = scalar_select %p428, %s427, 7
      %s430 = smul.addr %s429, 8
      %s431 = scalar_lea.vmem %s4, %s430
      %s432 = smul.u32 4, %s20
      %s433 = smul.u32 32, %s20
      %p434 = scmp.lt.s32.totalorder %s433, 63
      %s435 = scalar_select %p434, %s433, 63
      %s436 = smul.addr %s435, 3
      %s437 = smul.addr %s436, 8
      %s438 = scalar_lea.vmem %s5, %s437
      %s439 = smul.u32 32, %s20
      %s440 = smul.u32 4, %s20
      %p441 = scmp.lt.s32.totalorder %s440, 7
      %s442 = scalar_select %p441, %s440, 7
      %s443 = smul.addr %s442, 8
      %s444 = scalar_lea.vmem %s6, %s443
      %s445 = smul.u32 4, %s20
      %s446 = smul.u32 4, %s20
      %p447 = scmp.lt.s32.totalorder %s446, 7
      %s448 = scalar_select %p447, %s446, 7
      %s449 = smul.addr %s448, 8
      %s450 = scalar_lea.vmem %s7, %s449
      %s451 = smul.u32 4, %s20
      %s452 = smul.u32 4, %s20
      %p453 = scmp.lt.s32.totalorder %s452, 7
      %s454 = scalar_select %p453, %s452, 7
      %s455 = smul.addr %s454, 8
      %s456 = scalar_lea.vmem %s8, %s455
      %s457 = smul.u32 4, %s20
      %v458 = vld [vmem:[%s407] sm:$0xff]
      %v459 = vld [vmem:[%s407 + $0x8] sm:$0xff]
      %v460 = vld [vmem:[%s407 + $0x10] sm:$0xff]
      %v461 = vld [vmem:[%s407 + $0x18] sm:$0xff]
      %v462 = vld [vmem:[%s413] sm:$0xff]
      %v463 = vld [vmem:[%s413 + $0x8] sm:$0xff]
      %v464 = vld [vmem:[%s413 + $0x10] sm:$0xff]
      %v465 = vld [vmem:[%s413 + $0x18] sm:$0xff]
      %v466 = vld [vmem:[%s413 + $0x20] sm:$0xff]
      %v467 = vld [vmem:[%s413 + $0x28] sm:$0xff]
      %v468 = vld [vmem:[%s413 + $0x30] sm:$0xff]
      %v469 = vld [vmem:[%s413 + $0x38] sm:$0xff]
      %v470 = vld [vmem:[%s413 + $0x40] sm:$0xff]
      %v471 = vld [vmem:[%s413 + $0x48] sm:$0xff]
      %v472 = vld [vmem:[%s413 + $0x50] sm:$0xff]
      %v473 = vld [vmem:[%s413 + $0x58] sm:$0xff]
      %v474 = vld [vmem:[%s413 + $0x60] sm:$0xff]
      %v475 = vld [vmem:[%s413 + $0x68] sm:$0xff]
      %v476 = vld [vmem:[%s413 + $0x70] sm:$0xff]
      %v477 = vld [vmem:[%s413 + $0x78] sm:$0xff]
      %v478 = vld [vmem:[%s413 + $0x80] sm:$0xff]
      %v479 = vld [vmem:[%s413 + $0x88] sm:$0xff]
      %v480 = vld [vmem:[%s413 + $0x90] sm:$0xff]
      %v481 = vld [vmem:[%s413 + $0x98] sm:$0xff]
      %v482 = vld [vmem:[%s413 + $0xa0] sm:$0xff]
      %v483 = vld [vmem:[%s413 + $0xa8] sm:$0xff]
      %v484 = vld [vmem:[%s413 + $0xb0] sm:$0xff]
      %v485 = vld [vmem:[%s413 + $0xb8] sm:$0xff]
      %v486 = vld [vmem:[%s413 + $0xc0] sm:$0xff]
      %v487 = vld [vmem:[%s413 + $0xc8] sm:$0xff]
      %v488 = vld [vmem:[%s413 + $0xd0] sm:$0xff]
      %v489 = vld [vmem:[%s413 + $0xd8] sm:$0xff]
      %v490 = vld [vmem:[%s413 + $0xe0] sm:$0xff]
      %v491 = vld [vmem:[%s413 + $0xe8] sm:$0xff]
      %v492 = vld [vmem:[%s413 + $0xf0] sm:$0xff]
      %v493 = vld [vmem:[%s413 + $0xf8] sm:$0xff]
      %v494 = vlaneseq
      %v495 = vshrl.u32 %v494, 7
      %v496 = vsub.s32 0, %v495
      %v497 = vrot.slane %v458, %v496
      %499 = vbcast.lane.b32.xlu0 %v497, 256
      %v500 = vpop.permute.xlu0 %499
      %v501 = vlaneseq
      %v502 = vshrl.u32 %v501, 7
      %v503 = vsub.s32 1, %v502
      %v504 = vrot.slane %v458, %v503
      %506 = vbcast.lane.b32.xlu0 %v504, 256
      %v507 = vpop.permute.xlu0 %506
      %v508 = vlaneseq
      %v509 = vshrl.u32 %v508, 7
      %v510 = vsub.s32 2, %v509
      %v511 = vrot.slane %v458, %v510
      %513 = vbcast.lane.b32.xlu0 %v511, 256
      %v514 = vpop.permute.xlu0 %513
      %v515 = vlaneseq
      %v516 = vshrl.u32 %v515, 7
      %v517 = vsub.s32 3, %v516
      %v518 = vrot.slane %v458, %v517
      %520 = vbcast.lane.b32.xlu0 %v518, 256
      %v521 = vpop.permute.xlu0 %520
      %v522 = vlaneseq
      %v523 = vshrl.u32 %v522, 7
      %v524 = vsub.s32 4, %v523
      %v525 = vrot.slane %v458, %v524
      %527 = vbcast.lane.b32.xlu0 %v525, 256
      %v528 = vpop.permute.xlu0 %527
      %v529 = vlaneseq
      %v530 = vshrl.u32 %v529, 7
      %v531 = vsub.s32 5, %v530
      %v532 = vrot.slane %v458, %v531
      %534 = vbcast.lane.b32.xlu0 %v532, 256
      %v535 = vpop.permute.xlu0 %534
      %v536 = vlaneseq
      %v537 = vshrl.u32 %v536, 7
      %v538 = vsub.s32 6, %v537
      %v539 = vrot.slane %v458, %v538
      %541 = vbcast.lane.b32.xlu0 %v539, 256
      %v542 = vpop.permute.xlu0 %541
      %v543 = vlaneseq
      %v544 = vshrl.u32 %v543, 7
      %v545 = vsub.s32 7, %v544
      %v546 = vrot.slane %v458, %v545
      %548 = vbcast.lane.b32.xlu0 %v546, 256
      %v549 = vpop.permute.xlu0 %548
      %v550 = vlaneseq
      %v551 = vshrl.u32 %v550, 7
      %v552 = vsub.s32 0, %v551
      %v553 = vrot.slane %v459, %v552
      %555 = vbcast.lane.b32.xlu0 %v553, 256
      %v556 = vpop.permute.xlu0 %555
      %v557 = vlaneseq
      %v558 = vshrl.u32 %v557, 7
      %v559 = vsub.s32 1, %v558
      %v560 = vrot.slane %v459, %v559
      %562 = vbcast.lane.b32.xlu0 %v560, 256
      %v563 = vpop.permute.xlu0 %562
      %v564 = vlaneseq
      %v565 = vshrl.u32 %v564, 7
      %v566 = vsub.s32 2, %v565
      %v567 = vrot.slane %v459, %v566
      %569 = vbcast.lane.b32.xlu0 %v567, 256
      %v570 = vpop.permute.xlu0 %569
      %v571 = vlaneseq
      %v572 = vshrl.u32 %v571, 7
      %v573 = vsub.s32 3, %v572
      %v574 = vrot.slane %v459, %v573
      %576 = vbcast.lane.b32.xlu0 %v574, 256
      %v577 = vpop.permute.xlu0 %576
      %v578 = vlaneseq
      %v579 = vshrl.u32 %v578, 7
      %v580 = vsub.s32 4, %v579
      %v581 = vrot.slane %v459, %v580
      %583 = vbcast.lane.b32.xlu0 %v581, 256
      %v584 = vpop.permute.xlu0 %583
      %v585 = vlaneseq
      %v586 = vshrl.u32 %v585, 7
      %v587 = vsub.s32 5, %v586
      %v588 = vrot.slane %v459, %v587
      %590 = vbcast.lane.b32.xlu0 %v588, 256
      %v591 = vpop.permute.xlu0 %590
      %v592 = vlaneseq
      %v593 = vshrl.u32 %v592, 7
      %v594 = vsub.s32 6, %v593
      %v595 = vrot.slane %v459, %v594
      %597 = vbcast.lane.b32.xlu0 %v595, 256
      %v598 = vpop.permute.xlu0 %597
      %v599 = vlaneseq
      %v600 = vshrl.u32 %v599, 7
      %v601 = vsub.s32 7, %v600
      %v602 = vrot.slane %v459, %v601
      %604 = vbcast.lane.b32.xlu0 %v602, 256
      %v605 = vpop.permute.xlu0 %604
      %v606 = vlaneseq
      %v607 = vshrl.u32 %v606, 7
      %v608 = vsub.s32 0, %v607
      %v609 = vrot.slane %v460, %v608
      %611 = vbcast.lane.b32.xlu0 %v609, 256
      %v612 = vpop.permute.xlu0 %611
      %v613 = vlaneseq
      %v614 = vshrl.u32 %v613, 7
      %v615 = vsub.s32 1, %v614
      %v616 = vrot.slane %v460, %v615
      %618 = vbcast.lane.b32.xlu0 %v616, 256
      %v619 = vpop.permute.xlu0 %618
      %v620 = vlaneseq
      %v621 = vshrl.u32 %v620, 7
      %v622 = vsub.s32 2, %v621
      %v623 = vrot.slane %v460, %v622
      %625 = vbcast.lane.b32.xlu0 %v623, 256
      %v626 = vpop.permute.xlu0 %625
      %v627 = vlaneseq
      %v628 = vshrl.u32 %v627, 7
      %v629 = vsub.s32 3, %v628
      %v630 = vrot.slane %v460, %v629
      %632 = vbcast.lane.b32.xlu0 %v630, 256
      %v633 = vpop.permute.xlu0 %632
      %v634 = vlaneseq
      %v635 = vshrl.u32 %v634, 7
      %v636 = vsub.s32 4, %v635
      %v637 = vrot.slane %v460, %v636
      %639 = vbcast.lane.b32.xlu0 %v637, 256
      %v640 = vpop.permute.xlu0 %639
      %v641 = vlaneseq
      %v642 = vshrl.u32 %v641, 7
      %v643 = vsub.s32 5, %v642
      %v644 = vrot.slane %v460, %v643
      %646 = vbcast.lane.b32.xlu0 %v644, 256
      %v647 = vpop.permute.xlu0 %646
      %v648 = vlaneseq
      %v649 = vshrl.u32 %v648, 7
      %v650 = vsub.s32 6, %v649
      %v651 = vrot.slane %v460, %v650
      %653 = vbcast.lane.b32.xlu0 %v651, 256
      %v654 = vpop.permute.xlu0 %653
      %v655 = vlaneseq
      %v656 = vshrl.u32 %v655, 7
      %v657 = vsub.s32 7, %v656
      %v658 = vrot.slane %v460, %v657
      %660 = vbcast.lane.b32.xlu0 %v658, 256
      %v661 = vpop.permute.xlu0 %660
      %v662 = vlaneseq
      %v663 = vshrl.u32 %v662, 7
      %v664 = vsub.s32 0, %v663
      %v665 = vrot.slane %v461, %v664
      %667 = vbcast.lane.b32.xlu0 %v665, 256
      %v668 = vpop.permute.xlu0 %667
      %v669 = vlaneseq
      %v670 = vshrl.u32 %v669, 7
      %v671 = vsub.s32 1, %v670
      %v672 = vrot.slane %v461, %v671
      %674 = vbcast.lane.b32.xlu0 %v672, 256
      %v675 = vpop.permute.xlu0 %674
      %v676 = vlaneseq
      %v677 = vshrl.u32 %v676, 7
      %v678 = vsub.s32 2, %v677
      %v679 = vrot.slane %v461, %v678
      %681 = vbcast.lane.b32.xlu0 %v679, 256
      %v682 = vpop.permute.xlu0 %681
      %v683 = vlaneseq
      %v684 = vshrl.u32 %v683, 7
      %v685 = vsub.s32 3, %v684
      %v686 = vrot.slane %v461, %v685
      %688 = vbcast.lane.b32.xlu0 %v686, 256
      %v689 = vpop.permute.xlu0 %688
      %v690 = vlaneseq
      %v691 = vshrl.u32 %v690, 7
      %v692 = vsub.s32 4, %v691
      %v693 = vrot.slane %v461, %v692
      %695 = vbcast.lane.b32.xlu0 %v693, 256
      %v696 = vpop.permute.xlu0 %695
      %v697 = vlaneseq
      %v698 = vshrl.u32 %v697, 7
      %v699 = vsub.s32 5, %v698
      %v700 = vrot.slane %v461, %v699
      %702 = vbcast.lane.b32.xlu0 %v700, 256
      %v703 = vpop.permute.xlu0 %702
      %v704 = vlaneseq
      %v705 = vshrl.u32 %v704, 7
      %v706 = vsub.s32 6, %v705
      %v707 = vrot.slane %v461, %v706
      %709 = vbcast.lane.b32.xlu0 %v707, 256
      %v710 = vpop.permute.xlu0 %709
      %v711 = vlaneseq
      %v712 = vshrl.u32 %v711, 7
      %v713 = vsub.s32 7, %v712
      %v714 = vrot.slane %v461, %v713
      %716 = vbcast.lane.b32.xlu0 %v714, 256
      %v717 = vpop.permute.xlu0 %716
      %v718 = vmul.f32 %v462, %v500
      %v719 = vmul.f32 %v463, %v507
      %v720 = vmul.f32 %v464, %v514
      %v721 = vmul.f32 %v465, %v521
      %v722 = vmul.f32 %v466, %v528
      %v723 = vmul.f32 %v467, %v535
      %v724 = vmul.f32 %v468, %v542
      %v725 = vmul.f32 %v469, %v549
      %v726 = vmul.f32 %v470, %v556
      %v727 = vmul.f32 %v471, %v563
      %v728 = vmul.f32 %v472, %v570
      %v729 = vmul.f32 %v473, %v577
      %v730 = vmul.f32 %v474, %v584
      %v731 = vmul.f32 %v475, %v591
      %v732 = vmul.f32 %v476, %v598
      %v733 = vmul.f32 %v477, %v605
      %v734 = vmul.f32 %v478, %v612
      %v735 = vmul.f32 %v479, %v619
      %v736 = vmul.f32 %v480, %v626
      %v737 = vmul.f32 %v481, %v633
      %v738 = vmul.f32 %v482, %v640
      %v739 = vmul.f32 %v483, %v647
      %v740 = vmul.f32 %v484, %v654
      %v741 = vmul.f32 %v485, %v661
      %v742 = vmul.f32 %v486, %v668
      %v743 = vmul.f32 %v487, %v675
      %v744 = vmul.f32 %v488, %v682
      %v745 = vmul.f32 %v489, %v689
      %v746 = vmul.f32 %v490, %v696
      %v747 = vmul.f32 %v491, %v703
      %v748 = vmul.f32 %v492, %v710
      %v749 = vmul.f32 %v493, %v717
      %v750 = vrot.slane %v718, 4
      %v751 = vadd.f32 %v718, %v750
      %v752 = vrot.slane %v751, 2
      %v753 = vadd.f32 %v751, %v752
      %v754 = vrot.slane %v753, 1
      %v755 = vadd.f32 %v753, %v754
      %v756 = vrot.slane %v719, 4
      %v757 = vadd.f32 %v719, %v756
      %v758 = vrot.slane %v757, 2
      %v759 = vadd.f32 %v757, %v758
      %v760 = vrot.slane %v759, 1
      %v761 = vadd.f32 %v759, %v760
      %v762 = vrot.slane %v720, 4
      %v763 = vadd.f32 %v720, %v762
      %v764 = vrot.slane %v763, 2
      %v765 = vadd.f32 %v763, %v764
      %v766 = vrot.slane %v765, 1
      %v767 = vadd.f32 %v765, %v766
      %v768 = vrot.slane %v721, 4
      %v769 = vadd.f32 %v721, %v768
      %v770 = vrot.slane %v769, 2
      %v771 = vadd.f32 %v769, %v770
      %v772 = vrot.slane %v771, 1
      %v773 = vadd.f32 %v771, %v772
      %v774 = vrot.slane %v722, 4
      %v775 = vadd.f32 %v722, %v774
      %v776 = vrot.slane %v775, 2
      %v777 = vadd.f32 %v775, %v776
      %v778 = vrot.slane %v777, 1
      %v779 = vadd.f32 %v777, %v778
      %v780 = vrot.slane %v723, 4
      %v781 = vadd.f32 %v723, %v780
      %v782 = vrot.slane %v781, 2
      %v783 = vadd.f32 %v781, %v782
      %v784 = vrot.slane %v783, 1
      %v785 = vadd.f32 %v783, %v784
      %v786 = vrot.slane %v724, 4
      %v787 = vadd.f32 %v724, %v786
      %v788 = vrot.slane %v787, 2
      %v789 = vadd.f32 %v787, %v788
      %v790 = vrot.slane %v789, 1
      %v791 = vadd.f32 %v789, %v790
      %v792 = vrot.slane %v725, 4
      %v793 = vadd.f32 %v725, %v792
      %v794 = vrot.slane %v793, 2
      %v795 = vadd.f32 %v793, %v794
      %v796 = vrot.slane %v795, 1
      %v797 = vadd.f32 %v795, %v796
      %v798 = vrot.slane %v726, 4
      %v799 = vadd.f32 %v726, %v798
      %v800 = vrot.slane %v799, 2
      %v801 = vadd.f32 %v799, %v800
      %v802 = vrot.slane %v801, 1
      %v803 = vadd.f32 %v801, %v802
      %v804 = vrot.slane %v727, 4
      %v805 = vadd.f32 %v727, %v804
      %v806 = vrot.slane %v805, 2
      %v807 = vadd.f32 %v805, %v806
      %v808 = vrot.slane %v807, 1
      %v809 = vadd.f32 %v807, %v808
      %v810 = vrot.slane %v728, 4
      %v811 = vadd.f32 %v728, %v810
      %v812 = vrot.slane %v811, 2
      %v813 = vadd.f32 %v811, %v812
      %v814 = vrot.slane %v813, 1
      %v815 = vadd.f32 %v813, %v814
      %v816 = vrot.slane %v729, 4
      %v817 = vadd.f32 %v729, %v816
      %v818 = vrot.slane %v817, 2
      %v819 = vadd.f32 %v817, %v818
      %v820 = vrot.slane %v819, 1
      %v821 = vadd.f32 %v819, %v820
      %v822 = vrot.slane %v730, 4
      %v823 = vadd.f32 %v730, %v822
      %v824 = vrot.slane %v823, 2
      %v825 = vadd.f32 %v823, %v824
      %v826 = vrot.slane %v825, 1
      %v827 = vadd.f32 %v825, %v826
      %v828 = vrot.slane %v731, 4
      %v829 = vadd.f32 %v731, %v828
      %v830 = vrot.slane %v829, 2
      %v831 = vadd.f32 %v829, %v830
      %v832 = vrot.slane %v831, 1
      %v833 = vadd.f32 %v831, %v832
      %v834 = vrot.slane %v732, 4
      %v835 = vadd.f32 %v732, %v834
      %v836 = vrot.slane %v835, 2
      %v837 = vadd.f32 %v835, %v836
      %v838 = vrot.slane %v837, 1
      %v839 = vadd.f32 %v837, %v838
      %v840 = vrot.slane %v733, 4
      %v841 = vadd.f32 %v733, %v840
      %v842 = vrot.slane %v841, 2
      %v843 = vadd.f32 %v841, %v842
      %v844 = vrot.slane %v843, 1
      %v845 = vadd.f32 %v843, %v844
      %v846 = vrot.slane %v734, 4
      %v847 = vadd.f32 %v734, %v846
      %v848 = vrot.slane %v847, 2
      %v849 = vadd.f32 %v847, %v848
      %v850 = vrot.slane %v849, 1
      %v851 = vadd.f32 %v849, %v850
      %v852 = vrot.slane %v735, 4
      %v853 = vadd.f32 %v735, %v852
      %v854 = vrot.slane %v853, 2
      %v855 = vadd.f32 %v853, %v854
      %v856 = vrot.slane %v855, 1
      %v857 = vadd.f32 %v855, %v856
      %v858 = vrot.slane %v736, 4
      %v859 = vadd.f32 %v736, %v858
      %v860 = vrot.slane %v859, 2
      %v861 = vadd.f32 %v859, %v860
      %v862 = vrot.slane %v861, 1
      %v863 = vadd.f32 %v861, %v862
      %v864 = vrot.slane %v737, 4
      %v865 = vadd.f32 %v737, %v864
      %v866 = vrot.slane %v865, 2
      %v867 = vadd.f32 %v865, %v866
      %v868 = vrot.slane %v867, 1
      %v869 = vadd.f32 %v867, %v868
      %v870 = vrot.slane %v738, 4
      %v871 = vadd.f32 %v738, %v870
      %v872 = vrot.slane %v871, 2
      %v873 = vadd.f32 %v871, %v872
      %v874 = vrot.slane %v873, 1
      %v875 = vadd.f32 %v873, %v874
      %v876 = vrot.slane %v739, 4
      %v877 = vadd.f32 %v739, %v876
      %v878 = vrot.slane %v877, 2
      %v879 = vadd.f32 %v877, %v878
      %v880 = vrot.slane %v879, 1
      %v881 = vadd.f32 %v879, %v880
      %v882 = vrot.slane %v740, 4
      %v883 = vadd.f32 %v740, %v882
      %v884 = vrot.slane %v883, 2
      %v885 = vadd.f32 %v883, %v884
      %v886 = vrot.slane %v885, 1
      %v887 = vadd.f32 %v885, %v886
      %v888 = vrot.slane %v741, 4
      %v889 = vadd.f32 %v741, %v888
      %v890 = vrot.slane %v889, 2
      %v891 = vadd.f32 %v889, %v890
      %v892 = vrot.slane %v891, 1
      %v893 = vadd.f32 %v891, %v892
      %v894 = vrot.slane %v742, 4
      %v895 = vadd.f32 %v742, %v894
      %v896 = vrot.slane %v895, 2
      %v897 = vadd.f32 %v895, %v896
      %v898 = vrot.slane %v897, 1
      %v899 = vadd.f32 %v897, %v898
      %v900 = vrot.slane %v743, 4
      %v901 = vadd.f32 %v743, %v900
      %v902 = vrot.slane %v901, 2
      %v903 = vadd.f32 %v901, %v902
      %v904 = vrot.slane %v903, 1
      %v905 = vadd.f32 %v903, %v904
      %v906 = vrot.slane %v744, 4
      %v907 = vadd.f32 %v744, %v906
      %v908 = vrot.slane %v907, 2
      %v909 = vadd.f32 %v907, %v908
      %v910 = vrot.slane %v909, 1
      %v911 = vadd.f32 %v909, %v910
      %v912 = vrot.slane %v745, 4
      %v913 = vadd.f32 %v745, %v912
      %v914 = vrot.slane %v913, 2
      %v915 = vadd.f32 %v913, %v914
      %v916 = vrot.slane %v915, 1
      %v917 = vadd.f32 %v915, %v916
      %v918 = vrot.slane %v746, 4
      %v919 = vadd.f32 %v746, %v918
      %v920 = vrot.slane %v919, 2
      %v921 = vadd.f32 %v919, %v920
      %v922 = vrot.slane %v921, 1
      %v923 = vadd.f32 %v921, %v922
      %v924 = vrot.slane %v747, 4
      %v925 = vadd.f32 %v747, %v924
      %v926 = vrot.slane %v925, 2
      %v927 = vadd.f32 %v925, %v926
      %v928 = vrot.slane %v927, 1
      %v929 = vadd.f32 %v927, %v928
      %v930 = vrot.slane %v748, 4
      %v931 = vadd.f32 %v748, %v930
      %v932 = vrot.slane %v931, 2
      %v933 = vadd.f32 %v931, %v932
      %v934 = vrot.slane %v933, 1
      %v935 = vadd.f32 %v933, %v934
      %v936 = vrot.slane %v749, 4
      %v937 = vadd.f32 %v749, %v936
      %v938 = vrot.slane %v937, 2
      %v939 = vadd.f32 %v937, %v938
      %v940 = vrot.slane %v939, 1
      %v941 = vadd.f32 %v939, %v940
      %v942 = vld [vmem:[%s419] sm:$0xf]
      %v943 = vld [vmem:[%s419 + $0x4] sm:$0xf]
      %v944 = vld [vmem:[%s419 + $0x8] sm:$0xf]
      %v945 = vld [vmem:[%s419 + $0xc] sm:$0xf]
      %v946 = vld [vmem:[%s419 + $0x10] sm:$0xf]
      %v947 = vld [vmem:[%s419 + $0x14] sm:$0xf]
      %v948 = vld [vmem:[%s419 + $0x18] sm:$0xf]
      %v949 = vld [vmem:[%s419 + $0x1c] sm:$0xf]
      %v950 = vld [vmem:[%s419 + $0x20] sm:$0xf]
      %v951 = vld [vmem:[%s419 + $0x24] sm:$0xf]
      %v952 = vld [vmem:[%s419 + $0x28] sm:$0xf]
      %v953 = vld [vmem:[%s419 + $0x2c] sm:$0xf]
      %v954 = vld [vmem:[%s419 + $0x30] sm:$0xf]
      %v955 = vld [vmem:[%s419 + $0x34] sm:$0xf]
      %v956 = vld [vmem:[%s419 + $0x38] sm:$0xf]
      %v957 = vld [vmem:[%s419 + $0x3c] sm:$0xf]
      %v958 = vld [vmem:[%s419 + $0x40] sm:$0xf]
      %v959 = vld [vmem:[%s419 + $0x44] sm:$0xf]
      %v960 = vld [vmem:[%s419 + $0x48] sm:$0xf]
      %v961 = vld [vmem:[%s419 + $0x4c] sm:$0xf]
      %v962 = vld [vmem:[%s419 + $0x50] sm:$0xf]
      %v963 = vld [vmem:[%s419 + $0x54] sm:$0xf]
      %v964 = vld [vmem:[%s419 + $0x58] sm:$0xf]
      %v965 = vld [vmem:[%s419 + $0x5c] sm:$0xf]
      %v966 = vld [vmem:[%s419 + $0x60] sm:$0xf]
      %v967 = vld [vmem:[%s419 + $0x64] sm:$0xf]
      %v968 = vld [vmem:[%s419 + $0x68] sm:$0xf]
      %v969 = vld [vmem:[%s419 + $0x6c] sm:$0xf]
      %v970 = vld [vmem:[%s419 + $0x70] sm:$0xf]
      %v971 = vld [vmem:[%s419 + $0x74] sm:$0xf]
      %v972 = vld [vmem:[%s419 + $0x78] sm:$0xf]
      %v973 = vld [vmem:[%s419 + $0x7c] sm:$0xf]
      %v974 = vmul.f32 %v755, %v755
      %v975 = vmul.f32 %v761, %v761
      %v976 = vmul.f32 %v767, %v767
      %v977 = vmul.f32 %v773, %v773
      %v978 = vmul.f32 %v779, %v779
      %v979 = vmul.f32 %v785, %v785
      %v980 = vmul.f32 %v791, %v791
      %v981 = vmul.f32 %v797, %v797
      %v982 = vmul.f32 %v803, %v803
      %v983 = vmul.f32 %v809, %v809
      %v984 = vmul.f32 %v815, %v815
      %v985 = vmul.f32 %v821, %v821
      %v986 = vmul.f32 %v827, %v827
      %v987 = vmul.f32 %v833, %v833
      %v988 = vmul.f32 %v839, %v839
      %v989 = vmul.f32 %v845, %v845
      %v990 = vmul.f32 %v851, %v851
      %v991 = vmul.f32 %v857, %v857
      %v992 = vmul.f32 %v863, %v863
      %v993 = vmul.f32 %v869, %v869
      %v994 = vmul.f32 %v875, %v875
      %v995 = vmul.f32 %v881, %v881
      %v996 = vmul.f32 %v887, %v887
      %v997 = vmul.f32 %v893, %v893
      %v998 = vmul.f32 %v899, %v899
      %v999 = vmul.f32 %v905, %v905
      %v1000 = vmul.f32 %v911, %v911
      %v1001 = vmul.f32 %v917, %v917
      %v1002 = vmul.f32 %v923, %v923
      %v1003 = vmul.f32 %v929, %v929
      %v1004 = vmul.f32 %v935, %v935
      %v1005 = vmul.f32 %v941, %v941
      %vm1038 = vcmask 1041409
      %v1039 = vsel %vm1038, %v975, %v974
      %vm1040 = vcmask 1042434
      %v1041 = vsel %vm1040, %v976, %v1039
      %vm1042 = vcmask 1043459
      %v1043 = vsel %vm1042, %v977, %v1041
      %vm1044 = vcmask 1044484
      %v1045 = vsel %vm1044, %v978, %v1043
      %vm1046 = vcmask 1045509
      %v1047 = vsel %vm1046, %v979, %v1045
      %vm1048 = vcmask 1046534
      %v1049 = vsel %vm1048, %v980, %v1047
      %vm1050 = vcmask 1047559
      %v1051 = vsel %vm1050, %v981, %v1049
      %v1052 = vsel %vm1038, %v983, %v982
      %v1053 = vsel %vm1040, %v984, %v1052
      %v1054 = vsel %vm1042, %v985, %v1053
      %v1055 = vsel %vm1044, %v986, %v1054
      %v1056 = vsel %vm1046, %v987, %v1055
      %v1057 = vsel %vm1048, %v988, %v1056
      %v1058 = vsel %vm1050, %v989, %v1057
      %v1059 = vsel %vm1038, %v991, %v990
      %v1060 = vsel %vm1040, %v992, %v1059
      %v1061 = vsel %vm1042, %v993, %v1060
      %v1062 = vsel %vm1044, %v994, %v1061
      %v1063 = vsel %vm1046, %v995, %v1062
      %v1064 = vsel %vm1048, %v996, %v1063
      %v1065 = vsel %vm1050, %v997, %v1064
      %v1066 = vsel %vm1038, %v999, %v998
      %v1067 = vsel %vm1040, %v1000, %v1066
      %v1068 = vsel %vm1042, %v1001, %v1067
      %v1069 = vsel %vm1044, %v1002, %v1068
      %v1070 = vsel %vm1046, %v1003, %v1069
      %v1071 = vsel %vm1048, %v1004, %v1070
      %v1072 = vsel %vm1050, %v1005, %v1071
      %1077 = vadd.xlane.f32.xlu0 %v1051
      %v1078 = vpop.xlane.xlu0 %1077
      %1079 = vadd.xlane.f32.xlu0 %v1058
      %v1080 = vpop.xlane.xlu0 %1079
      %1081 = vadd.xlane.f32.xlu0 %v1065
      %v1082 = vpop.xlane.xlu0 %1081
      %1083 = vadd.xlane.f32.xlu0 %v1072
      %v1084 = vpop.xlane.xlu0 %1083
      %v1085 = vmax.f32 %v1078, 1e-16
      %v1086 = vmax.f32 %v1080, 1e-16
      %v1087 = vmax.f32 %v1082, 1e-16
      %v1088 = vmax.f32 %v1084, 1e-16
      %v1089 = vrsqrt.pop %v1085
      %v1090 = vrsqrt.pop %v1086
      %v1091 = vrsqrt.pop %v1087
      %v1092 = vrsqrt.pop %v1088
      %v1093 = vmul.f32 %v942, %v942
      %v1094 = vmul.f32 %v943, %v943
      %v1095 = vmul.f32 %v944, %v944
      %v1096 = vmul.f32 %v945, %v945
      %v1097 = vmul.f32 %v946, %v946
      %v1098 = vmul.f32 %v947, %v947
      %v1099 = vmul.f32 %v948, %v948
      %v1100 = vmul.f32 %v949, %v949
      %v1101 = vmul.f32 %v950, %v950
      %v1102 = vmul.f32 %v951, %v951
      %v1103 = vmul.f32 %v952, %v952
      %v1104 = vmul.f32 %v953, %v953
      %v1105 = vmul.f32 %v954, %v954
      %v1106 = vmul.f32 %v955, %v955
      %v1107 = vmul.f32 %v956, %v956
      %v1108 = vmul.f32 %v957, %v957
      %v1109 = vmul.f32 %v958, %v958
      %v1110 = vmul.f32 %v959, %v959
      %v1111 = vmul.f32 %v960, %v960
      %v1112 = vmul.f32 %v961, %v961
      %v1113 = vmul.f32 %v962, %v962
      %v1114 = vmul.f32 %v963, %v963
      %v1115 = vmul.f32 %v964, %v964
      %v1116 = vmul.f32 %v965, %v965
      %v1117 = vmul.f32 %v966, %v966
      %v1118 = vmul.f32 %v967, %v967
      %v1119 = vmul.f32 %v968, %v968
      %v1120 = vmul.f32 %v969, %v969
      %v1121 = vmul.f32 %v970, %v970
      %v1122 = vmul.f32 %v971, %v971
      %v1123 = vmul.f32 %v972, %v972
      %v1124 = vmul.f32 %v973, %v973
      %vm1125 = vcmask 1043456
      %v1126 = vsel %vm1125, %v1093, 0.0
      %1127 = vadd.xlane.f32.xlu0 %v1126
      %v1128 = vpop.xlane.xlu0 %1127
      %v1129 = vsel %vm1125, %v1094, 0.0
      %1130 = vadd.xlane.f32.xlu0 %v1129
      %v1131 = vpop.xlane.xlu0 %1130
      %v1132 = vsel %vm1125, %v1095, 0.0
      %1133 = vadd.xlane.f32.xlu0 %v1132
      %v1134 = vpop.xlane.xlu0 %1133
      %v1135 = vsel %vm1125, %v1096, 0.0
      %1136 = vadd.xlane.f32.xlu0 %v1135
      %v1137 = vpop.xlane.xlu0 %1136
      %v1138 = vsel %vm1125, %v1097, 0.0
      %1139 = vadd.xlane.f32.xlu0 %v1138
      %v1140 = vpop.xlane.xlu0 %1139
      %v1141 = vsel %vm1125, %v1098, 0.0
      %1142 = vadd.xlane.f32.xlu0 %v1141
      %v1143 = vpop.xlane.xlu0 %1142
      %v1144 = vsel %vm1125, %v1099, 0.0
      %1145 = vadd.xlane.f32.xlu0 %v1144
      %v1146 = vpop.xlane.xlu0 %1145
      %v1147 = vsel %vm1125, %v1100, 0.0
      %1148 = vadd.xlane.f32.xlu0 %v1147
      %v1149 = vpop.xlane.xlu0 %1148
      %v1150 = vsel %vm1125, %v1101, 0.0
      %1151 = vadd.xlane.f32.xlu0 %v1150
      %v1152 = vpop.xlane.xlu0 %1151
      %v1153 = vsel %vm1125, %v1102, 0.0
      %1154 = vadd.xlane.f32.xlu0 %v1153
      %v1155 = vpop.xlane.xlu0 %1154
      %v1156 = vsel %vm1125, %v1103, 0.0
      %1157 = vadd.xlane.f32.xlu0 %v1156
      %v1158 = vpop.xlane.xlu0 %1157
      %v1159 = vsel %vm1125, %v1104, 0.0
      %1160 = vadd.xlane.f32.xlu0 %v1159
      %v1161 = vpop.xlane.xlu0 %1160
      %v1162 = vsel %vm1125, %v1105, 0.0
      %1163 = vadd.xlane.f32.xlu0 %v1162
      %v1164 = vpop.xlane.xlu0 %1163
      %v1165 = vsel %vm1125, %v1106, 0.0
      %1166 = vadd.xlane.f32.xlu0 %v1165
      %v1167 = vpop.xlane.xlu0 %1166
      %v1168 = vsel %vm1125, %v1107, 0.0
      %1169 = vadd.xlane.f32.xlu0 %v1168
      %v1170 = vpop.xlane.xlu0 %1169
      %v1171 = vsel %vm1125, %v1108, 0.0
      %1172 = vadd.xlane.f32.xlu0 %v1171
      %v1173 = vpop.xlane.xlu0 %1172
      %v1174 = vsel %vm1125, %v1109, 0.0
      %1175 = vadd.xlane.f32.xlu0 %v1174
      %v1176 = vpop.xlane.xlu0 %1175
      %v1177 = vsel %vm1125, %v1110, 0.0
      %1178 = vadd.xlane.f32.xlu0 %v1177
      %v1179 = vpop.xlane.xlu0 %1178
      %v1180 = vsel %vm1125, %v1111, 0.0
      %1181 = vadd.xlane.f32.xlu0 %v1180
      %v1182 = vpop.xlane.xlu0 %1181
      %v1183 = vsel %vm1125, %v1112, 0.0
      %1184 = vadd.xlane.f32.xlu0 %v1183
      %v1185 = vpop.xlane.xlu0 %1184
      %v1186 = vsel %vm1125, %v1113, 0.0
      %1187 = vadd.xlane.f32.xlu0 %v1186
      %v1188 = vpop.xlane.xlu0 %1187
      %v1189 = vsel %vm1125, %v1114, 0.0
      %1190 = vadd.xlane.f32.xlu0 %v1189
      %v1191 = vpop.xlane.xlu0 %1190
      %v1192 = vsel %vm1125, %v1115, 0.0
      %1193 = vadd.xlane.f32.xlu0 %v1192
      %v1194 = vpop.xlane.xlu0 %1193
      %v1195 = vsel %vm1125, %v1116, 0.0
      %1196 = vadd.xlane.f32.xlu0 %v1195
      %v1197 = vpop.xlane.xlu0 %1196
      %v1198 = vsel %vm1125, %v1117, 0.0
      %1199 = vadd.xlane.f32.xlu0 %v1198
      %v1200 = vpop.xlane.xlu0 %1199
      %v1201 = vsel %vm1125, %v1118, 0.0
      %1202 = vadd.xlane.f32.xlu0 %v1201
      %v1203 = vpop.xlane.xlu0 %1202
      %v1204 = vsel %vm1125, %v1119, 0.0
      %1205 = vadd.xlane.f32.xlu0 %v1204
      %v1206 = vpop.xlane.xlu0 %1205
      %v1207 = vsel %vm1125, %v1120, 0.0
      %1208 = vadd.xlane.f32.xlu0 %v1207
      %v1209 = vpop.xlane.xlu0 %1208
      %v1210 = vsel %vm1125, %v1121, 0.0
      %1211 = vadd.xlane.f32.xlu0 %v1210
      %v1212 = vpop.xlane.xlu0 %1211
      %v1213 = vsel %vm1125, %v1122, 0.0
      %1214 = vadd.xlane.f32.xlu0 %v1213
      %v1215 = vpop.xlane.xlu0 %1214
      %v1216 = vsel %vm1125, %v1123, 0.0
      %1217 = vadd.xlane.f32.xlu0 %v1216
      %v1218 = vpop.xlane.xlu0 %1217
      %v1219 = vsel %vm1125, %v1124, 0.0
      %1220 = vadd.xlane.f32.xlu0 %v1219
      %v1221 = vpop.xlane.xlu0 %1220
      %v1222 = vmax.f32 %v1128, 1e-16
      %v1223 = vmax.f32 %v1131, 1e-16
      %v1224 = vmax.f32 %v1134, 1e-16
      %v1225 = vmax.f32 %v1137, 1e-16
      %v1226 = vmax.f32 %v1140, 1e-16
      %v1227 = vmax.f32 %v1143, 1e-16
      %v1228 = vmax.f32 %v1146, 1e-16
      %v1229 = vmax.f32 %v1149, 1e-16
      %v1230 = vmax.f32 %v1152, 1e-16
      %v1231 = vmax.f32 %v1155, 1e-16
      %v1232 = vmax.f32 %v1158, 1e-16
      %v1233 = vmax.f32 %v1161, 1e-16
      %v1234 = vmax.f32 %v1164, 1e-16
      %v1235 = vmax.f32 %v1167, 1e-16
      %v1236 = vmax.f32 %v1170, 1e-16
      %v1237 = vmax.f32 %v1173, 1e-16
      %v1238 = vmax.f32 %v1176, 1e-16
      %v1239 = vmax.f32 %v1179, 1e-16
      %v1240 = vmax.f32 %v1182, 1e-16
      %v1241 = vmax.f32 %v1185, 1e-16
      %v1242 = vmax.f32 %v1188, 1e-16
      %v1243 = vmax.f32 %v1191, 1e-16
      %v1244 = vmax.f32 %v1194, 1e-16
      %v1245 = vmax.f32 %v1197, 1e-16
      %v1246 = vmax.f32 %v1200, 1e-16
      %v1247 = vmax.f32 %v1203, 1e-16
      %v1248 = vmax.f32 %v1206, 1e-16
      %v1249 = vmax.f32 %v1209, 1e-16
      %v1250 = vmax.f32 %v1212, 1e-16
      %v1251 = vmax.f32 %v1215, 1e-16
      %v1252 = vmax.f32 %v1218, 1e-16
      %v1253 = vmax.f32 %v1221, 1e-16
      %v1254 = vrsqrt.pop %v1222
      %v1255 = vrsqrt.pop %v1223
      %v1256 = vrsqrt.pop %v1224
      %v1257 = vrsqrt.pop %v1225
      %v1258 = vrsqrt.pop %v1226
      %v1259 = vrsqrt.pop %v1227
      %v1260 = vrsqrt.pop %v1228
      %v1261 = vrsqrt.pop %v1229
      %v1262 = vrsqrt.pop %v1230
      %v1263 = vrsqrt.pop %v1231
      %v1264 = vrsqrt.pop %v1232
      %v1265 = vrsqrt.pop %v1233
      %v1266 = vrsqrt.pop %v1234
      %v1267 = vrsqrt.pop %v1235
      %v1268 = vrsqrt.pop %v1236
      %v1269 = vrsqrt.pop %v1237
      %v1270 = vrsqrt.pop %v1238
      %v1271 = vrsqrt.pop %v1239
      %v1272 = vrsqrt.pop %v1240
      %v1273 = vrsqrt.pop %v1241
      %v1274 = vrsqrt.pop %v1242
      %v1275 = vrsqrt.pop %v1243
      %v1276 = vrsqrt.pop %v1244
      %v1277 = vrsqrt.pop %v1245
      %v1278 = vrsqrt.pop %v1246
      %v1279 = vrsqrt.pop %v1247
      %v1280 = vrsqrt.pop %v1248
      %v1281 = vrsqrt.pop %v1249
      %v1282 = vrsqrt.pop %v1250
      %v1283 = vrsqrt.pop %v1251
      %v1284 = vrsqrt.pop %v1252
      %v1285 = vrsqrt.pop %v1253
      %v1286 = vmul.f32 %v942, %v755
      %v1287 = vmul.f32 %v943, %v761
      %v1288 = vmul.f32 %v944, %v767
      %v1289 = vmul.f32 %v945, %v773
      %v1290 = vmul.f32 %v946, %v779
      %v1291 = vmul.f32 %v947, %v785
      %v1292 = vmul.f32 %v948, %v791
      %v1293 = vmul.f32 %v949, %v797
      %v1294 = vmul.f32 %v950, %v803
      %v1295 = vmul.f32 %v951, %v809
      %v1296 = vmul.f32 %v952, %v815
      %v1297 = vmul.f32 %v953, %v821
      %v1298 = vmul.f32 %v954, %v827
      %v1299 = vmul.f32 %v955, %v833
      %v1300 = vmul.f32 %v956, %v839
      %v1301 = vmul.f32 %v957, %v845
      %v1302 = vmul.f32 %v958, %v851
      %v1303 = vmul.f32 %v959, %v857
      %v1304 = vmul.f32 %v960, %v863
      %v1305 = vmul.f32 %v961, %v869
      %v1306 = vmul.f32 %v962, %v875
      %v1307 = vmul.f32 %v963, %v881
      %v1308 = vmul.f32 %v964, %v887
      %v1309 = vmul.f32 %v965, %v893
      %v1310 = vmul.f32 %v966, %v899
      %v1311 = vmul.f32 %v967, %v905
      %v1312 = vmul.f32 %v968, %v911
      %v1313 = vmul.f32 %v969, %v917
      %v1314 = vmul.f32 %v970, %v923
      %v1315 = vmul.f32 %v971, %v929
      %v1316 = vmul.f32 %v972, %v935
      %v1317 = vmul.f32 %v973, %v941
      %v1318 = vsel %vm1125, %v1286, 0.0
      %1319 = vadd.xlane.f32.xlu0 %v1318
      %v1320 = vpop.xlane.xlu0 %1319
      %v1321 = vsel %vm1125, %v1287, 0.0
      %1322 = vadd.xlane.f32.xlu0 %v1321
      %v1323 = vpop.xlane.xlu0 %1322
      %v1324 = vsel %vm1125, %v1288, 0.0
      %1325 = vadd.xlane.f32.xlu0 %v1324
      %v1326 = vpop.xlane.xlu0 %1325
      %v1327 = vsel %vm1125, %v1289, 0.0
      %1328 = vadd.xlane.f32.xlu0 %v1327
      %v1329 = vpop.xlane.xlu0 %1328
      %v1330 = vsel %vm1125, %v1290, 0.0
      %1331 = vadd.xlane.f32.xlu0 %v1330
      %v1332 = vpop.xlane.xlu0 %1331
      %v1333 = vsel %vm1125, %v1291, 0.0
      %1334 = vadd.xlane.f32.xlu0 %v1333
      %v1335 = vpop.xlane.xlu0 %1334
      %v1336 = vsel %vm1125, %v1292, 0.0
      %1337 = vadd.xlane.f32.xlu0 %v1336
      %v1338 = vpop.xlane.xlu0 %1337
      %v1339 = vsel %vm1125, %v1293, 0.0
      %1340 = vadd.xlane.f32.xlu0 %v1339
      %v1341 = vpop.xlane.xlu0 %1340
      %v1342 = vsel %vm1125, %v1294, 0.0
      %1343 = vadd.xlane.f32.xlu0 %v1342
      %v1344 = vpop.xlane.xlu0 %1343
      %v1345 = vsel %vm1125, %v1295, 0.0
      %1346 = vadd.xlane.f32.xlu0 %v1345
      %v1347 = vpop.xlane.xlu0 %1346
      %v1348 = vsel %vm1125, %v1296, 0.0
      %1349 = vadd.xlane.f32.xlu0 %v1348
      %v1350 = vpop.xlane.xlu0 %1349
      %v1351 = vsel %vm1125, %v1297, 0.0
      %1352 = vadd.xlane.f32.xlu0 %v1351
      %v1353 = vpop.xlane.xlu0 %1352
      %v1354 = vsel %vm1125, %v1298, 0.0
      %1355 = vadd.xlane.f32.xlu0 %v1354
      %v1356 = vpop.xlane.xlu0 %1355
      %v1357 = vsel %vm1125, %v1299, 0.0
      %1358 = vadd.xlane.f32.xlu0 %v1357
      %v1359 = vpop.xlane.xlu0 %1358
      %v1360 = vsel %vm1125, %v1300, 0.0
      %1361 = vadd.xlane.f32.xlu0 %v1360
      %v1362 = vpop.xlane.xlu0 %1361
      %v1363 = vsel %vm1125, %v1301, 0.0
      %1364 = vadd.xlane.f32.xlu0 %v1363
      %v1365 = vpop.xlane.xlu0 %1364
      %v1366 = vsel %vm1125, %v1302, 0.0
      %1367 = vadd.xlane.f32.xlu0 %v1366
      %v1368 = vpop.xlane.xlu0 %1367
      %v1369 = vsel %vm1125, %v1303, 0.0
      %1370 = vadd.xlane.f32.xlu0 %v1369
      %v1371 = vpop.xlane.xlu0 %1370
      %v1372 = vsel %vm1125, %v1304, 0.0
      %1373 = vadd.xlane.f32.xlu0 %v1372
      %v1374 = vpop.xlane.xlu0 %1373
      %v1375 = vsel %vm1125, %v1305, 0.0
      %1376 = vadd.xlane.f32.xlu0 %v1375
      %v1377 = vpop.xlane.xlu0 %1376
      %v1378 = vsel %vm1125, %v1306, 0.0
      %1379 = vadd.xlane.f32.xlu0 %v1378
      %v1380 = vpop.xlane.xlu0 %1379
      %v1381 = vsel %vm1125, %v1307, 0.0
      %1382 = vadd.xlane.f32.xlu0 %v1381
      %v1383 = vpop.xlane.xlu0 %1382
      %v1384 = vsel %vm1125, %v1308, 0.0
      %1385 = vadd.xlane.f32.xlu0 %v1384
      %v1386 = vpop.xlane.xlu0 %1385
      %v1387 = vsel %vm1125, %v1309, 0.0
      %1388 = vadd.xlane.f32.xlu0 %v1387
      %v1389 = vpop.xlane.xlu0 %1388
      %v1390 = vsel %vm1125, %v1310, 0.0
      %1391 = vadd.xlane.f32.xlu0 %v1390
      %v1392 = vpop.xlane.xlu0 %1391
      %v1393 = vsel %vm1125, %v1311, 0.0
      %1394 = vadd.xlane.f32.xlu0 %v1393
      %v1395 = vpop.xlane.xlu0 %1394
      %v1396 = vsel %vm1125, %v1312, 0.0
      %1397 = vadd.xlane.f32.xlu0 %v1396
      %v1398 = vpop.xlane.xlu0 %1397
      %v1399 = vsel %vm1125, %v1313, 0.0
      %1400 = vadd.xlane.f32.xlu0 %v1399
      %v1401 = vpop.xlane.xlu0 %1400
      %v1402 = vsel %vm1125, %v1314, 0.0
      %1403 = vadd.xlane.f32.xlu0 %v1402
      %v1404 = vpop.xlane.xlu0 %1403
      %v1405 = vsel %vm1125, %v1315, 0.0
      %1406 = vadd.xlane.f32.xlu0 %v1405
      %v1407 = vpop.xlane.xlu0 %1406
      %v1408 = vsel %vm1125, %v1316, 0.0
      %1409 = vadd.xlane.f32.xlu0 %v1408
      %v1410 = vpop.xlane.xlu0 %1409
      %v1411 = vsel %vm1125, %v1317, 0.0
      %1412 = vadd.xlane.f32.xlu0 %v1411
      %v1413 = vpop.xlane.xlu0 %1412
      %v1414 = vmul.f32 %v1320, %v1254
      %v1415 = vmul.f32 %v1323, %v1255
      %v1416 = vmul.f32 %v1326, %v1256
      %v1417 = vmul.f32 %v1329, %v1257
      %v1418 = vmul.f32 %v1332, %v1258
      %v1419 = vmul.f32 %v1335, %v1259
      %v1420 = vmul.f32 %v1338, %v1260
      %v1421 = vmul.f32 %v1341, %v1261
      %v1422 = vmul.f32 %v1344, %v1262
      %v1423 = vmul.f32 %v1347, %v1263
      %v1424 = vmul.f32 %v1350, %v1264
      %v1425 = vmul.f32 %v1353, %v1265
      %v1426 = vmul.f32 %v1356, %v1266
      %v1427 = vmul.f32 %v1359, %v1267
      %v1428 = vmul.f32 %v1362, %v1268
      %v1429 = vmul.f32 %v1365, %v1269
      %v1430 = vmul.f32 %v1368, %v1270
      %v1431 = vmul.f32 %v1371, %v1271
      %v1432 = vmul.f32 %v1374, %v1272
      %v1433 = vmul.f32 %v1377, %v1273
      %v1434 = vmul.f32 %v1380, %v1274
      %v1435 = vmul.f32 %v1383, %v1275
      %v1436 = vmul.f32 %v1386, %v1276
      %v1437 = vmul.f32 %v1389, %v1277
      %v1438 = vmul.f32 %v1392, %v1278
      %v1439 = vmul.f32 %v1395, %v1279
      %v1440 = vmul.f32 %v1398, %v1280
      %v1441 = vmul.f32 %v1401, %v1281
      %v1442 = vmul.f32 %v1404, %v1282
      %v1443 = vmul.f32 %v1407, %v1283
      %v1444 = vmul.f32 %v1410, %v1284
      %v1445 = vmul.f32 %v1413, %v1285
      %v1450 = vlaneseq
      %v1451 = vshrl.u32 %v1450, 7
      %v1452 = vsub.s32 0, %v1451
      %v1453 = vrot.slane %v1089, %v1452
      %v1454 = vlaneseq
      %v1455 = vshrl.u32 %v1454, 7
      %v1456 = vsub.s32 1, %v1455
      %v1457 = vrot.slane %v1089, %v1456
      %v1458 = vlaneseq
      %v1459 = vshrl.u32 %v1458, 7
      %v1460 = vsub.s32 2, %v1459
      %v1461 = vrot.slane %v1089, %v1460
      %v1462 = vlaneseq
      %v1463 = vshrl.u32 %v1462, 7
      %v1464 = vsub.s32 3, %v1463
      %v1465 = vrot.slane %v1089, %v1464
      %v1466 = vlaneseq
      %v1467 = vshrl.u32 %v1466, 7
      %v1468 = vsub.s32 4, %v1467
      %v1469 = vrot.slane %v1089, %v1468
      %v1470 = vlaneseq
      %v1471 = vshrl.u32 %v1470, 7
      %v1472 = vsub.s32 5, %v1471
      %v1473 = vrot.slane %v1089, %v1472
      %v1474 = vlaneseq
      %v1475 = vshrl.u32 %v1474, 7
      %v1476 = vsub.s32 6, %v1475
      %v1477 = vrot.slane %v1089, %v1476
      %v1478 = vlaneseq
      %v1479 = vshrl.u32 %v1478, 7
      %v1480 = vsub.s32 7, %v1479
      %v1481 = vrot.slane %v1089, %v1480
      %v1482 = vlaneseq
      %v1483 = vshrl.u32 %v1482, 7
      %v1484 = vsub.s32 0, %v1483
      %v1485 = vrot.slane %v1090, %v1484
      %v1486 = vlaneseq
      %v1487 = vshrl.u32 %v1486, 7
      %v1488 = vsub.s32 1, %v1487
      %v1489 = vrot.slane %v1090, %v1488
      %v1490 = vlaneseq
      %v1491 = vshrl.u32 %v1490, 7
      %v1492 = vsub.s32 2, %v1491
      %v1493 = vrot.slane %v1090, %v1492
      %v1494 = vlaneseq
      %v1495 = vshrl.u32 %v1494, 7
      %v1496 = vsub.s32 3, %v1495
      %v1497 = vrot.slane %v1090, %v1496
      %v1498 = vlaneseq
      %v1499 = vshrl.u32 %v1498, 7
      %v1500 = vsub.s32 4, %v1499
      %v1501 = vrot.slane %v1090, %v1500
      %v1502 = vlaneseq
      %v1503 = vshrl.u32 %v1502, 7
      %v1504 = vsub.s32 5, %v1503
      %v1505 = vrot.slane %v1090, %v1504
      %v1506 = vlaneseq
      %v1507 = vshrl.u32 %v1506, 7
      %v1508 = vsub.s32 6, %v1507
      %v1509 = vrot.slane %v1090, %v1508
      %v1510 = vlaneseq
      %v1511 = vshrl.u32 %v1510, 7
      %v1512 = vsub.s32 7, %v1511
      %v1513 = vrot.slane %v1090, %v1512
      %v1514 = vlaneseq
      %v1515 = vshrl.u32 %v1514, 7
      %v1516 = vsub.s32 0, %v1515
      %v1517 = vrot.slane %v1091, %v1516
      %v1518 = vlaneseq
      %v1519 = vshrl.u32 %v1518, 7
      %v1520 = vsub.s32 1, %v1519
      %v1521 = vrot.slane %v1091, %v1520
      %v1522 = vlaneseq
      %v1523 = vshrl.u32 %v1522, 7
      %v1524 = vsub.s32 2, %v1523
      %v1525 = vrot.slane %v1091, %v1524
      %v1526 = vlaneseq
      %v1527 = vshrl.u32 %v1526, 7
      %v1528 = vsub.s32 3, %v1527
      %v1529 = vrot.slane %v1091, %v1528
      %v1530 = vlaneseq
      %v1531 = vshrl.u32 %v1530, 7
      %v1532 = vsub.s32 4, %v1531
      %v1533 = vrot.slane %v1091, %v1532
      %v1534 = vlaneseq
      %v1535 = vshrl.u32 %v1534, 7
      %v1536 = vsub.s32 5, %v1535
      %v1537 = vrot.slane %v1091, %v1536
      %v1538 = vlaneseq
      %v1539 = vshrl.u32 %v1538, 7
      %v1540 = vsub.s32 6, %v1539
      %v1541 = vrot.slane %v1091, %v1540
      %v1542 = vlaneseq
      %v1543 = vshrl.u32 %v1542, 7
      %v1544 = vsub.s32 7, %v1543
      %v1545 = vrot.slane %v1091, %v1544
      %v1546 = vlaneseq
      %v1547 = vshrl.u32 %v1546, 7
      %v1548 = vsub.s32 0, %v1547
      %v1549 = vrot.slane %v1092, %v1548
      %v1550 = vlaneseq
      %v1551 = vshrl.u32 %v1550, 7
      %v1552 = vsub.s32 1, %v1551
      %v1553 = vrot.slane %v1092, %v1552
      %v1554 = vlaneseq
      %v1555 = vshrl.u32 %v1554, 7
      %v1556 = vsub.s32 2, %v1555
      %v1557 = vrot.slane %v1092, %v1556
      %v1558 = vlaneseq
      %v1559 = vshrl.u32 %v1558, 7
      %v1560 = vsub.s32 3, %v1559
      %v1561 = vrot.slane %v1092, %v1560
      %v1562 = vlaneseq
      %v1563 = vshrl.u32 %v1562, 7
      %v1564 = vsub.s32 4, %v1563
      %v1565 = vrot.slane %v1092, %v1564
      %v1566 = vlaneseq
      %v1567 = vshrl.u32 %v1566, 7
      %v1568 = vsub.s32 5, %v1567
      %v1569 = vrot.slane %v1092, %v1568
      %v1570 = vlaneseq
      %v1571 = vshrl.u32 %v1570, 7
      %v1572 = vsub.s32 6, %v1571
      %v1573 = vrot.slane %v1092, %v1572
      %v1574 = vlaneseq
      %v1575 = vshrl.u32 %v1574, 7
      %v1576 = vsub.s32 7, %v1575
      %v1577 = vrot.slane %v1092, %v1576
      %v1610 = vmul.f32 %v1414, %v1453
      %v1611 = vmul.f32 %v1415, %v1457
      %v1612 = vmul.f32 %v1416, %v1461
      %v1613 = vmul.f32 %v1417, %v1465
      %v1614 = vmul.f32 %v1418, %v1469
      %v1615 = vmul.f32 %v1419, %v1473
      %v1616 = vmul.f32 %v1420, %v1477
      %v1617 = vmul.f32 %v1421, %v1481
      %v1618 = vmul.f32 %v1422, %v1485
      %v1619 = vmul.f32 %v1423, %v1489
      %v1620 = vmul.f32 %v1424, %v1493
      %v1621 = vmul.f32 %v1425, %v1497
      %v1622 = vmul.f32 %v1426, %v1501
      %v1623 = vmul.f32 %v1427, %v1505
      %v1624 = vmul.f32 %v1428, %v1509
      %v1625 = vmul.f32 %v1429, %v1513
      %v1626 = vmul.f32 %v1430, %v1517
      %v1627 = vmul.f32 %v1431, %v1521
      %v1628 = vmul.f32 %v1432, %v1525
      %v1629 = vmul.f32 %v1433, %v1529
      %v1630 = vmul.f32 %v1434, %v1533
      %v1631 = vmul.f32 %v1435, %v1537
      %v1632 = vmul.f32 %v1436, %v1541
      %v1633 = vmul.f32 %v1437, %v1545
      %v1634 = vmul.f32 %v1438, %v1549
      %v1635 = vmul.f32 %v1439, %v1553
      %v1636 = vmul.f32 %v1440, %v1557
      %v1637 = vmul.f32 %v1441, %v1561
      %v1638 = vmul.f32 %v1442, %v1565
      %v1639 = vmul.f32 %v1443, %v1569
      %v1640 = vmul.f32 %v1444, %v1573
      %v1641 = vmul.f32 %v1445, %v1577
      %1674 = vset.pattern.permute.xlu0 0
      %1675 = vperm.xlu0 %1674, %v1610
      %v1676 = vpop.permute.xlu0 %1675
      %1677 = vset.pattern.permute.xlu0 0
      %1678 = vperm.xlu0 %1677, %v1611
      %v1679 = vpop.permute.xlu0 %1678
      %1680 = vset.pattern.permute.xlu0 0
      %1681 = vperm.xlu0 %1680, %v1612
      %v1682 = vpop.permute.xlu0 %1681
      %1683 = vset.pattern.permute.xlu0 0
      %1684 = vperm.xlu0 %1683, %v1613
      %v1685 = vpop.permute.xlu0 %1684
      %1686 = vset.pattern.permute.xlu0 0
      %1687 = vperm.xlu0 %1686, %v1614
      %v1688 = vpop.permute.xlu0 %1687
      %1689 = vset.pattern.permute.xlu0 0
      %1690 = vperm.xlu0 %1689, %v1615
      %v1691 = vpop.permute.xlu0 %1690
      %1692 = vset.pattern.permute.xlu0 0
      %1693 = vperm.xlu0 %1692, %v1616
      %v1694 = vpop.permute.xlu0 %1693
      %1695 = vset.pattern.permute.xlu0 0
      %1696 = vperm.xlu0 %1695, %v1617
      %v1697 = vpop.permute.xlu0 %1696
      %1698 = vset.pattern.permute.xlu0 0
      %1699 = vperm.xlu0 %1698, %v1618
      %v1700 = vpop.permute.xlu0 %1699
      %1701 = vset.pattern.permute.xlu0 0
      %1702 = vperm.xlu0 %1701, %v1619
      %v1703 = vpop.permute.xlu0 %1702
      %1704 = vset.pattern.permute.xlu0 0
      %1705 = vperm.xlu0 %1704, %v1620
      %v1706 = vpop.permute.xlu0 %1705
      %1707 = vset.pattern.permute.xlu0 0
      %1708 = vperm.xlu0 %1707, %v1621
      %v1709 = vpop.permute.xlu0 %1708
      %1710 = vset.pattern.permute.xlu0 0
      %1711 = vperm.xlu0 %1710, %v1622
      %v1712 = vpop.permute.xlu0 %1711
      %1713 = vset.pattern.permute.xlu0 0
      %1714 = vperm.xlu0 %1713, %v1623
      %v1715 = vpop.permute.xlu0 %1714
      %1716 = vset.pattern.permute.xlu0 0
      %1717 = vperm.xlu0 %1716, %v1624
      %v1718 = vpop.permute.xlu0 %1717
      %1719 = vset.pattern.permute.xlu0 0
      %1720 = vperm.xlu0 %1719, %v1625
      %v1721 = vpop.permute.xlu0 %1720
      %1722 = vset.pattern.permute.xlu0 0
      %1723 = vperm.xlu0 %1722, %v1626
      %v1724 = vpop.permute.xlu0 %1723
      %1725 = vset.pattern.permute.xlu0 0
      %1726 = vperm.xlu0 %1725, %v1627
      %v1727 = vpop.permute.xlu0 %1726
      %1728 = vset.pattern.permute.xlu0 0
      %1729 = vperm.xlu0 %1728, %v1628
      %v1730 = vpop.permute.xlu0 %1729
      %1731 = vset.pattern.permute.xlu0 0
      %1732 = vperm.xlu0 %1731, %v1629
      %v1733 = vpop.permute.xlu0 %1732
      %1734 = vset.pattern.permute.xlu0 0
      %1735 = vperm.xlu0 %1734, %v1630
      %v1736 = vpop.permute.xlu0 %1735
      %1737 = vset.pattern.permute.xlu0 0
      %1738 = vperm.xlu0 %1737, %v1631
      %v1739 = vpop.permute.xlu0 %1738
      %1740 = vset.pattern.permute.xlu0 0
      %1741 = vperm.xlu0 %1740, %v1632
      %v1742 = vpop.permute.xlu0 %1741
      %1743 = vset.pattern.permute.xlu0 0
      %1744 = vperm.xlu0 %1743, %v1633
      %v1745 = vpop.permute.xlu0 %1744
      %1746 = vset.pattern.permute.xlu0 0
      %1747 = vperm.xlu0 %1746, %v1634
      %v1748 = vpop.permute.xlu0 %1747
      %1749 = vset.pattern.permute.xlu0 0
      %1750 = vperm.xlu0 %1749, %v1635
      %v1751 = vpop.permute.xlu0 %1750
      %1752 = vset.pattern.permute.xlu0 0
      %1753 = vperm.xlu0 %1752, %v1636
      %v1754 = vpop.permute.xlu0 %1753
      %1755 = vset.pattern.permute.xlu0 0
      %1756 = vperm.xlu0 %1755, %v1637
      %v1757 = vpop.permute.xlu0 %1756
      %1758 = vset.pattern.permute.xlu0 0
      %1759 = vperm.xlu0 %1758, %v1638
      %v1760 = vpop.permute.xlu0 %1759
      %1761 = vset.pattern.permute.xlu0 0
      %1762 = vperm.xlu0 %1761, %v1639
      %v1763 = vpop.permute.xlu0 %1762
      %1764 = vset.pattern.permute.xlu0 0
      %1765 = vperm.xlu0 %1764, %v1640
      %v1766 = vpop.permute.xlu0 %1765
      %1767 = vset.pattern.permute.xlu0 0
      %1768 = vperm.xlu0 %1767, %v1641
      %v1769 = vpop.permute.xlu0 %1768
      %v1770 = vlaneseq
      %v1771 = vand.u32 %v1770, 127
      %v1772 = vlaneseq
      %v1773 = vshrl.u32 %v1772, 7
      %v1774 = vsub.s32 %v1771, %v1773
      %v1775 = vrot.slane %v1676, %v1774
      %v1776 = vlaneseq
      %v1777 = vshrl.u32 %v1776, 7
      %v1778 = vsub.s32 %v1771, %v1777
      %v1779 = vrot.slane %v1679, %v1778
      %v1780 = vlaneseq
      %v1781 = vshrl.u32 %v1780, 7
      %v1782 = vsub.s32 %v1771, %v1781
      %v1783 = vrot.slane %v1682, %v1782
      %v1784 = vlaneseq
      %v1785 = vshrl.u32 %v1784, 7
      %v1786 = vsub.s32 %v1771, %v1785
      %v1787 = vrot.slane %v1685, %v1786
      %v1788 = vlaneseq
      %v1789 = vshrl.u32 %v1788, 7
      %v1790 = vsub.s32 %v1771, %v1789
      %v1791 = vrot.slane %v1688, %v1790
      %v1792 = vlaneseq
      %v1793 = vshrl.u32 %v1792, 7
      %v1794 = vsub.s32 %v1771, %v1793
      %v1795 = vrot.slane %v1691, %v1794
      %v1796 = vlaneseq
      %v1797 = vshrl.u32 %v1796, 7
      %v1798 = vsub.s32 %v1771, %v1797
      %v1799 = vrot.slane %v1694, %v1798
      %v1800 = vlaneseq
      %v1801 = vshrl.u32 %v1800, 7
      %v1802 = vsub.s32 %v1771, %v1801
      %v1803 = vrot.slane %v1697, %v1802
      %v1804 = vlaneseq
      %v1805 = vshrl.u32 %v1804, 7
      %v1806 = vsub.s32 %v1771, %v1805
      %v1807 = vrot.slane %v1700, %v1806
      %v1808 = vlaneseq
      %v1809 = vshrl.u32 %v1808, 7
      %v1810 = vsub.s32 %v1771, %v1809
      %v1811 = vrot.slane %v1703, %v1810
      %v1812 = vlaneseq
      %v1813 = vshrl.u32 %v1812, 7
      %v1814 = vsub.s32 %v1771, %v1813
      %v1815 = vrot.slane %v1706, %v1814
      %v1816 = vlaneseq
      %v1817 = vshrl.u32 %v1816, 7
      %v1818 = vsub.s32 %v1771, %v1817
      %v1819 = vrot.slane %v1709, %v1818
      %v1820 = vlaneseq
      %v1821 = vshrl.u32 %v1820, 7
      %v1822 = vsub.s32 %v1771, %v1821
      %v1823 = vrot.slane %v1712, %v1822
      %v1824 = vlaneseq
      %v1825 = vshrl.u32 %v1824, 7
      %v1826 = vsub.s32 %v1771, %v1825
      %v1827 = vrot.slane %v1715, %v1826
      %v1828 = vlaneseq
      %v1829 = vshrl.u32 %v1828, 7
      %v1830 = vsub.s32 %v1771, %v1829
      %v1831 = vrot.slane %v1718, %v1830
      %v1832 = vlaneseq
      %v1833 = vshrl.u32 %v1832, 7
      %v1834 = vsub.s32 %v1771, %v1833
      %v1835 = vrot.slane %v1721, %v1834
      %v1836 = vlaneseq
      %v1837 = vshrl.u32 %v1836, 7
      %v1838 = vsub.s32 %v1771, %v1837
      %v1839 = vrot.slane %v1724, %v1838
      %v1840 = vlaneseq
      %v1841 = vshrl.u32 %v1840, 7
      %v1842 = vsub.s32 %v1771, %v1841
      %v1843 = vrot.slane %v1727, %v1842
      %v1844 = vlaneseq
      %v1845 = vshrl.u32 %v1844, 7
      %v1846 = vsub.s32 %v1771, %v1845
      %v1847 = vrot.slane %v1730, %v1846
      %v1848 = vlaneseq
      %v1849 = vshrl.u32 %v1848, 7
      %v1850 = vsub.s32 %v1771, %v1849
      %v1851 = vrot.slane %v1733, %v1850
      %v1852 = vlaneseq
      %v1853 = vshrl.u32 %v1852, 7
      %v1854 = vsub.s32 %v1771, %v1853
      %v1855 = vrot.slane %v1736, %v1854
      %v1856 = vlaneseq
      %v1857 = vshrl.u32 %v1856, 7
      %v1858 = vsub.s32 %v1771, %v1857
      %v1859 = vrot.slane %v1739, %v1858
      %v1860 = vlaneseq
      %v1861 = vshrl.u32 %v1860, 7
      %v1862 = vsub.s32 %v1771, %v1861
      %v1863 = vrot.slane %v1742, %v1862
      %v1864 = vlaneseq
      %v1865 = vshrl.u32 %v1864, 7
      %v1866 = vsub.s32 %v1771, %v1865
      %v1867 = vrot.slane %v1745, %v1866
      %v1868 = vlaneseq
      %v1869 = vshrl.u32 %v1868, 7
      %v1870 = vsub.s32 %v1771, %v1869
      %v1871 = vrot.slane %v1748, %v1870
      %v1872 = vlaneseq
      %v1873 = vshrl.u32 %v1872, 7
      %v1874 = vsub.s32 %v1771, %v1873
      %v1875 = vrot.slane %v1751, %v1874
      %v1876 = vlaneseq
      %v1877 = vshrl.u32 %v1876, 7
      %v1878 = vsub.s32 %v1771, %v1877
      %v1879 = vrot.slane %v1754, %v1878
      %v1880 = vlaneseq
      %v1881 = vshrl.u32 %v1880, 7
      %v1882 = vsub.s32 %v1771, %v1881
      %v1883 = vrot.slane %v1757, %v1882
      %v1884 = vlaneseq
      %v1885 = vshrl.u32 %v1884, 7
      %v1886 = vsub.s32 %v1771, %v1885
      %v1887 = vrot.slane %v1760, %v1886
      %v1888 = vlaneseq
      %v1889 = vshrl.u32 %v1888, 7
      %v1890 = vsub.s32 %v1771, %v1889
      %v1891 = vrot.slane %v1763, %v1890
      %v1892 = vlaneseq
      %v1893 = vshrl.u32 %v1892, 7
      %v1894 = vsub.s32 %v1771, %v1893
      %v1895 = vrot.slane %v1766, %v1894
      %v1896 = vlaneseq
      %v1897 = vshrl.u32 %v1896, 7
      %v1898 = vsub.s32 %v1771, %v1897
      %v1899 = vrot.slane %v1769, %v1898
      %v1900 = vsel %vm1038, %v1779, %v1775
      %v1901 = vsel %vm1040, %v1783, %v1900
      %v1902 = vsel %vm1042, %v1787, %v1901
      %v1903 = vsel %vm1044, %v1791, %v1902
      %v1904 = vsel %vm1046, %v1795, %v1903
      %v1905 = vsel %vm1048, %v1799, %v1904
      %v1906 = vsel %vm1050, %v1803, %v1905
      %v1907 = vsel %vm1038, %v1811, %v1807
      %v1908 = vsel %vm1040, %v1815, %v1907
      %v1909 = vsel %vm1042, %v1819, %v1908
      %v1910 = vsel %vm1044, %v1823, %v1909
      %v1911 = vsel %vm1046, %v1827, %v1910
      %v1912 = vsel %vm1048, %v1831, %v1911
      %v1913 = vsel %vm1050, %v1835, %v1912
      %v1914 = vsel %vm1038, %v1843, %v1839
      %v1915 = vsel %vm1040, %v1847, %v1914
      %v1916 = vsel %vm1042, %v1851, %v1915
      %v1917 = vsel %vm1044, %v1855, %v1916
      %v1918 = vsel %vm1046, %v1859, %v1917
      %v1919 = vsel %vm1048, %v1863, %v1918
      %v1920 = vsel %vm1050, %v1867, %v1919
      %v1921 = vsel %vm1038, %v1875, %v1871
      %v1922 = vsel %vm1040, %v1879, %v1921
      %v1923 = vsel %vm1042, %v1883, %v1922
      %v1924 = vsel %vm1044, %v1887, %v1923
      %v1925 = vsel %vm1046, %v1891, %v1924
      %v1926 = vsel %vm1048, %v1895, %v1925
      %v1927 = vsel %vm1050, %v1899, %v1926
      %vm1932 = vcmask 31744
      %1933 = vst.msk [vmem:[%s450] sm:$0xff] %vm1932, %v1906
      %1934 = vst.msk [vmem:[%s450 + $0x8] sm:$0xff] %vm1932, %v1913
      %1935 = vst.msk [vmem:[%s450 + $0x10] sm:$0xff] %vm1932, %v1920
      %1936 = vst.msk [vmem:[%s450 + $0x18] sm:$0xff] %vm1932, %v1927
      %v1937 = vld [vmem:[%s425] sm:$0x7]
      %v1938 = vld [vmem:[%s425 + $0x4] sm:$0x7]
      %v1939 = vld [vmem:[%s425 + $0x8] sm:$0x7]
      %v1940 = vld [vmem:[%s425 + $0xc] sm:$0x7]
      %v1941 = vld [vmem:[%s425 + $0x10] sm:$0x7]
      %v1942 = vld [vmem:[%s425 + $0x14] sm:$0x7]
      %v1943 = vld [vmem:[%s425 + $0x18] sm:$0x7]
      %v1944 = vld [vmem:[%s425 + $0x1c] sm:$0x7]
      %v1945 = vld [vmem:[%s425 + $0x20] sm:$0x7]
      %v1946 = vld [vmem:[%s425 + $0x24] sm:$0x7]
      %v1947 = vld [vmem:[%s425 + $0x28] sm:$0x7]
      %v1948 = vld [vmem:[%s425 + $0x2c] sm:$0x7]
      %v1949 = vld [vmem:[%s425 + $0x30] sm:$0x7]
      %v1950 = vld [vmem:[%s425 + $0x34] sm:$0x7]
      %v1951 = vld [vmem:[%s425 + $0x38] sm:$0x7]
      %v1952 = vld [vmem:[%s425 + $0x3c] sm:$0x7]
      %v1953 = vld [vmem:[%s425 + $0x40] sm:$0x7]
      %v1954 = vld [vmem:[%s425 + $0x44] sm:$0x7]
      %v1955 = vld [vmem:[%s425 + $0x48] sm:$0x7]
      %v1956 = vld [vmem:[%s425 + $0x4c] sm:$0x7]
      %v1957 = vld [vmem:[%s425 + $0x50] sm:$0x7]
      %v1958 = vld [vmem:[%s425 + $0x54] sm:$0x7]
      %v1959 = vld [vmem:[%s425 + $0x58] sm:$0x7]
      %v1960 = vld [vmem:[%s425 + $0x5c] sm:$0x7]
      %v1961 = vld [vmem:[%s425 + $0x60] sm:$0x7]
      %v1962 = vld [vmem:[%s425 + $0x64] sm:$0x7]
      %v1963 = vld [vmem:[%s425 + $0x68] sm:$0x7]
      %v1964 = vld [vmem:[%s425 + $0x6c] sm:$0x7]
      %v1965 = vld [vmem:[%s425 + $0x70] sm:$0x7]
      %v1966 = vld [vmem:[%s425 + $0x74] sm:$0x7]
      %v1967 = vld [vmem:[%s425 + $0x78] sm:$0x7]
      %v1968 = vld [vmem:[%s425 + $0x7c] sm:$0x7]
      %v1969 = vld [vmem:[%s431] sm:$0xff]
      %v1970 = vld [vmem:[%s431 + $0x8] sm:$0xff]
      %v1971 = vld [vmem:[%s431 + $0x10] sm:$0xff]
      %v1972 = vld [vmem:[%s431 + $0x18] sm:$0xff]
      %v1973 = vld [vmem:[%s438] sm:$0xff]
      %v1974 = vld [vmem:[%s438 + $0x8] sm:$0xff]
      %v1975 = vld [vmem:[%s438 + $0x10] sm:$0xf]
      %v1976 = vld [vmem:[%s438 + $0x18] sm:$0xff]
      %v1977 = vld [vmem:[%s438 + $0x20] sm:$0xff]
      %v1978 = vld [vmem:[%s438 + $0x28] sm:$0xf]
      %v1979 = vld [vmem:[%s438 + $0x30] sm:$0xff]
      %v1980 = vld [vmem:[%s438 + $0x38] sm:$0xff]
      %v1981 = vld [vmem:[%s438 + $0x40] sm:$0xf]
      %v1982 = vld [vmem:[%s438 + $0x48] sm:$0xff]
      %v1983 = vld [vmem:[%s438 + $0x50] sm:$0xff]
      %v1984 = vld [vmem:[%s438 + $0x58] sm:$0xf]
      %v1985 = vld [vmem:[%s438 + $0x60] sm:$0xff]
      %v1986 = vld [vmem:[%s438 + $0x68] sm:$0xff]
      %v1987 = vld [vmem:[%s438 + $0x70] sm:$0xf]
      %v1988 = vld [vmem:[%s438 + $0x78] sm:$0xff]
      %v1989 = vld [vmem:[%s438 + $0x80] sm:$0xff]
      %v1990 = vld [vmem:[%s438 + $0x88] sm:$0xf]
      %v1991 = vld [vmem:[%s438 + $0x90] sm:$0xff]
      %v1992 = vld [vmem:[%s438 + $0x98] sm:$0xff]
      %v1993 = vld [vmem:[%s438 + $0xa0] sm:$0xf]
      %v1994 = vld [vmem:[%s438 + $0xa8] sm:$0xff]
      %v1995 = vld [vmem:[%s438 + $0xb0] sm:$0xff]
      %v1996 = vld [vmem:[%s438 + $0xb8] sm:$0xf]
      %v1997 = vld [vmem:[%s438 + $0xc0] sm:$0xff]
      %v1998 = vld [vmem:[%s438 + $0xc8] sm:$0xff]
      %v1999 = vld [vmem:[%s438 + $0xd0] sm:$0xf]
      %v2000 = vld [vmem:[%s438 + $0xd8] sm:$0xff]
      %v2001 = vld [vmem:[%s438 + $0xe0] sm:$0xff]
      %v2002 = vld [vmem:[%s438 + $0xe8] sm:$0xf]
      %v2003 = vld [vmem:[%s438 + $0xf0] sm:$0xff]
      %v2004 = vld [vmem:[%s438 + $0xf8] sm:$0xff]
      %v2005 = vld [vmem:[%s438 + $0x100] sm:$0xf]
      %v2006 = vld [vmem:[%s438 + $0x108] sm:$0xff]
      %v2007 = vld [vmem:[%s438 + $0x110] sm:$0xff]
      %v2008 = vld [vmem:[%s438 + $0x118] sm:$0xf]
      %v2009 = vld [vmem:[%s438 + $0x120] sm:$0xff]
      %v2010 = vld [vmem:[%s438 + $0x128] sm:$0xff]
      %v2011 = vld [vmem:[%s438 + $0x130] sm:$0xf]
      %v2012 = vld [vmem:[%s438 + $0x138] sm:$0xff]
      %v2013 = vld [vmem:[%s438 + $0x140] sm:$0xff]
      %v2014 = vld [vmem:[%s438 + $0x148] sm:$0xf]
      %v2015 = vld [vmem:[%s438 + $0x150] sm:$0xff]
      %v2016 = vld [vmem:[%s438 + $0x158] sm:$0xff]
      %v2017 = vld [vmem:[%s438 + $0x160] sm:$0xf]
      %v2018 = vld [vmem:[%s438 + $0x168] sm:$0xff]
      %v2019 = vld [vmem:[%s438 + $0x170] sm:$0xff]
      %v2020 = vld [vmem:[%s438 + $0x178] sm:$0xf]
      %v2021 = vld [vmem:[%s438 + $0x180] sm:$0xff]
      %v2022 = vld [vmem:[%s438 + $0x188] sm:$0xff]
      %v2023 = vld [vmem:[%s438 + $0x190] sm:$0xf]
      %v2024 = vld [vmem:[%s438 + $0x198] sm:$0xff]
      %v2025 = vld [vmem:[%s438 + $0x1a0] sm:$0xff]
      %v2026 = vld [vmem:[%s438 + $0x1a8] sm:$0xf]
      %v2027 = vld [vmem:[%s438 + $0x1b0] sm:$0xff]
      %v2028 = vld [vmem:[%s438 + $0x1b8] sm:$0xff]
      %v2029 = vld [vmem:[%s438 + $0x1c0] sm:$0xf]
      %v2030 = vld [vmem:[%s438 + $0x1c8] sm:$0xff]
      %v2031 = vld [vmem:[%s438 + $0x1d0] sm:$0xff]
      %v2032 = vld [vmem:[%s438 + $0x1d8] sm:$0xf]
      %v2033 = vld [vmem:[%s438 + $0x1e0] sm:$0xff]
      %v2034 = vld [vmem:[%s438 + $0x1e8] sm:$0xff]
      %v2035 = vld [vmem:[%s438 + $0x1f0] sm:$0xf]
      %v2036 = vld [vmem:[%s438 + $0x1f8] sm:$0xff]
      %v2037 = vld [vmem:[%s438 + $0x200] sm:$0xff]
      %v2038 = vld [vmem:[%s438 + $0x208] sm:$0xf]
      %v2039 = vld [vmem:[%s438 + $0x210] sm:$0xff]
      %v2040 = vld [vmem:[%s438 + $0x218] sm:$0xff]
      %v2041 = vld [vmem:[%s438 + $0x220] sm:$0xf]
      %v2042 = vld [vmem:[%s438 + $0x228] sm:$0xff]
      %v2043 = vld [vmem:[%s438 + $0x230] sm:$0xff]
      %v2044 = vld [vmem:[%s438 + $0x238] sm:$0xf]
      %v2045 = vld [vmem:[%s438 + $0x240] sm:$0xff]
      %v2046 = vld [vmem:[%s438 + $0x248] sm:$0xff]
      %v2047 = vld [vmem:[%s438 + $0x250] sm:$0xf]
      %v2048 = vld [vmem:[%s438 + $0x258] sm:$0xff]
      %v2049 = vld [vmem:[%s438 + $0x260] sm:$0xff]
      %v2050 = vld [vmem:[%s438 + $0x268] sm:$0xf]
      %v2051 = vld [vmem:[%s438 + $0x270] sm:$0xff]
      %v2052 = vld [vmem:[%s438 + $0x278] sm:$0xff]
      %v2053 = vld [vmem:[%s438 + $0x280] sm:$0xf]
      %v2054 = vld [vmem:[%s438 + $0x288] sm:$0xff]
      %v2055 = vld [vmem:[%s438 + $0x290] sm:$0xff]
      %v2056 = vld [vmem:[%s438 + $0x298] sm:$0xf]
      %v2057 = vld [vmem:[%s438 + $0x2a0] sm:$0xff]
      %v2058 = vld [vmem:[%s438 + $0x2a8] sm:$0xff]
      %v2059 = vld [vmem:[%s438 + $0x2b0] sm:$0xf]
      %v2060 = vld [vmem:[%s438 + $0x2b8] sm:$0xff]
      %v2061 = vld [vmem:[%s438 + $0x2c0] sm:$0xff]
      %v2062 = vld [vmem:[%s438 + $0x2c8] sm:$0xf]
      %v2063 = vld [vmem:[%s438 + $0x2d0] sm:$0xff]
      %v2064 = vld [vmem:[%s438 + $0x2d8] sm:$0xff]
      %v2065 = vld [vmem:[%s438 + $0x2e0] sm:$0xf]
      %v2066 = vld [vmem:[%s438 + $0x2e8] sm:$0xff]
      %v2067 = vld [vmem:[%s438 + $0x2f0] sm:$0xff]
      %v2068 = vld [vmem:[%s438 + $0x2f8] sm:$0xf]
      %v2069 = vld [vmem:[%s444] sm:$0xff]
      %v2070 = vld [vmem:[%s444 + $0x8] sm:$0xff]
      %v2071 = vld [vmem:[%s444 + $0x10] sm:$0xff]
      %v2072 = vld [vmem:[%s444 + $0x18] sm:$0xff]
      %v2073 = vmul.f32 %v1937, %v1937
      %v2074 = vmul.f32 %v1938, %v1938
      %v2075 = vmul.f32 %v1939, %v1939
      %v2076 = vmul.f32 %v1940, %v1940
      %v2077 = vmul.f32 %v1941, %v1941
      %v2078 = vmul.f32 %v1942, %v1942
      %v2079 = vmul.f32 %v1943, %v1943
      %v2080 = vmul.f32 %v1944, %v1944
      %v2081 = vmul.f32 %v1945, %v1945
      %v2082 = vmul.f32 %v1946, %v1946
      %v2083 = vmul.f32 %v1947, %v1947
      %v2084 = vmul.f32 %v1948, %v1948
      %v2085 = vmul.f32 %v1949, %v1949
      %v2086 = vmul.f32 %v1950, %v1950
      %v2087 = vmul.f32 %v1951, %v1951
      %v2088 = vmul.f32 %v1952, %v1952
      %v2089 = vmul.f32 %v1953, %v1953
      %v2090 = vmul.f32 %v1954, %v1954
      %v2091 = vmul.f32 %v1955, %v1955
      %v2092 = vmul.f32 %v1956, %v1956
      %v2093 = vmul.f32 %v1957, %v1957
      %v2094 = vmul.f32 %v1958, %v1958
      %v2095 = vmul.f32 %v1959, %v1959
      %v2096 = vmul.f32 %v1960, %v1960
      %v2097 = vmul.f32 %v1961, %v1961
      %v2098 = vmul.f32 %v1962, %v1962
      %v2099 = vmul.f32 %v1963, %v1963
      %v2100 = vmul.f32 %v1964, %v1964
      %v2101 = vmul.f32 %v1965, %v1965
      %v2102 = vmul.f32 %v1966, %v1966
      %v2103 = vmul.f32 %v1967, %v1967
      %v2104 = vmul.f32 %v1968, %v1968
      %vm2105 = vcmask 518144
      %v2106 = vsel %vm2105, %v2073, 0.0
      %2107 = vadd.xlane.f32.xlu0 %v2106
      %v2108 = vpop.xlane.xlu0 %2107
      %v2109 = vsel %vm2105, %v2074, 0.0
      %2110 = vadd.xlane.f32.xlu0 %v2109
      %v2111 = vpop.xlane.xlu0 %2110
      %v2112 = vsel %vm2105, %v2075, 0.0
      %2113 = vadd.xlane.f32.xlu0 %v2112
      %v2114 = vpop.xlane.xlu0 %2113
      %v2115 = vsel %vm2105, %v2076, 0.0
      %2116 = vadd.xlane.f32.xlu0 %v2115
      %v2117 = vpop.xlane.xlu0 %2116
      %v2118 = vsel %vm2105, %v2077, 0.0
      %2119 = vadd.xlane.f32.xlu0 %v2118
      %v2120 = vpop.xlane.xlu0 %2119
      %v2121 = vsel %vm2105, %v2078, 0.0
      %2122 = vadd.xlane.f32.xlu0 %v2121
      %v2123 = vpop.xlane.xlu0 %2122
      %v2124 = vsel %vm2105, %v2079, 0.0
      %2125 = vadd.xlane.f32.xlu0 %v2124
      %v2126 = vpop.xlane.xlu0 %2125
      %v2127 = vsel %vm2105, %v2080, 0.0
      %2128 = vadd.xlane.f32.xlu0 %v2127
      %v2129 = vpop.xlane.xlu0 %2128
      %v2130 = vsel %vm2105, %v2081, 0.0
      %2131 = vadd.xlane.f32.xlu0 %v2130
      %v2132 = vpop.xlane.xlu0 %2131
      %v2133 = vsel %vm2105, %v2082, 0.0
      %2134 = vadd.xlane.f32.xlu0 %v2133
      %v2135 = vpop.xlane.xlu0 %2134
      %v2136 = vsel %vm2105, %v2083, 0.0
      %2137 = vadd.xlane.f32.xlu0 %v2136
      %v2138 = vpop.xlane.xlu0 %2137
      %v2139 = vsel %vm2105, %v2084, 0.0
      %2140 = vadd.xlane.f32.xlu0 %v2139
      %v2141 = vpop.xlane.xlu0 %2140
      %v2142 = vsel %vm2105, %v2085, 0.0
      %2143 = vadd.xlane.f32.xlu0 %v2142
      %v2144 = vpop.xlane.xlu0 %2143
      %v2145 = vsel %vm2105, %v2086, 0.0
      %2146 = vadd.xlane.f32.xlu0 %v2145
      %v2147 = vpop.xlane.xlu0 %2146
      %v2148 = vsel %vm2105, %v2087, 0.0
      %2149 = vadd.xlane.f32.xlu0 %v2148
      %v2150 = vpop.xlane.xlu0 %2149
      %v2151 = vsel %vm2105, %v2088, 0.0
      %2152 = vadd.xlane.f32.xlu0 %v2151
      %v2153 = vpop.xlane.xlu0 %2152
      %v2154 = vsel %vm2105, %v2089, 0.0
      %2155 = vadd.xlane.f32.xlu0 %v2154
      %v2156 = vpop.xlane.xlu0 %2155
      %v2157 = vsel %vm2105, %v2090, 0.0
      %2158 = vadd.xlane.f32.xlu0 %v2157
      %v2159 = vpop.xlane.xlu0 %2158
      %v2160 = vsel %vm2105, %v2091, 0.0
      %2161 = vadd.xlane.f32.xlu0 %v2160
      %v2162 = vpop.xlane.xlu0 %2161
      %v2163 = vsel %vm2105, %v2092, 0.0
      %2164 = vadd.xlane.f32.xlu0 %v2163
      %v2165 = vpop.xlane.xlu0 %2164
      %v2166 = vsel %vm2105, %v2093, 0.0
      %2167 = vadd.xlane.f32.xlu0 %v2166
      %v2168 = vpop.xlane.xlu0 %2167
      %v2169 = vsel %vm2105, %v2094, 0.0
      %2170 = vadd.xlane.f32.xlu0 %v2169
      %v2171 = vpop.xlane.xlu0 %2170
      %v2172 = vsel %vm2105, %v2095, 0.0
      %2173 = vadd.xlane.f32.xlu0 %v2172
      %v2174 = vpop.xlane.xlu0 %2173
      %v2175 = vsel %vm2105, %v2096, 0.0
      %2176 = vadd.xlane.f32.xlu0 %v2175
      %v2177 = vpop.xlane.xlu0 %2176
      %v2178 = vsel %vm2105, %v2097, 0.0
      %2179 = vadd.xlane.f32.xlu0 %v2178
      %v2180 = vpop.xlane.xlu0 %2179
      %v2181 = vsel %vm2105, %v2098, 0.0
      %2182 = vadd.xlane.f32.xlu0 %v2181
      %v2183 = vpop.xlane.xlu0 %2182
      %v2184 = vsel %vm2105, %v2099, 0.0
      %2185 = vadd.xlane.f32.xlu0 %v2184
      %v2186 = vpop.xlane.xlu0 %2185
      %v2187 = vsel %vm2105, %v2100, 0.0
      %2188 = vadd.xlane.f32.xlu0 %v2187
      %v2189 = vpop.xlane.xlu0 %2188
      %v2190 = vsel %vm2105, %v2101, 0.0
      %2191 = vadd.xlane.f32.xlu0 %v2190
      %v2192 = vpop.xlane.xlu0 %2191
      %v2193 = vsel %vm2105, %v2102, 0.0
      %2194 = vadd.xlane.f32.xlu0 %v2193
      %v2195 = vpop.xlane.xlu0 %2194
      %v2196 = vsel %vm2105, %v2103, 0.0
      %2197 = vadd.xlane.f32.xlu0 %v2196
      %v2198 = vpop.xlane.xlu0 %2197
      %v2199 = vsel %vm2105, %v2104, 0.0
      %2200 = vadd.xlane.f32.xlu0 %v2199
      %v2201 = vpop.xlane.xlu0 %2200
      %v2202 = vmax.f32 %v2108, 1e-16
      %v2203 = vmax.f32 %v2111, 1e-16
      %v2204 = vmax.f32 %v2114, 1e-16
      %v2205 = vmax.f32 %v2117, 1e-16
      %v2206 = vmax.f32 %v2120, 1e-16
      %v2207 = vmax.f32 %v2123, 1e-16
      %v2208 = vmax.f32 %v2126, 1e-16
      %v2209 = vmax.f32 %v2129, 1e-16
      %v2210 = vmax.f32 %v2132, 1e-16
      %v2211 = vmax.f32 %v2135, 1e-16
      %v2212 = vmax.f32 %v2138, 1e-16
      %v2213 = vmax.f32 %v2141, 1e-16
      %v2214 = vmax.f32 %v2144, 1e-16
      %v2215 = vmax.f32 %v2147, 1e-16
      %v2216 = vmax.f32 %v2150, 1e-16
      %v2217 = vmax.f32 %v2153, 1e-16
      %v2218 = vmax.f32 %v2156, 1e-16
      %v2219 = vmax.f32 %v2159, 1e-16
      %v2220 = vmax.f32 %v2162, 1e-16
      %v2221 = vmax.f32 %v2165, 1e-16
      %v2222 = vmax.f32 %v2168, 1e-16
      %v2223 = vmax.f32 %v2171, 1e-16
      %v2224 = vmax.f32 %v2174, 1e-16
      %v2225 = vmax.f32 %v2177, 1e-16
      %v2226 = vmax.f32 %v2180, 1e-16
      %v2227 = vmax.f32 %v2183, 1e-16
      %v2228 = vmax.f32 %v2186, 1e-16
      %v2229 = vmax.f32 %v2189, 1e-16
      %v2230 = vmax.f32 %v2192, 1e-16
      %v2231 = vmax.f32 %v2195, 1e-16
      %v2232 = vmax.f32 %v2198, 1e-16
      %v2233 = vmax.f32 %v2201, 1e-16
      %v2234 = vrsqrt.pop %v2202
      %v2235 = vrsqrt.pop %v2203
      %v2236 = vrsqrt.pop %v2204
      %v2237 = vrsqrt.pop %v2205
      %v2238 = vrsqrt.pop %v2206
      %v2239 = vrsqrt.pop %v2207
      %v2240 = vrsqrt.pop %v2208
      %v2241 = vrsqrt.pop %v2209
      %v2242 = vrsqrt.pop %v2210
      %v2243 = vrsqrt.pop %v2211
      %v2244 = vrsqrt.pop %v2212
      %v2245 = vrsqrt.pop %v2213
      %v2246 = vrsqrt.pop %v2214
      %v2247 = vrsqrt.pop %v2215
      %v2248 = vrsqrt.pop %v2216
      %v2249 = vrsqrt.pop %v2217
      %v2250 = vrsqrt.pop %v2218
      %v2251 = vrsqrt.pop %v2219
      %v2252 = vrsqrt.pop %v2220
      %v2253 = vrsqrt.pop %v2221
      %v2254 = vrsqrt.pop %v2222
      %v2255 = vrsqrt.pop %v2223
      %v2256 = vrsqrt.pop %v2224
      %v2257 = vrsqrt.pop %v2225
      %v2258 = vrsqrt.pop %v2226
      %v2259 = vrsqrt.pop %v2227
      %v2260 = vrsqrt.pop %v2228
      %v2261 = vrsqrt.pop %v2229
      %v2262 = vrsqrt.pop %v2230
      %v2263 = vrsqrt.pop %v2231
      %v2264 = vrsqrt.pop %v2232
      %v2265 = vrsqrt.pop %v2233
      %v2298 = vlaneseq
      %v2299 = vshrl.u32 %v2298, 7
      %v2300 = vsub.s32 %v1771, %v2299
      %v2301 = vrot.slane %v2234, %v2300
      %v2302 = vlaneseq
      %v2303 = vshrl.u32 %v2302, 7
      %v2304 = vsub.s32 %v1771, %v2303
      %v2305 = vrot.slane %v2235, %v2304
      %v2306 = vlaneseq
      %v2307 = vshrl.u32 %v2306, 7
      %v2308 = vsub.s32 %v1771, %v2307
      %v2309 = vrot.slane %v2236, %v2308
      %v2310 = vlaneseq
      %v2311 = vshrl.u32 %v2310, 7
      %v2312 = vsub.s32 %v1771, %v2311
      %v2313 = vrot.slane %v2237, %v2312
      %v2314 = vlaneseq
      %v2315 = vshrl.u32 %v2314, 7
      %v2316 = vsub.s32 %v1771, %v2315
      %v2317 = vrot.slane %v2238, %v2316
      %v2318 = vlaneseq
      %v2319 = vshrl.u32 %v2318, 7
      %v2320 = vsub.s32 %v1771, %v2319
      %v2321 = vrot.slane %v2239, %v2320
      %v2322 = vlaneseq
      %v2323 = vshrl.u32 %v2322, 7
      %v2324 = vsub.s32 %v1771, %v2323
      %v2325 = vrot.slane %v2240, %v2324
      %v2326 = vlaneseq
      %v2327 = vshrl.u32 %v2326, 7
      %v2328 = vsub.s32 %v1771, %v2327
      %v2329 = vrot.slane %v2241, %v2328
      %v2330 = vlaneseq
      %v2331 = vshrl.u32 %v2330, 7
      %v2332 = vsub.s32 %v1771, %v2331
      %v2333 = vrot.slane %v2242, %v2332
      %v2334 = vlaneseq
      %v2335 = vshrl.u32 %v2334, 7
      %v2336 = vsub.s32 %v1771, %v2335
      %v2337 = vrot.slane %v2243, %v2336
      %v2338 = vlaneseq
      %v2339 = vshrl.u32 %v2338, 7
      %v2340 = vsub.s32 %v1771, %v2339
      %v2341 = vrot.slane %v2244, %v2340
      %v2342 = vlaneseq
      %v2343 = vshrl.u32 %v2342, 7
      %v2344 = vsub.s32 %v1771, %v2343
      %v2345 = vrot.slane %v2245, %v2344
      %v2346 = vlaneseq
      %v2347 = vshrl.u32 %v2346, 7
      %v2348 = vsub.s32 %v1771, %v2347
      %v2349 = vrot.slane %v2246, %v2348
      %v2350 = vlaneseq
      %v2351 = vshrl.u32 %v2350, 7
      %v2352 = vsub.s32 %v1771, %v2351
      %v2353 = vrot.slane %v2247, %v2352
      %v2354 = vlaneseq
      %v2355 = vshrl.u32 %v2354, 7
      %v2356 = vsub.s32 %v1771, %v2355
      %v2357 = vrot.slane %v2248, %v2356
      %v2358 = vlaneseq
      %v2359 = vshrl.u32 %v2358, 7
      %v2360 = vsub.s32 %v1771, %v2359
      %v2361 = vrot.slane %v2249, %v2360
      %v2362 = vlaneseq
      %v2363 = vshrl.u32 %v2362, 7
      %v2364 = vsub.s32 %v1771, %v2363
      %v2365 = vrot.slane %v2250, %v2364
      %v2366 = vlaneseq
      %v2367 = vshrl.u32 %v2366, 7
      %v2368 = vsub.s32 %v1771, %v2367
      %v2369 = vrot.slane %v2251, %v2368
      %v2370 = vlaneseq
      %v2371 = vshrl.u32 %v2370, 7
      %v2372 = vsub.s32 %v1771, %v2371
      %v2373 = vrot.slane %v2252, %v2372
      %v2374 = vlaneseq
      %v2375 = vshrl.u32 %v2374, 7
      %v2376 = vsub.s32 %v1771, %v2375
      %v2377 = vrot.slane %v2253, %v2376
      %v2378 = vlaneseq
      %v2379 = vshrl.u32 %v2378, 7
      %v2380 = vsub.s32 %v1771, %v2379
      %v2381 = vrot.slane %v2254, %v2380
      %v2382 = vlaneseq
      %v2383 = vshrl.u32 %v2382, 7
      %v2384 = vsub.s32 %v1771, %v2383
      %v2385 = vrot.slane %v2255, %v2384
      %v2386 = vlaneseq
      %v2387 = vshrl.u32 %v2386, 7
      %v2388 = vsub.s32 %v1771, %v2387
      %v2389 = vrot.slane %v2256, %v2388
      %v2390 = vlaneseq
      %v2391 = vshrl.u32 %v2390, 7
      %v2392 = vsub.s32 %v1771, %v2391
      %v2393 = vrot.slane %v2257, %v2392
      %v2394 = vlaneseq
      %v2395 = vshrl.u32 %v2394, 7
      %v2396 = vsub.s32 %v1771, %v2395
      %v2397 = vrot.slane %v2258, %v2396
      %v2398 = vlaneseq
      %v2399 = vshrl.u32 %v2398, 7
      %v2400 = vsub.s32 %v1771, %v2399
      %v2401 = vrot.slane %v2259, %v2400
      %v2402 = vlaneseq
      %v2403 = vshrl.u32 %v2402, 7
      %v2404 = vsub.s32 %v1771, %v2403
      %v2405 = vrot.slane %v2260, %v2404
      %v2406 = vlaneseq
      %v2407 = vshrl.u32 %v2406, 7
      %v2408 = vsub.s32 %v1771, %v2407
      %v2409 = vrot.slane %v2261, %v2408
      %v2410 = vlaneseq
      %v2411 = vshrl.u32 %v2410, 7
      %v2412 = vsub.s32 %v1771, %v2411
      %v2413 = vrot.slane %v2262, %v2412
      %v2414 = vlaneseq
      %v2415 = vshrl.u32 %v2414, 7
      %v2416 = vsub.s32 %v1771, %v2415
      %v2417 = vrot.slane %v2263, %v2416
      %v2418 = vlaneseq
      %v2419 = vshrl.u32 %v2418, 7
      %v2420 = vsub.s32 %v1771, %v2419
      %v2421 = vrot.slane %v2264, %v2420
      %v2422 = vlaneseq
      %v2423 = vshrl.u32 %v2422, 7
      %v2424 = vsub.s32 %v1771, %v2423
      %v2425 = vrot.slane %v2265, %v2424
      %v2426 = vsel %vm1038, %v2305, %v2301
      %v2427 = vsel %vm1040, %v2309, %v2426
      %v2428 = vsel %vm1042, %v2313, %v2427
      %v2429 = vsel %vm1044, %v2317, %v2428
      %v2430 = vsel %vm1046, %v2321, %v2429
      %v2431 = vsel %vm1048, %v2325, %v2430
      %v2432 = vsel %vm1050, %v2329, %v2431
      %v2433 = vsel %vm1038, %v2337, %v2333
      %v2434 = vsel %vm1040, %v2341, %v2433
      %v2435 = vsel %vm1042, %v2345, %v2434
      %v2436 = vsel %vm1044, %v2349, %v2435
      %v2437 = vsel %vm1046, %v2353, %v2436
      %v2438 = vsel %vm1048, %v2357, %v2437
      %v2439 = vsel %vm1050, %v2361, %v2438
      %v2440 = vsel %vm1038, %v2369, %v2365
      %v2441 = vsel %vm1040, %v2373, %v2440
      %v2442 = vsel %vm1042, %v2377, %v2441
      %v2443 = vsel %vm1044, %v2381, %v2442
      %v2444 = vsel %vm1046, %v2385, %v2443
      %v2445 = vsel %vm1048, %v2389, %v2444
      %v2446 = vsel %vm1050, %v2393, %v2445
      %v2447 = vsel %vm1038, %v2401, %v2397
      %v2448 = vsel %vm1040, %v2405, %v2447
      %v2449 = vsel %vm1042, %v2409, %v2448
      %v2450 = vsel %vm1044, %v2413, %v2449
      %v2451 = vsel %vm1046, %v2417, %v2450
      %v2452 = vsel %vm1048, %v2421, %v2451
      %v2453 = vsel %vm1050, %v2425, %v2452
      %v2458 = vmul.f32 %v1969, %v2432
      %v2459 = vmul.f32 %v1970, %v2439
      %v2460 = vmul.f32 %v1971, %v2446
      %v2461 = vmul.f32 %v1972, %v2453
      %v2462 = vmul.f32 %v1973, %v1973
      %v2463 = vmul.f32 %v1974, %v1974
      %v2464 = vmul.f32 %v1975, %v1975
      %v2465 = vmul.f32 %v1976, %v1976
      %v2466 = vmul.f32 %v1977, %v1977
      %v2467 = vmul.f32 %v1978, %v1978
      %v2468 = vmul.f32 %v1979, %v1979
      %v2469 = vmul.f32 %v1980, %v1980
      %v2470 = vmul.f32 %v1981, %v1981
      %v2471 = vmul.f32 %v1982, %v1982
      %v2472 = vmul.f32 %v1983, %v1983
      %v2473 = vmul.f32 %v1984, %v1984
      %v2474 = vmul.f32 %v1985, %v1985
      %v2475 = vmul.f32 %v1986, %v1986
      %v2476 = vmul.f32 %v1987, %v1987
      %v2477 = vmul.f32 %v1988, %v1988
      %v2478 = vmul.f32 %v1989, %v1989
      %v2479 = vmul.f32 %v1990, %v1990
      %v2480 = vmul.f32 %v1991, %v1991
      %v2481 = vmul.f32 %v1992, %v1992
      %v2482 = vmul.f32 %v1993, %v1993
      %v2483 = vmul.f32 %v1994, %v1994
      %v2484 = vmul.f32 %v1995, %v1995
      %v2485 = vmul.f32 %v1996, %v1996
      %v2486 = vmul.f32 %v1997, %v1997
      %v2487 = vmul.f32 %v1998, %v1998
      %v2488 = vmul.f32 %v1999, %v1999
      %v2489 = vmul.f32 %v2000, %v2000
      %v2490 = vmul.f32 %v2001, %v2001
      %v2491 = vmul.f32 %v2002, %v2002
      %v2492 = vmul.f32 %v2003, %v2003
      %v2493 = vmul.f32 %v2004, %v2004
      %v2494 = vmul.f32 %v2005, %v2005
      %v2495 = vmul.f32 %v2006, %v2006
      %v2496 = vmul.f32 %v2007, %v2007
      %v2497 = vmul.f32 %v2008, %v2008
      %v2498 = vmul.f32 %v2009, %v2009
      %v2499 = vmul.f32 %v2010, %v2010
      %v2500 = vmul.f32 %v2011, %v2011
      %v2501 = vmul.f32 %v2012, %v2012
      %v2502 = vmul.f32 %v2013, %v2013
      %v2503 = vmul.f32 %v2014, %v2014
      %v2504 = vmul.f32 %v2015, %v2015
      %v2505 = vmul.f32 %v2016, %v2016
      %v2506 = vmul.f32 %v2017, %v2017
      %v2507 = vmul.f32 %v2018, %v2018
      %v2508 = vmul.f32 %v2019, %v2019
      %v2509 = vmul.f32 %v2020, %v2020
      %v2510 = vmul.f32 %v2021, %v2021
      %v2511 = vmul.f32 %v2022, %v2022
      %v2512 = vmul.f32 %v2023, %v2023
      %v2513 = vmul.f32 %v2024, %v2024
      %v2514 = vmul.f32 %v2025, %v2025
      %v2515 = vmul.f32 %v2026, %v2026
      %v2516 = vmul.f32 %v2027, %v2027
      %v2517 = vmul.f32 %v2028, %v2028
      %v2518 = vmul.f32 %v2029, %v2029
      %v2519 = vmul.f32 %v2030, %v2030
      %v2520 = vmul.f32 %v2031, %v2031
      %v2521 = vmul.f32 %v2032, %v2032
      %v2522 = vmul.f32 %v2033, %v2033
      %v2523 = vmul.f32 %v2034, %v2034
      %v2524 = vmul.f32 %v2035, %v2035
      %v2525 = vmul.f32 %v2036, %v2036
      %v2526 = vmul.f32 %v2037, %v2037
      %v2527 = vmul.f32 %v2038, %v2038
      %v2528 = vmul.f32 %v2039, %v2039
      %v2529 = vmul.f32 %v2040, %v2040
      %v2530 = vmul.f32 %v2041, %v2041
      %v2531 = vmul.f32 %v2042, %v2042
      %v2532 = vmul.f32 %v2043, %v2043
      %v2533 = vmul.f32 %v2044, %v2044
      %v2534 = vmul.f32 %v2045, %v2045
      %v2535 = vmul.f32 %v2046, %v2046
      %v2536 = vmul.f32 %v2047, %v2047
      %v2537 = vmul.f32 %v2048, %v2048
      %v2538 = vmul.f32 %v2049, %v2049
      %v2539 = vmul.f32 %v2050, %v2050
      %v2540 = vmul.f32 %v2051, %v2051
      %v2541 = vmul.f32 %v2052, %v2052
      %v2542 = vmul.f32 %v2053, %v2053
      %v2543 = vmul.f32 %v2054, %v2054
      %v2544 = vmul.f32 %v2055, %v2055
      %v2545 = vmul.f32 %v2056, %v2056
      %v2546 = vmul.f32 %v2057, %v2057
      %v2547 = vmul.f32 %v2058, %v2058
      %v2548 = vmul.f32 %v2059, %v2059
      %v2549 = vmul.f32 %v2060, %v2060
      %v2550 = vmul.f32 %v2061, %v2061
      %v2551 = vmul.f32 %v2062, %v2062
      %v2552 = vmul.f32 %v2063, %v2063
      %v2553 = vmul.f32 %v2064, %v2064
      %v2554 = vmul.f32 %v2065, %v2065
      %v2555 = vmul.f32 %v2066, %v2066
      %v2556 = vmul.f32 %v2067, %v2067
      %v2557 = vmul.f32 %v2068, %v2068
      %vm2558 = vcmask 523264
      %v2559 = vsel %vm2558, %v2462, 0.0
      %2560 = vadd.xlane.f32.xlu0 %v2559
      %v2561 = vpop.xlane.xlu0 %2560
      %v2562 = vsel %vm2558, %v2463, 0.0
      %2563 = vadd.xlane.f32.xlu0 %v2562
      %v2564 = vpop.xlane.xlu0 %2563
      %vm2565 = vcmask 519168
      %v2566 = vsel %vm2565, %v2464, 0.0
      %2567 = vadd.xlane.f32.xlu0 %v2566
      %v2568 = vpop.xlane.xlu0 %2567
      %v2569 = vsel %vm2558, %v2465, 0.0
      %2570 = vadd.xlane.f32.xlu0 %v2569
      %v2571 = vpop.xlane.xlu0 %2570
      %v2572 = vsel %vm2558, %v2466, 0.0
      %2573 = vadd.xlane.f32.xlu0 %v2572
      %v2574 = vpop.xlane.xlu0 %2573
      %v2575 = vsel %vm2565, %v2467, 0.0
      %2576 = vadd.xlane.f32.xlu0 %v2575
      %v2577 = vpop.xlane.xlu0 %2576
      %v2578 = vsel %vm2558, %v2468, 0.0
      %2579 = vadd.xlane.f32.xlu0 %v2578
      %v2580 = vpop.xlane.xlu0 %2579
      %v2581 = vsel %vm2558, %v2469, 0.0
      %2582 = vadd.xlane.f32.xlu0 %v2581
      %v2583 = vpop.xlane.xlu0 %2582
      %v2584 = vsel %vm2565, %v2470, 0.0
      %2585 = vadd.xlane.f32.xlu0 %v2584
      %v2586 = vpop.xlane.xlu0 %2585
      %v2587 = vsel %vm2558, %v2471, 0.0
      %2588 = vadd.xlane.f32.xlu0 %v2587
      %v2589 = vpop.xlane.xlu0 %2588
      %v2590 = vsel %vm2558, %v2472, 0.0
      %2591 = vadd.xlane.f32.xlu0 %v2590
      %v2592 = vpop.xlane.xlu0 %2591
      %v2593 = vsel %vm2565, %v2473, 0.0
      %2594 = vadd.xlane.f32.xlu0 %v2593
      %v2595 = vpop.xlane.xlu0 %2594
      %v2596 = vsel %vm2558, %v2474, 0.0
      %2597 = vadd.xlane.f32.xlu0 %v2596
      %v2598 = vpop.xlane.xlu0 %2597
      %v2599 = vsel %vm2558, %v2475, 0.0
      %2600 = vadd.xlane.f32.xlu0 %v2599
      %v2601 = vpop.xlane.xlu0 %2600
      %v2602 = vsel %vm2565, %v2476, 0.0
      %2603 = vadd.xlane.f32.xlu0 %v2602
      %v2604 = vpop.xlane.xlu0 %2603
      %v2605 = vsel %vm2558, %v2477, 0.0
      %2606 = vadd.xlane.f32.xlu0 %v2605
      %v2607 = vpop.xlane.xlu0 %2606
      %v2608 = vsel %vm2558, %v2478, 0.0
      %2609 = vadd.xlane.f32.xlu0 %v2608
      %v2610 = vpop.xlane.xlu0 %2609
      %v2611 = vsel %vm2565, %v2479, 0.0
      %2612 = vadd.xlane.f32.xlu0 %v2611
      %v2613 = vpop.xlane.xlu0 %2612
      %v2614 = vsel %vm2558, %v2480, 0.0
      %2615 = vadd.xlane.f32.xlu0 %v2614
      %v2616 = vpop.xlane.xlu0 %2615
      %v2617 = vsel %vm2558, %v2481, 0.0
      %2618 = vadd.xlane.f32.xlu0 %v2617
      %v2619 = vpop.xlane.xlu0 %2618
      %v2620 = vsel %vm2565, %v2482, 0.0
      %2621 = vadd.xlane.f32.xlu0 %v2620
      %v2622 = vpop.xlane.xlu0 %2621
      %v2623 = vsel %vm2558, %v2483, 0.0
      %2624 = vadd.xlane.f32.xlu0 %v2623
      %v2625 = vpop.xlane.xlu0 %2624
      %v2626 = vsel %vm2558, %v2484, 0.0
      %2627 = vadd.xlane.f32.xlu0 %v2626
      %v2628 = vpop.xlane.xlu0 %2627
      %v2629 = vsel %vm2565, %v2485, 0.0
      %2630 = vadd.xlane.f32.xlu0 %v2629
      %v2631 = vpop.xlane.xlu0 %2630
      %v2632 = vsel %vm2558, %v2486, 0.0
      %2633 = vadd.xlane.f32.xlu0 %v2632
      %v2634 = vpop.xlane.xlu0 %2633
      %v2635 = vsel %vm2558, %v2487, 0.0
      %2636 = vadd.xlane.f32.xlu0 %v2635
      %v2637 = vpop.xlane.xlu0 %2636
      %v2638 = vsel %vm2565, %v2488, 0.0
      %2639 = vadd.xlane.f32.xlu0 %v2638
      %v2640 = vpop.xlane.xlu0 %2639
      %v2641 = vsel %vm2558, %v2489, 0.0
      %2642 = vadd.xlane.f32.xlu0 %v2641
      %v2643 = vpop.xlane.xlu0 %2642
      %v2644 = vsel %vm2558, %v2490, 0.0
      %2645 = vadd.xlane.f32.xlu0 %v2644
      %v2646 = vpop.xlane.xlu0 %2645
      %v2647 = vsel %vm2565, %v2491, 0.0
      %2648 = vadd.xlane.f32.xlu0 %v2647
      %v2649 = vpop.xlane.xlu0 %2648
      %v2650 = vsel %vm2558, %v2492, 0.0
      %2651 = vadd.xlane.f32.xlu0 %v2650
      %v2652 = vpop.xlane.xlu0 %2651
      %v2653 = vsel %vm2558, %v2493, 0.0
      %2654 = vadd.xlane.f32.xlu0 %v2653
      %v2655 = vpop.xlane.xlu0 %2654
      %v2656 = vsel %vm2565, %v2494, 0.0
      %2657 = vadd.xlane.f32.xlu0 %v2656
      %v2658 = vpop.xlane.xlu0 %2657
      %v2659 = vsel %vm2558, %v2495, 0.0
      %2660 = vadd.xlane.f32.xlu0 %v2659
      %v2661 = vpop.xlane.xlu0 %2660
      %v2662 = vsel %vm2558, %v2496, 0.0
      %2663 = vadd.xlane.f32.xlu0 %v2662
      %v2664 = vpop.xlane.xlu0 %2663
      %v2665 = vsel %vm2565, %v2497, 0.0
      %2666 = vadd.xlane.f32.xlu0 %v2665
      %v2667 = vpop.xlane.xlu0 %2666
      %v2668 = vsel %vm2558, %v2498, 0.0
      %2669 = vadd.xlane.f32.xlu0 %v2668
      %v2670 = vpop.xlane.xlu0 %2669
      %v2671 = vsel %vm2558, %v2499, 0.0
      %2672 = vadd.xlane.f32.xlu0 %v2671
      %v2673 = vpop.xlane.xlu0 %2672
      %v2674 = vsel %vm2565, %v2500, 0.0
      %2675 = vadd.xlane.f32.xlu0 %v2674
      %v2676 = vpop.xlane.xlu0 %2675
      %v2677 = vsel %vm2558, %v2501, 0.0
      %2678 = vadd.xlane.f32.xlu0 %v2677
      %v2679 = vpop.xlane.xlu0 %2678
      %v2680 = vsel %vm2558, %v2502, 0.0
      %2681 = vadd.xlane.f32.xlu0 %v2680
      %v2682 = vpop.xlane.xlu0 %2681
      %v2683 = vsel %vm2565, %v2503, 0.0
      %2684 = vadd.xlane.f32.xlu0 %v2683
      %v2685 = vpop.xlane.xlu0 %2684
      %v2686 = vsel %vm2558, %v2504, 0.0
      %2687 = vadd.xlane.f32.xlu0 %v2686
      %v2688 = vpop.xlane.xlu0 %2687
      %v2689 = vsel %vm2558, %v2505, 0.0
      %2690 = vadd.xlane.f32.xlu0 %v2689
      %v2691 = vpop.xlane.xlu0 %2690
      %v2692 = vsel %vm2565, %v2506, 0.0
      %2693 = vadd.xlane.f32.xlu0 %v2692
      %v2694 = vpop.xlane.xlu0 %2693
      %v2695 = vsel %vm2558, %v2507, 0.0
      %2696 = vadd.xlane.f32.xlu0 %v2695
      %v2697 = vpop.xlane.xlu0 %2696
      %v2698 = vsel %vm2558, %v2508, 0.0
      %2699 = vadd.xlane.f32.xlu0 %v2698
      %v2700 = vpop.xlane.xlu0 %2699
      %v2701 = vsel %vm2565, %v2509, 0.0
      %2702 = vadd.xlane.f32.xlu0 %v2701
      %v2703 = vpop.xlane.xlu0 %2702
      %v2704 = vsel %vm2558, %v2510, 0.0
      %2705 = vadd.xlane.f32.xlu0 %v2704
      %v2706 = vpop.xlane.xlu0 %2705
      %v2707 = vsel %vm2558, %v2511, 0.0
      %2708 = vadd.xlane.f32.xlu0 %v2707
      %v2709 = vpop.xlane.xlu0 %2708
      %v2710 = vsel %vm2565, %v2512, 0.0
      %2711 = vadd.xlane.f32.xlu0 %v2710
      %v2712 = vpop.xlane.xlu0 %2711
      %v2713 = vsel %vm2558, %v2513, 0.0
      %2714 = vadd.xlane.f32.xlu0 %v2713
      %v2715 = vpop.xlane.xlu0 %2714
      %v2716 = vsel %vm2558, %v2514, 0.0
      %2717 = vadd.xlane.f32.xlu0 %v2716
      %v2718 = vpop.xlane.xlu0 %2717
      %v2719 = vsel %vm2565, %v2515, 0.0
      %2720 = vadd.xlane.f32.xlu0 %v2719
      %v2721 = vpop.xlane.xlu0 %2720
      %v2722 = vsel %vm2558, %v2516, 0.0
      %2723 = vadd.xlane.f32.xlu0 %v2722
      %v2724 = vpop.xlane.xlu0 %2723
      %v2725 = vsel %vm2558, %v2517, 0.0
      %2726 = vadd.xlane.f32.xlu0 %v2725
      %v2727 = vpop.xlane.xlu0 %2726
      %v2728 = vsel %vm2565, %v2518, 0.0
      %2729 = vadd.xlane.f32.xlu0 %v2728
      %v2730 = vpop.xlane.xlu0 %2729
      %v2731 = vsel %vm2558, %v2519, 0.0
      %2732 = vadd.xlane.f32.xlu0 %v2731
      %v2733 = vpop.xlane.xlu0 %2732
      %v2734 = vsel %vm2558, %v2520, 0.0
      %2735 = vadd.xlane.f32.xlu0 %v2734
      %v2736 = vpop.xlane.xlu0 %2735
      %v2737 = vsel %vm2565, %v2521, 0.0
      %2738 = vadd.xlane.f32.xlu0 %v2737
      %v2739 = vpop.xlane.xlu0 %2738
      %v2740 = vsel %vm2558, %v2522, 0.0
      %2741 = vadd.xlane.f32.xlu0 %v2740
      %v2742 = vpop.xlane.xlu0 %2741
      %v2743 = vsel %vm2558, %v2523, 0.0
      %2744 = vadd.xlane.f32.xlu0 %v2743
      %v2745 = vpop.xlane.xlu0 %2744
      %v2746 = vsel %vm2565, %v2524, 0.0
      %2747 = vadd.xlane.f32.xlu0 %v2746
      %v2748 = vpop.xlane.xlu0 %2747
      %v2749 = vsel %vm2558, %v2525, 0.0
      %2750 = vadd.xlane.f32.xlu0 %v2749
      %v2751 = vpop.xlane.xlu0 %2750
      %v2752 = vsel %vm2558, %v2526, 0.0
      %2753 = vadd.xlane.f32.xlu0 %v2752
      %v2754 = vpop.xlane.xlu0 %2753
      %v2755 = vsel %vm2565, %v2527, 0.0
      %2756 = vadd.xlane.f32.xlu0 %v2755
      %v2757 = vpop.xlane.xlu0 %2756
      %v2758 = vsel %vm2558, %v2528, 0.0
      %2759 = vadd.xlane.f32.xlu0 %v2758
      %v2760 = vpop.xlane.xlu0 %2759
      %v2761 = vsel %vm2558, %v2529, 0.0
      %2762 = vadd.xlane.f32.xlu0 %v2761
      %v2763 = vpop.xlane.xlu0 %2762
      %v2764 = vsel %vm2565, %v2530, 0.0
      %2765 = vadd.xlane.f32.xlu0 %v2764
      %v2766 = vpop.xlane.xlu0 %2765
      %v2767 = vsel %vm2558, %v2531, 0.0
      %2768 = vadd.xlane.f32.xlu0 %v2767
      %v2769 = vpop.xlane.xlu0 %2768
      %v2770 = vsel %vm2558, %v2532, 0.0
      %2771 = vadd.xlane.f32.xlu0 %v2770
      %v2772 = vpop.xlane.xlu0 %2771
      %v2773 = vsel %vm2565, %v2533, 0.0
      %2774 = vadd.xlane.f32.xlu0 %v2773
      %v2775 = vpop.xlane.xlu0 %2774
      %v2776 = vsel %vm2558, %v2534, 0.0
      %2777 = vadd.xlane.f32.xlu0 %v2776
      %v2778 = vpop.xlane.xlu0 %2777
      %v2779 = vsel %vm2558, %v2535, 0.0
      %2780 = vadd.xlane.f32.xlu0 %v2779
      %v2781 = vpop.xlane.xlu0 %2780
      %v2782 = vsel %vm2565, %v2536, 0.0
      %2783 = vadd.xlane.f32.xlu0 %v2782
      %v2784 = vpop.xlane.xlu0 %2783
      %v2785 = vsel %vm2558, %v2537, 0.0
      %2786 = vadd.xlane.f32.xlu0 %v2785
      %v2787 = vpop.xlane.xlu0 %2786
      %v2788 = vsel %vm2558, %v2538, 0.0
      %2789 = vadd.xlane.f32.xlu0 %v2788
      %v2790 = vpop.xlane.xlu0 %2789
      %v2791 = vsel %vm2565, %v2539, 0.0
      %2792 = vadd.xlane.f32.xlu0 %v2791
      %v2793 = vpop.xlane.xlu0 %2792
      %v2794 = vsel %vm2558, %v2540, 0.0
      %2795 = vadd.xlane.f32.xlu0 %v2794
      %v2796 = vpop.xlane.xlu0 %2795
      %v2797 = vsel %vm2558, %v2541, 0.0
      %2798 = vadd.xlane.f32.xlu0 %v2797
      %v2799 = vpop.xlane.xlu0 %2798
      %v2800 = vsel %vm2565, %v2542, 0.0
      %2801 = vadd.xlane.f32.xlu0 %v2800
      %v2802 = vpop.xlane.xlu0 %2801
      %v2803 = vsel %vm2558, %v2543, 0.0
      %2804 = vadd.xlane.f32.xlu0 %v2803
      %v2805 = vpop.xlane.xlu0 %2804
      %v2806 = vsel %vm2558, %v2544, 0.0
      %2807 = vadd.xlane.f32.xlu0 %v2806
      %v2808 = vpop.xlane.xlu0 %2807
      %v2809 = vsel %vm2565, %v2545, 0.0
      %2810 = vadd.xlane.f32.xlu0 %v2809
      %v2811 = vpop.xlane.xlu0 %2810
      %v2812 = vsel %vm2558, %v2546, 0.0
      %2813 = vadd.xlane.f32.xlu0 %v2812
      %v2814 = vpop.xlane.xlu0 %2813
      %v2815 = vsel %vm2558, %v2547, 0.0
      %2816 = vadd.xlane.f32.xlu0 %v2815
      %v2817 = vpop.xlane.xlu0 %2816
      %v2818 = vsel %vm2565, %v2548, 0.0
      %2819 = vadd.xlane.f32.xlu0 %v2818
      %v2820 = vpop.xlane.xlu0 %2819
      %v2821 = vsel %vm2558, %v2549, 0.0
      %2822 = vadd.xlane.f32.xlu0 %v2821
      %v2823 = vpop.xlane.xlu0 %2822
      %v2824 = vsel %vm2558, %v2550, 0.0
      %2825 = vadd.xlane.f32.xlu0 %v2824
      %v2826 = vpop.xlane.xlu0 %2825
      %v2827 = vsel %vm2565, %v2551, 0.0
      %2828 = vadd.xlane.f32.xlu0 %v2827
      %v2829 = vpop.xlane.xlu0 %2828
      %v2830 = vsel %vm2558, %v2552, 0.0
      %2831 = vadd.xlane.f32.xlu0 %v2830
      %v2832 = vpop.xlane.xlu0 %2831
      %v2833 = vsel %vm2558, %v2553, 0.0
      %2834 = vadd.xlane.f32.xlu0 %v2833
      %v2835 = vpop.xlane.xlu0 %2834
      %v2836 = vsel %vm2565, %v2554, 0.0
      %2837 = vadd.xlane.f32.xlu0 %v2836
      %v2838 = vpop.xlane.xlu0 %2837
      %v2839 = vsel %vm2558, %v2555, 0.0
      %2840 = vadd.xlane.f32.xlu0 %v2839
      %v2841 = vpop.xlane.xlu0 %2840
      %v2842 = vsel %vm2558, %v2556, 0.0
      %2843 = vadd.xlane.f32.xlu0 %v2842
      %v2844 = vpop.xlane.xlu0 %2843
      %v2845 = vsel %vm2565, %v2557, 0.0
      %2846 = vadd.xlane.f32.xlu0 %v2845
      %v2847 = vpop.xlane.xlu0 %2846
      %v2848 = vmax.f32 %v2561, 1e-16
      %v2849 = vmax.f32 %v2564, 1e-16
      %v2850 = vmax.f32 %v2568, 1e-16
      %v2851 = vmax.f32 %v2571, 1e-16
      %v2852 = vmax.f32 %v2574, 1e-16
      %v2853 = vmax.f32 %v2577, 1e-16
      %v2854 = vmax.f32 %v2580, 1e-16
      %v2855 = vmax.f32 %v2583, 1e-16
      %v2856 = vmax.f32 %v2586, 1e-16
      %v2857 = vmax.f32 %v2589, 1e-16
      %v2858 = vmax.f32 %v2592, 1e-16
      %v2859 = vmax.f32 %v2595, 1e-16
      %v2860 = vmax.f32 %v2598, 1e-16
      %v2861 = vmax.f32 %v2601, 1e-16
      %v2862 = vmax.f32 %v2604, 1e-16
      %v2863 = vmax.f32 %v2607, 1e-16
      %v2864 = vmax.f32 %v2610, 1e-16
      %v2865 = vmax.f32 %v2613, 1e-16
      %v2866 = vmax.f32 %v2616, 1e-16
      %v2867 = vmax.f32 %v2619, 1e-16
      %v2868 = vmax.f32 %v2622, 1e-16
      %v2869 = vmax.f32 %v2625, 1e-16
      %v2870 = vmax.f32 %v2628, 1e-16
      %v2871 = vmax.f32 %v2631, 1e-16
      %v2872 = vmax.f32 %v2634, 1e-16
      %v2873 = vmax.f32 %v2637, 1e-16
      %v2874 = vmax.f32 %v2640, 1e-16
      %v2875 = vmax.f32 %v2643, 1e-16
      %v2876 = vmax.f32 %v2646, 1e-16
      %v2877 = vmax.f32 %v2649, 1e-16
      %v2878 = vmax.f32 %v2652, 1e-16
      %v2879 = vmax.f32 %v2655, 1e-16
      %v2880 = vmax.f32 %v2658, 1e-16
      %v2881 = vmax.f32 %v2661, 1e-16
      %v2882 = vmax.f32 %v2664, 1e-16
      %v2883 = vmax.f32 %v2667, 1e-16
      %v2884 = vmax.f32 %v2670, 1e-16
      %v2885 = vmax.f32 %v2673, 1e-16
      %v2886 = vmax.f32 %v2676, 1e-16
      %v2887 = vmax.f32 %v2679, 1e-16
      %v2888 = vmax.f32 %v2682, 1e-16
      %v2889 = vmax.f32 %v2685, 1e-16
      %v2890 = vmax.f32 %v2688, 1e-16
      %v2891 = vmax.f32 %v2691, 1e-16
      %v2892 = vmax.f32 %v2694, 1e-16
      %v2893 = vmax.f32 %v2697, 1e-16
      %v2894 = vmax.f32 %v2700, 1e-16
      %v2895 = vmax.f32 %v2703, 1e-16
      %v2896 = vmax.f32 %v2706, 1e-16
      %v2897 = vmax.f32 %v2709, 1e-16
      %v2898 = vmax.f32 %v2712, 1e-16
      %v2899 = vmax.f32 %v2715, 1e-16
      %v2900 = vmax.f32 %v2718, 1e-16
      %v2901 = vmax.f32 %v2721, 1e-16
      %v2902 = vmax.f32 %v2724, 1e-16
      %v2903 = vmax.f32 %v2727, 1e-16
      %v2904 = vmax.f32 %v2730, 1e-16
      %v2905 = vmax.f32 %v2733, 1e-16
      %v2906 = vmax.f32 %v2736, 1e-16
      %v2907 = vmax.f32 %v2739, 1e-16
      %v2908 = vmax.f32 %v2742, 1e-16
      %v2909 = vmax.f32 %v2745, 1e-16
      %v2910 = vmax.f32 %v2748, 1e-16
      %v2911 = vmax.f32 %v2751, 1e-16
      %v2912 = vmax.f32 %v2754, 1e-16
      %v2913 = vmax.f32 %v2757, 1e-16
      %v2914 = vmax.f32 %v2760, 1e-16
      %v2915 = vmax.f32 %v2763, 1e-16
      %v2916 = vmax.f32 %v2766, 1e-16
      %v2917 = vmax.f32 %v2769, 1e-16
      %v2918 = vmax.f32 %v2772, 1e-16
      %v2919 = vmax.f32 %v2775, 1e-16
      %v2920 = vmax.f32 %v2778, 1e-16
      %v2921 = vmax.f32 %v2781, 1e-16
      %v2922 = vmax.f32 %v2784, 1e-16
      %v2923 = vmax.f32 %v2787, 1e-16
      %v2924 = vmax.f32 %v2790, 1e-16
      %v2925 = vmax.f32 %v2793, 1e-16
      %v2926 = vmax.f32 %v2796, 1e-16
      %v2927 = vmax.f32 %v2799, 1e-16
      %v2928 = vmax.f32 %v2802, 1e-16
      %v2929 = vmax.f32 %v2805, 1e-16
      %v2930 = vmax.f32 %v2808, 1e-16
      %v2931 = vmax.f32 %v2811, 1e-16
      %v2932 = vmax.f32 %v2814, 1e-16
      %v2933 = vmax.f32 %v2817, 1e-16
      %v2934 = vmax.f32 %v2820, 1e-16
      %v2935 = vmax.f32 %v2823, 1e-16
      %v2936 = vmax.f32 %v2826, 1e-16
      %v2937 = vmax.f32 %v2829, 1e-16
      %v2938 = vmax.f32 %v2832, 1e-16
      %v2939 = vmax.f32 %v2835, 1e-16
      %v2940 = vmax.f32 %v2838, 1e-16
      %v2941 = vmax.f32 %v2841, 1e-16
      %v2942 = vmax.f32 %v2844, 1e-16
      %v2943 = vmax.f32 %v2847, 1e-16
      %v2944 = vrsqrt.pop %v2848
      %v2945 = vrsqrt.pop %v2849
      %v2946 = vrsqrt.pop %v2850
      %v2947 = vrsqrt.pop %v2851
      %v2948 = vrsqrt.pop %v2852
      %v2949 = vrsqrt.pop %v2853
      %v2950 = vrsqrt.pop %v2854
      %v2951 = vrsqrt.pop %v2855
      %v2952 = vrsqrt.pop %v2856
      %v2953 = vrsqrt.pop %v2857
      %v2954 = vrsqrt.pop %v2858
      %v2955 = vrsqrt.pop %v2859
      %v2956 = vrsqrt.pop %v2860
      %v2957 = vrsqrt.pop %v2861
      %v2958 = vrsqrt.pop %v2862
      %v2959 = vrsqrt.pop %v2863
      %v2960 = vrsqrt.pop %v2864
      %v2961 = vrsqrt.pop %v2865
      %v2962 = vrsqrt.pop %v2866
      %v2963 = vrsqrt.pop %v2867
      %v2964 = vrsqrt.pop %v2868
      %v2965 = vrsqrt.pop %v2869
      %v2966 = vrsqrt.pop %v2870
      %v2967 = vrsqrt.pop %v2871
      %v2968 = vrsqrt.pop %v2872
      %v2969 = vrsqrt.pop %v2873
      %v2970 = vrsqrt.pop %v2874
      %v2971 = vrsqrt.pop %v2875
      %v2972 = vrsqrt.pop %v2876
      %v2973 = vrsqrt.pop %v2877
      %v2974 = vrsqrt.pop %v2878
      %v2975 = vrsqrt.pop %v2879
      %v2976 = vrsqrt.pop %v2880
      %v2977 = vrsqrt.pop %v2881
      %v2978 = vrsqrt.pop %v2882
      %v2979 = vrsqrt.pop %v2883
      %v2980 = vrsqrt.pop %v2884
      %v2981 = vrsqrt.pop %v2885
      %v2982 = vrsqrt.pop %v2886
      %v2983 = vrsqrt.pop %v2887
      %v2984 = vrsqrt.pop %v2888
      %v2985 = vrsqrt.pop %v2889
      %v2986 = vrsqrt.pop %v2890
      %v2987 = vrsqrt.pop %v2891
      %v2988 = vrsqrt.pop %v2892
      %v2989 = vrsqrt.pop %v2893
      %v2990 = vrsqrt.pop %v2894
      %v2991 = vrsqrt.pop %v2895
      %v2992 = vrsqrt.pop %v2896
      %v2993 = vrsqrt.pop %v2897
      %v2994 = vrsqrt.pop %v2898
      %v2995 = vrsqrt.pop %v2899
      %v2996 = vrsqrt.pop %v2900
      %v2997 = vrsqrt.pop %v2901
      %v2998 = vrsqrt.pop %v2902
      %v2999 = vrsqrt.pop %v2903
      %v3000 = vrsqrt.pop %v2904
      %v3001 = vrsqrt.pop %v2905
      %v3002 = vrsqrt.pop %v2906
      %v3003 = vrsqrt.pop %v2907
      %v3004 = vrsqrt.pop %v2908
      %v3005 = vrsqrt.pop %v2909
      %v3006 = vrsqrt.pop %v2910
      %v3007 = vrsqrt.pop %v2911
      %v3008 = vrsqrt.pop %v2912
      %v3009 = vrsqrt.pop %v2913
      %v3010 = vrsqrt.pop %v2914
      %v3011 = vrsqrt.pop %v2915
      %v3012 = vrsqrt.pop %v2916
      %v3013 = vrsqrt.pop %v2917
      %v3014 = vrsqrt.pop %v2918
      %v3015 = vrsqrt.pop %v2919
      %v3016 = vrsqrt.pop %v2920
      %v3017 = vrsqrt.pop %v2921
      %v3018 = vrsqrt.pop %v2922
      %v3019 = vrsqrt.pop %v2923
      %v3020 = vrsqrt.pop %v2924
      %v3021 = vrsqrt.pop %v2925
      %v3022 = vrsqrt.pop %v2926
      %v3023 = vrsqrt.pop %v2927
      %v3024 = vrsqrt.pop %v2928
      %v3025 = vrsqrt.pop %v2929
      %v3026 = vrsqrt.pop %v2930
      %v3027 = vrsqrt.pop %v2931
      %v3028 = vrsqrt.pop %v2932
      %v3029 = vrsqrt.pop %v2933
      %v3030 = vrsqrt.pop %v2934
      %v3031 = vrsqrt.pop %v2935
      %v3032 = vrsqrt.pop %v2936
      %v3033 = vrsqrt.pop %v2937
      %v3034 = vrsqrt.pop %v2938
      %v3035 = vrsqrt.pop %v2939
      %v3036 = vrsqrt.pop %v2940
      %v3037 = vrsqrt.pop %v2941
      %v3038 = vrsqrt.pop %v2942
      %v3039 = vrsqrt.pop %v2943
      %v3136 = vlaneseq
      %v3137 = vshrl.u32 %v3136, 7
      %v3138 = vsub.s32 %v1771, %v3137
      %v3139 = vrot.slane %v2944, %v3138
      %v3140 = vadd.s32 %v1771, 4294967288
      %v3141 = vlaneseq
      %v3142 = vshrl.u32 %v3141, 7
      %v3143 = vsub.s32 %v3140, %v3142
      %v3144 = vrot.slane %v2945, %v3143
      %vm3145 = vcmask 130112
      %v3146 = vsel %vm3145, %v3144, %v3139
      %v3147 = vadd.s32 %v1771, 4294967280
      %v3148 = vlaneseq
      %v3149 = vshrl.u32 %v3148, 7
      %v3150 = vsub.s32 %v3147, %v3149
      %v3151 = vrot.slane %v2946, %v3150
      %vm3152 = vcmask 195712
      %v3153 = vsel %vm3152, %v3151, %v3146
      %v3154 = vlaneseq
      %v3155 = vshrl.u32 %v3154, 7
      %v3156 = vsub.s32 %v1771, %v3155
      %v3157 = vrot.slane %v2947, %v3156
      %v3158 = vlaneseq
      %v3159 = vshrl.u32 %v3158, 7
      %v3160 = vsub.s32 %v3140, %v3159
      %v3161 = vrot.slane %v2948, %v3160
      %v3162 = vsel %vm3145, %v3161, %v3157
      %v3163 = vlaneseq
      %v3164 = vshrl.u32 %v3163, 7
      %v3165 = vsub.s32 %v3147, %v3164
      %v3166 = vrot.slane %v2949, %v3165
      %v3167 = vsel %vm3152, %v3166, %v3162
      %v3168 = vlaneseq
      %v3169 = vshrl.u32 %v3168, 7
      %v3170 = vsub.s32 %v1771, %v3169
      %v3171 = vrot.slane %v2950, %v3170
      %v3172 = vlaneseq
      %v3173 = vshrl.u32 %v3172, 7
      %v3174 = vsub.s32 %v3140, %v3173
      %v3175 = vrot.slane %v2951, %v3174
      %v3176 = vsel %vm3145, %v3175, %v3171
      %v3177 = vlaneseq
      %v3178 = vshrl.u32 %v3177, 7
      %v3179 = vsub.s32 %v3147, %v3178
      %v3180 = vrot.slane %v2952, %v3179
      %v3181 = vsel %vm3152, %v3180, %v3176
      %v3182 = vlaneseq
      %v3183 = vshrl.u32 %v3182, 7
      %v3184 = vsub.s32 %v1771, %v3183
      %v3185 = vrot.slane %v2953, %v3184
      %v3186 = vlaneseq
      %v3187 = vshrl.u32 %v3186, 7
      %v3188 = vsub.s32 %v3140, %v3187
      %v3189 = vrot.slane %v2954, %v3188
      %v3190 = vsel %vm3145, %v3189, %v3185
      %v3191 = vlaneseq
      %v3192 = vshrl.u32 %v3191, 7
      %v3193 = vsub.s32 %v3147, %v3192
      %v3194 = vrot.slane %v2955, %v3193
      %v3195 = vsel %vm3152, %v3194, %v3190
      %v3196 = vlaneseq
      %v3197 = vshrl.u32 %v3196, 7
      %v3198 = vsub.s32 %v1771, %v3197
      %v3199 = vrot.slane %v2956, %v3198
      %v3200 = vlaneseq
      %v3201 = vshrl.u32 %v3200, 7
      %v3202 = vsub.s32 %v3140, %v3201
      %v3203 = vrot.slane %v2957, %v3202
      %v3204 = vsel %vm3145, %v3203, %v3199
      %v3205 = vlaneseq
      %v3206 = vshrl.u32 %v3205, 7
      %v3207 = vsub.s32 %v3147, %v3206
      %v3208 = vrot.slane %v2958, %v3207
      %v3209 = vsel %vm3152, %v3208, %v3204
      %v3210 = vlaneseq
      %v3211 = vshrl.u32 %v3210, 7
      %v3212 = vsub.s32 %v1771, %v3211
      %v3213 = vrot.slane %v2959, %v3212
      %v3214 = vlaneseq
      %v3215 = vshrl.u32 %v3214, 7
      %v3216 = vsub.s32 %v3140, %v3215
      %v3217 = vrot.slane %v2960, %v3216
      %v3218 = vsel %vm3145, %v3217, %v3213
      %v3219 = vlaneseq
      %v3220 = vshrl.u32 %v3219, 7
      %v3221 = vsub.s32 %v3147, %v3220
      %v3222 = vrot.slane %v2961, %v3221
      %v3223 = vsel %vm3152, %v3222, %v3218
      %v3224 = vlaneseq
      %v3225 = vshrl.u32 %v3224, 7
      %v3226 = vsub.s32 %v1771, %v3225
      %v3227 = vrot.slane %v2962, %v3226
      %v3228 = vlaneseq
      %v3229 = vshrl.u32 %v3228, 7
      %v3230 = vsub.s32 %v3140, %v3229
      %v3231 = vrot.slane %v2963, %v3230
      %v3232 = vsel %vm3145, %v3231, %v3227
      %v3233 = vlaneseq
      %v3234 = vshrl.u32 %v3233, 7
      %v3235 = vsub.s32 %v3147, %v3234
      %v3236 = vrot.slane %v2964, %v3235
      %v3237 = vsel %vm3152, %v3236, %v3232
      %v3238 = vlaneseq
      %v3239 = vshrl.u32 %v3238, 7
      %v3240 = vsub.s32 %v1771, %v3239
      %v3241 = vrot.slane %v2965, %v3240
      %v3242 = vlaneseq
      %v3243 = vshrl.u32 %v3242, 7
      %v3244 = vsub.s32 %v3140, %v3243
      %v3245 = vrot.slane %v2966, %v3244
      %v3246 = vsel %vm3145, %v3245, %v3241
      %v3247 = vlaneseq
      %v3248 = vshrl.u32 %v3247, 7
      %v3249 = vsub.s32 %v3147, %v3248
      %v3250 = vrot.slane %v2967, %v3249
      %v3251 = vsel %vm3152, %v3250, %v3246
      %v3252 = vlaneseq
      %v3253 = vshrl.u32 %v3252, 7
      %v3254 = vsub.s32 %v1771, %v3253
      %v3255 = vrot.slane %v2968, %v3254
      %v3256 = vlaneseq
      %v3257 = vshrl.u32 %v3256, 7
      %v3258 = vsub.s32 %v3140, %v3257
      %v3259 = vrot.slane %v2969, %v3258
      %v3260 = vsel %vm3145, %v3259, %v3255
      %v3261 = vlaneseq
      %v3262 = vshrl.u32 %v3261, 7
      %v3263 = vsub.s32 %v3147, %v3262
      %v3264 = vrot.slane %v2970, %v3263
      %v3265 = vsel %vm3152, %v3264, %v3260
      %v3266 = vlaneseq
      %v3267 = vshrl.u32 %v3266, 7
      %v3268 = vsub.s32 %v1771, %v3267
      %v3269 = vrot.slane %v2971, %v3268
      %v3270 = vlaneseq
      %v3271 = vshrl.u32 %v3270, 7
      %v3272 = vsub.s32 %v3140, %v3271
      %v3273 = vrot.slane %v2972, %v3272
      %v3274 = vsel %vm3145, %v3273, %v3269
      %v3275 = vlaneseq
      %v3276 = vshrl.u32 %v3275, 7
      %v3277 = vsub.s32 %v3147, %v3276
      %v3278 = vrot.slane %v2973, %v3277
      %v3279 = vsel %vm3152, %v3278, %v3274
      %v3280 = vlaneseq
      %v3281 = vshrl.u32 %v3280, 7
      %v3282 = vsub.s32 %v1771, %v3281
      %v3283 = vrot.slane %v2974, %v3282
      %v3284 = vlaneseq
      %v3285 = vshrl.u32 %v3284, 7
      %v3286 = vsub.s32 %v3140, %v3285
      %v3287 = vrot.slane %v2975, %v3286
      %v3288 = vsel %vm3145, %v3287, %v3283
      %v3289 = vlaneseq
      %v3290 = vshrl.u32 %v3289, 7
      %v3291 = vsub.s32 %v3147, %v3290
      %v3292 = vrot.slane %v2976, %v3291
      %v3293 = vsel %vm3152, %v3292, %v3288
      %v3294 = vlaneseq
      %v3295 = vshrl.u32 %v3294, 7
      %v3296 = vsub.s32 %v1771, %v3295
      %v3297 = vrot.slane %v2977, %v3296
      %v3298 = vlaneseq
      %v3299 = vshrl.u32 %v3298, 7
      %v3300 = vsub.s32 %v3140, %v3299
      %v3301 = vrot.slane %v2978, %v3300
      %v3302 = vsel %vm3145, %v3301, %v3297
      %v3303 = vlaneseq
      %v3304 = vshrl.u32 %v3303, 7
      %v3305 = vsub.s32 %v3147, %v3304
      %v3306 = vrot.slane %v2979, %v3305
      %v3307 = vsel %vm3152, %v3306, %v3302
      %v3308 = vlaneseq
      %v3309 = vshrl.u32 %v3308, 7
      %v3310 = vsub.s32 %v1771, %v3309
      %v3311 = vrot.slane %v2980, %v3310
      %v3312 = vlaneseq
      %v3313 = vshrl.u32 %v3312, 7
      %v3314 = vsub.s32 %v3140, %v3313
      %v3315 = vrot.slane %v2981, %v3314
      %v3316 = vsel %vm3145, %v3315, %v3311
      %v3317 = vlaneseq
      %v3318 = vshrl.u32 %v3317, 7
      %v3319 = vsub.s32 %v3147, %v3318
      %v3320 = vrot.slane %v2982, %v3319
      %v3321 = vsel %vm3152, %v3320, %v3316
      %v3322 = vlaneseq
      %v3323 = vshrl.u32 %v3322, 7
      %v3324 = vsub.s32 %v1771, %v3323
      %v3325 = vrot.slane %v2983, %v3324
      %v3326 = vlaneseq
      %v3327 = vshrl.u32 %v3326, 7
      %v3328 = vsub.s32 %v3140, %v3327
      %v3329 = vrot.slane %v2984, %v3328
      %v3330 = vsel %vm3145, %v3329, %v3325
      %v3331 = vlaneseq
      %v3332 = vshrl.u32 %v3331, 7
      %v3333 = vsub.s32 %v3147, %v3332
      %v3334 = vrot.slane %v2985, %v3333
      %v3335 = vsel %vm3152, %v3334, %v3330
      %v3336 = vlaneseq
      %v3337 = vshrl.u32 %v3336, 7
      %v3338 = vsub.s32 %v1771, %v3337
      %v3339 = vrot.slane %v2986, %v3338
      %v3340 = vlaneseq
      %v3341 = vshrl.u32 %v3340, 7
      %v3342 = vsub.s32 %v3140, %v3341
      %v3343 = vrot.slane %v2987, %v3342
      %v3344 = vsel %vm3145, %v3343, %v3339
      %v3345 = vlaneseq
      %v3346 = vshrl.u32 %v3345, 7
      %v3347 = vsub.s32 %v3147, %v3346
      %v3348 = vrot.slane %v2988, %v3347
      %v3349 = vsel %vm3152, %v3348, %v3344
      %v3350 = vlaneseq
      %v3351 = vshrl.u32 %v3350, 7
      %v3352 = vsub.s32 %v1771, %v3351
      %v3353 = vrot.slane %v2989, %v3352
      %v3354 = vlaneseq
      %v3355 = vshrl.u32 %v3354, 7
      %v3356 = vsub.s32 %v3140, %v3355
      %v3357 = vrot.slane %v2990, %v3356
      %v3358 = vsel %vm3145, %v3357, %v3353
      %v3359 = vlaneseq
      %v3360 = vshrl.u32 %v3359, 7
      %v3361 = vsub.s32 %v3147, %v3360
      %v3362 = vrot.slane %v2991, %v3361
      %v3363 = vsel %vm3152, %v3362, %v3358
      %v3364 = vlaneseq
      %v3365 = vshrl.u32 %v3364, 7
      %v3366 = vsub.s32 %v1771, %v3365
      %v3367 = vrot.slane %v2992, %v3366
      %v3368 = vlaneseq
      %v3369 = vshrl.u32 %v3368, 7
      %v3370 = vsub.s32 %v3140, %v3369
      %v3371 = vrot.slane %v2993, %v3370
      %v3372 = vsel %vm3145, %v3371, %v3367
      %v3373 = vlaneseq
      %v3374 = vshrl.u32 %v3373, 7
      %v3375 = vsub.s32 %v3147, %v3374
      %v3376 = vrot.slane %v2994, %v3375
      %v3377 = vsel %vm3152, %v3376, %v3372
      %v3378 = vlaneseq
      %v3379 = vshrl.u32 %v3378, 7
      %v3380 = vsub.s32 %v1771, %v3379
      %v3381 = vrot.slane %v2995, %v3380
      %v3382 = vlaneseq
      %v3383 = vshrl.u32 %v3382, 7
      %v3384 = vsub.s32 %v3140, %v3383
      %v3385 = vrot.slane %v2996, %v3384
      %v3386 = vsel %vm3145, %v3385, %v3381
      %v3387 = vlaneseq
      %v3388 = vshrl.u32 %v3387, 7
      %v3389 = vsub.s32 %v3147, %v3388
      %v3390 = vrot.slane %v2997, %v3389
      %v3391 = vsel %vm3152, %v3390, %v3386
      %v3392 = vlaneseq
      %v3393 = vshrl.u32 %v3392, 7
      %v3394 = vsub.s32 %v1771, %v3393
      %v3395 = vrot.slane %v2998, %v3394
      %v3396 = vlaneseq
      %v3397 = vshrl.u32 %v3396, 7
      %v3398 = vsub.s32 %v3140, %v3397
      %v3399 = vrot.slane %v2999, %v3398
      %v3400 = vsel %vm3145, %v3399, %v3395
      %v3401 = vlaneseq
      %v3402 = vshrl.u32 %v3401, 7
      %v3403 = vsub.s32 %v3147, %v3402
      %v3404 = vrot.slane %v3000, %v3403
      %v3405 = vsel %vm3152, %v3404, %v3400
      %v3406 = vlaneseq
      %v3407 = vshrl.u32 %v3406, 7
      %v3408 = vsub.s32 %v1771, %v3407
      %v3409 = vrot.slane %v3001, %v3408
      %v3410 = vlaneseq
      %v3411 = vshrl.u32 %v3410, 7
      %v3412 = vsub.s32 %v3140, %v3411
      %v3413 = vrot.slane %v3002, %v3412
      %v3414 = vsel %vm3145, %v3413, %v3409
      %v3415 = vlaneseq
      %v3416 = vshrl.u32 %v3415, 7
      %v3417 = vsub.s32 %v3147, %v3416
      %v3418 = vrot.slane %v3003, %v3417
      %v3419 = vsel %vm3152, %v3418, %v3414
      %v3420 = vlaneseq
      %v3421 = vshrl.u32 %v3420, 7
      %v3422 = vsub.s32 %v1771, %v3421
      %v3423 = vrot.slane %v3004, %v3422
      %v3424 = vlaneseq
      %v3425 = vshrl.u32 %v3424, 7
      %v3426 = vsub.s32 %v3140, %v3425
      %v3427 = vrot.slane %v3005, %v3426
      %v3428 = vsel %vm3145, %v3427, %v3423
      %v3429 = vlaneseq
      %v3430 = vshrl.u32 %v3429, 7
      %v3431 = vsub.s32 %v3147, %v3430
      %v3432 = vrot.slane %v3006, %v3431
      %v3433 = vsel %vm3152, %v3432, %v3428
      %v3434 = vlaneseq
      %v3435 = vshrl.u32 %v3434, 7
      %v3436 = vsub.s32 %v1771, %v3435
      %v3437 = vrot.slane %v3007, %v3436
      %v3438 = vlaneseq
      %v3439 = vshrl.u32 %v3438, 7
      %v3440 = vsub.s32 %v3140, %v3439
      %v3441 = vrot.slane %v3008, %v3440
      %v3442 = vsel %vm3145, %v3441, %v3437
      %v3443 = vlaneseq
      %v3444 = vshrl.u32 %v3443, 7
      %v3445 = vsub.s32 %v3147, %v3444
      %v3446 = vrot.slane %v3009, %v3445
      %v3447 = vsel %vm3152, %v3446, %v3442
      %v3448 = vlaneseq
      %v3449 = vshrl.u32 %v3448, 7
      %v3450 = vsub.s32 %v1771, %v3449
      %v3451 = vrot.slane %v3010, %v3450
      %v3452 = vlaneseq
      %v3453 = vshrl.u32 %v3452, 7
      %v3454 = vsub.s32 %v3140, %v3453
      %v3455 = vrot.slane %v3011, %v3454
      %v3456 = vsel %vm3145, %v3455, %v3451
      %v3457 = vlaneseq
      %v3458 = vshrl.u32 %v3457, 7
      %v3459 = vsub.s32 %v3147, %v3458
      %v3460 = vrot.slane %v3012, %v3459
      %v3461 = vsel %vm3152, %v3460, %v3456
      %v3462 = vlaneseq
      %v3463 = vshrl.u32 %v3462, 7
      %v3464 = vsub.s32 %v1771, %v3463
      %v3465 = vrot.slane %v3013, %v3464
      %v3466 = vlaneseq
      %v3467 = vshrl.u32 %v3466, 7
      %v3468 = vsub.s32 %v3140, %v3467
      %v3469 = vrot.slane %v3014, %v3468
      %v3470 = vsel %vm3145, %v3469, %v3465
      %v3471 = vlaneseq
      %v3472 = vshrl.u32 %v3471, 7
      %v3473 = vsub.s32 %v3147, %v3472
      %v3474 = vrot.slane %v3015, %v3473
      %v3475 = vsel %vm3152, %v3474, %v3470
      %v3476 = vlaneseq
      %v3477 = vshrl.u32 %v3476, 7
      %v3478 = vsub.s32 %v1771, %v3477
      %v3479 = vrot.slane %v3016, %v3478
      %v3480 = vlaneseq
      %v3481 = vshrl.u32 %v3480, 7
      %v3482 = vsub.s32 %v3140, %v3481
      %v3483 = vrot.slane %v3017, %v3482
      %v3484 = vsel %vm3145, %v3483, %v3479
      %v3485 = vlaneseq
      %v3486 = vshrl.u32 %v3485, 7
      %v3487 = vsub.s32 %v3147, %v3486
      %v3488 = vrot.slane %v3018, %v3487
      %v3489 = vsel %vm3152, %v3488, %v3484
      %v3490 = vlaneseq
      %v3491 = vshrl.u32 %v3490, 7
      %v3492 = vsub.s32 %v1771, %v3491
      %v3493 = vrot.slane %v3019, %v3492
      %v3494 = vlaneseq
      %v3495 = vshrl.u32 %v3494, 7
      %v3496 = vsub.s32 %v3140, %v3495
      %v3497 = vrot.slane %v3020, %v3496
      %v3498 = vsel %vm3145, %v3497, %v3493
      %v3499 = vlaneseq
      %v3500 = vshrl.u32 %v3499, 7
      %v3501 = vsub.s32 %v3147, %v3500
      %v3502 = vrot.slane %v3021, %v3501
      %v3503 = vsel %vm3152, %v3502, %v3498
      %v3504 = vlaneseq
      %v3505 = vshrl.u32 %v3504, 7
      %v3506 = vsub.s32 %v1771, %v3505
      %v3507 = vrot.slane %v3022, %v3506
      %v3508 = vlaneseq
      %v3509 = vshrl.u32 %v3508, 7
      %v3510 = vsub.s32 %v3140, %v3509
      %v3511 = vrot.slane %v3023, %v3510
      %v3512 = vsel %vm3145, %v3511, %v3507
      %v3513 = vlaneseq
      %v3514 = vshrl.u32 %v3513, 7
      %v3515 = vsub.s32 %v3147, %v3514
      %v3516 = vrot.slane %v3024, %v3515
      %v3517 = vsel %vm3152, %v3516, %v3512
      %v3518 = vlaneseq
      %v3519 = vshrl.u32 %v3518, 7
      %v3520 = vsub.s32 %v1771, %v3519
      %v3521 = vrot.slane %v3025, %v3520
      %v3522 = vlaneseq
      %v3523 = vshrl.u32 %v3522, 7
      %v3524 = vsub.s32 %v3140, %v3523
      %v3525 = vrot.slane %v3026, %v3524
      %v3526 = vsel %vm3145, %v3525, %v3521
      %v3527 = vlaneseq
      %v3528 = vshrl.u32 %v3527, 7
      %v3529 = vsub.s32 %v3147, %v3528
      %v3530 = vrot.slane %v3027, %v3529
      %v3531 = vsel %vm3152, %v3530, %v3526
      %v3532 = vlaneseq
      %v3533 = vshrl.u32 %v3532, 7
      %v3534 = vsub.s32 %v1771, %v3533
      %v3535 = vrot.slane %v3028, %v3534
      %v3536 = vlaneseq
      %v3537 = vshrl.u32 %v3536, 7
      %v3538 = vsub.s32 %v3140, %v3537
      %v3539 = vrot.slane %v3029, %v3538
      %v3540 = vsel %vm3145, %v3539, %v3535
      %v3541 = vlaneseq
      %v3542 = vshrl.u32 %v3541, 7
      %v3543 = vsub.s32 %v3147, %v3542
      %v3544 = vrot.slane %v3030, %v3543
      %v3545 = vsel %vm3152, %v3544, %v3540
      %v3546 = vlaneseq
      %v3547 = vshrl.u32 %v3546, 7
      %v3548 = vsub.s32 %v1771, %v3547
      %v3549 = vrot.slane %v3031, %v3548
      %v3550 = vlaneseq
      %v3551 = vshrl.u32 %v3550, 7
      %v3552 = vsub.s32 %v3140, %v3551
      %v3553 = vrot.slane %v3032, %v3552
      %v3554 = vsel %vm3145, %v3553, %v3549
      %v3555 = vlaneseq
      %v3556 = vshrl.u32 %v3555, 7
      %v3557 = vsub.s32 %v3147, %v3556
      %v3558 = vrot.slane %v3033, %v3557
      %v3559 = vsel %vm3152, %v3558, %v3554
      %v3560 = vlaneseq
      %v3561 = vshrl.u32 %v3560, 7
      %v3562 = vsub.s32 %v1771, %v3561
      %v3563 = vrot.slane %v3034, %v3562
      %v3564 = vlaneseq
      %v3565 = vshrl.u32 %v3564, 7
      %v3566 = vsub.s32 %v3140, %v3565
      %v3567 = vrot.slane %v3035, %v3566
      %v3568 = vsel %vm3145, %v3567, %v3563
      %v3569 = vlaneseq
      %v3570 = vshrl.u32 %v3569, 7
      %v3571 = vsub.s32 %v3147, %v3570
      %v3572 = vrot.slane %v3036, %v3571
      %v3573 = vsel %vm3152, %v3572, %v3568
      %v3574 = vlaneseq
      %v3575 = vshrl.u32 %v3574, 7
      %v3576 = vsub.s32 %v1771, %v3575
      %v3577 = vrot.slane %v3037, %v3576
      %v3578 = vlaneseq
      %v3579 = vshrl.u32 %v3578, 7
      %v3580 = vsub.s32 %v3140, %v3579
      %v3581 = vrot.slane %v3038, %v3580
      %v3582 = vsel %vm3145, %v3581, %v3577
      %v3583 = vlaneseq
      %v3584 = vshrl.u32 %v3583, 7
      %v3585 = vsub.s32 %v3147, %v3584
      %v3586 = vrot.slane %v3039, %v3585
      %v3587 = vsel %vm3152, %v3586, %v3582
      %v3588 = vsel %vm1038, %v3167, %v3153
      %v3589 = vsel %vm1040, %v3181, %v3588
      %v3590 = vsel %vm1042, %v3195, %v3589
      %v3591 = vsel %vm1044, %v3209, %v3590
      %v3592 = vsel %vm1046, %v3223, %v3591
      %v3593 = vsel %vm1048, %v3237, %v3592
      %v3594 = vsel %vm1050, %v3251, %v3593
      %v3595 = vsel %vm1038, %v3279, %v3265
      %v3596 = vsel %vm1040, %v3293, %v3595
      %v3597 = vsel %vm1042, %v3307, %v3596
      %v3598 = vsel %vm1044, %v3321, %v3597
      %v3599 = vsel %vm1046, %v3335, %v3598
      %v3600 = vsel %vm1048, %v3349, %v3599
      %v3601 = vsel %vm1050, %v3363, %v3600
      %v3602 = vsel %vm1038, %v3391, %v3377
      %v3603 = vsel %vm1040, %v3405, %v3602
      %v3604 = vsel %vm1042, %v3419, %v3603
      %v3605 = vsel %vm1044, %v3433, %v3604
      %v3606 = vsel %vm1046, %v3447, %v3605
      %v3607 = vsel %vm1048, %v3461, %v3606
      %v3608 = vsel %vm1050, %v3475, %v3607
      %v3609 = vsel %vm1038, %v3503, %v3489
      %v3610 = vsel %vm1040, %v3517, %v3609
      %v3611 = vsel %vm1042, %v3531, %v3610
      %v3612 = vsel %vm1044, %v3545, %v3611
      %v3613 = vsel %vm1046, %v3559, %v3612
      %v3614 = vsel %vm1048, %v3573, %v3613
      %v3615 = vsel %vm1050, %v3587, %v3614
      %v3620 = vmul.f32 %v2069, %v3594
      %v3621 = vmul.f32 %v2070, %v3601
      %v3622 = vmul.f32 %v2071, %v3608
      %v3623 = vmul.f32 %v2072, %v3615
      %v3624 = vlaneseq
      %v3625 = vshrl.u32 %v3624, 7
      %v3626 = vsub.s32 0, %v3625
      %v3627 = vrot.slane %v2458, %v3626
      %3629 = vbcast.lane.b32.xlu0 %v3627, 256
      %v3630 = vpop.permute.xlu0 %3629
      %v3631 = vlaneseq
      %v3632 = vshrl.u32 %v3631, 7
      %v3633 = vsub.s32 1, %v3632
      %v3634 = vrot.slane %v2458, %v3633
      %3636 = vbcast.lane.b32.xlu0 %v3634, 256
      %v3637 = vpop.permute.xlu0 %3636
      %v3638 = vlaneseq
      %v3639 = vshrl.u32 %v3638, 7
      %v3640 = vsub.s32 2, %v3639
      %v3641 = vrot.slane %v2458, %v3640
      %3643 = vbcast.lane.b32.xlu0 %v3641, 256
      %v3644 = vpop.permute.xlu0 %3643
      %v3645 = vlaneseq
      %v3646 = vshrl.u32 %v3645, 7
      %v3647 = vsub.s32 3, %v3646
      %v3648 = vrot.slane %v2458, %v3647
      %3650 = vbcast.lane.b32.xlu0 %v3648, 256
      %v3651 = vpop.permute.xlu0 %3650
      %v3652 = vlaneseq
      %v3653 = vshrl.u32 %v3652, 7
      %v3654 = vsub.s32 4, %v3653
      %v3655 = vrot.slane %v2458, %v3654
      %3657 = vbcast.lane.b32.xlu0 %v3655, 256
      %v3658 = vpop.permute.xlu0 %3657
      %v3659 = vlaneseq
      %v3660 = vshrl.u32 %v3659, 7
      %v3661 = vsub.s32 5, %v3660
      %v3662 = vrot.slane %v2458, %v3661
      %3664 = vbcast.lane.b32.xlu0 %v3662, 256
      %v3665 = vpop.permute.xlu0 %3664
      %v3666 = vlaneseq
      %v3667 = vshrl.u32 %v3666, 7
      %v3668 = vsub.s32 6, %v3667
      %v3669 = vrot.slane %v2458, %v3668
      %3671 = vbcast.lane.b32.xlu0 %v3669, 256
      %v3672 = vpop.permute.xlu0 %3671
      %v3673 = vlaneseq
      %v3674 = vshrl.u32 %v3673, 7
      %v3675 = vsub.s32 7, %v3674
      %v3676 = vrot.slane %v2458, %v3675
      %3678 = vbcast.lane.b32.xlu0 %v3676, 256
      %v3679 = vpop.permute.xlu0 %3678
      %v3680 = vlaneseq
      %v3681 = vshrl.u32 %v3680, 7
      %v3682 = vsub.s32 0, %v3681
      %v3683 = vrot.slane %v2459, %v3682
      %3685 = vbcast.lane.b32.xlu0 %v3683, 256
      %v3686 = vpop.permute.xlu0 %3685
      %v3687 = vlaneseq
      %v3688 = vshrl.u32 %v3687, 7
      %v3689 = vsub.s32 1, %v3688
      %v3690 = vrot.slane %v2459, %v3689
      %3692 = vbcast.lane.b32.xlu0 %v3690, 256
      %v3693 = vpop.permute.xlu0 %3692
      %v3694 = vlaneseq
      %v3695 = vshrl.u32 %v3694, 7
      %v3696 = vsub.s32 2, %v3695
      %v3697 = vrot.slane %v2459, %v3696
      %3699 = vbcast.lane.b32.xlu0 %v3697, 256
      %v3700 = vpop.permute.xlu0 %3699
      %v3701 = vlaneseq
      %v3702 = vshrl.u32 %v3701, 7
      %v3703 = vsub.s32 3, %v3702
      %v3704 = vrot.slane %v2459, %v3703
      %3706 = vbcast.lane.b32.xlu0 %v3704, 256
      %v3707 = vpop.permute.xlu0 %3706
      %v3708 = vlaneseq
      %v3709 = vshrl.u32 %v3708, 7
      %v3710 = vsub.s32 4, %v3709
      %v3711 = vrot.slane %v2459, %v3710
      %3713 = vbcast.lane.b32.xlu0 %v3711, 256
      %v3714 = vpop.permute.xlu0 %3713
      %v3715 = vlaneseq
      %v3716 = vshrl.u32 %v3715, 7
      %v3717 = vsub.s32 5, %v3716
      %v3718 = vrot.slane %v2459, %v3717
      %3720 = vbcast.lane.b32.xlu0 %v3718, 256
      %v3721 = vpop.permute.xlu0 %3720
      %v3722 = vlaneseq
      %v3723 = vshrl.u32 %v3722, 7
      %v3724 = vsub.s32 6, %v3723
      %v3725 = vrot.slane %v2459, %v3724
      %3727 = vbcast.lane.b32.xlu0 %v3725, 256
      %v3728 = vpop.permute.xlu0 %3727
      %v3729 = vlaneseq
      %v3730 = vshrl.u32 %v3729, 7
      %v3731 = vsub.s32 7, %v3730
      %v3732 = vrot.slane %v2459, %v3731
      %3734 = vbcast.lane.b32.xlu0 %v3732, 256
      %v3735 = vpop.permute.xlu0 %3734
      %v3736 = vlaneseq
      %v3737 = vshrl.u32 %v3736, 7
      %v3738 = vsub.s32 0, %v3737
      %v3739 = vrot.slane %v2460, %v3738
      %3741 = vbcast.lane.b32.xlu0 %v3739, 256
      %v3742 = vpop.permute.xlu0 %3741
      %v3743 = vlaneseq
      %v3744 = vshrl.u32 %v3743, 7
      %v3745 = vsub.s32 1, %v3744
      %v3746 = vrot.slane %v2460, %v3745
      %3748 = vbcast.lane.b32.xlu0 %v3746, 256
      %v3749 = vpop.permute.xlu0 %3748
      %v3750 = vlaneseq
      %v3751 = vshrl.u32 %v3750, 7
      %v3752 = vsub.s32 2, %v3751
      %v3753 = vrot.slane %v2460, %v3752
      %3755 = vbcast.lane.b32.xlu0 %v3753, 256
      %v3756 = vpop.permute.xlu0 %3755
      %v3757 = vlaneseq
      %v3758 = vshrl.u32 %v3757, 7
      %v3759 = vsub.s32 3, %v3758
      %v3760 = vrot.slane %v2460, %v3759
      %3762 = vbcast.lane.b32.xlu0 %v3760, 256
      %v3763 = vpop.permute.xlu0 %3762
      %v3764 = vlaneseq
      %v3765 = vshrl.u32 %v3764, 7
      %v3766 = vsub.s32 4, %v3765
      %v3767 = vrot.slane %v2460, %v3766
      %3769 = vbcast.lane.b32.xlu0 %v3767, 256
      %v3770 = vpop.permute.xlu0 %3769
      %v3771 = vlaneseq
      %v3772 = vshrl.u32 %v3771, 7
      %v3773 = vsub.s32 5, %v3772
      %v3774 = vrot.slane %v2460, %v3773
      %3776 = vbcast.lane.b32.xlu0 %v3774, 256
      %v3777 = vpop.permute.xlu0 %3776
      %v3778 = vlaneseq
      %v3779 = vshrl.u32 %v3778, 7
      %v3780 = vsub.s32 6, %v3779
      %v3781 = vrot.slane %v2460, %v3780
      %3783 = vbcast.lane.b32.xlu0 %v3781, 256
      %v3784 = vpop.permute.xlu0 %3783
      %v3785 = vlaneseq
      %v3786 = vshrl.u32 %v3785, 7
      %v3787 = vsub.s32 7, %v3786
      %v3788 = vrot.slane %v2460, %v3787
      %3790 = vbcast.lane.b32.xlu0 %v3788, 256
      %v3791 = vpop.permute.xlu0 %3790
      %v3792 = vlaneseq
      %v3793 = vshrl.u32 %v3792, 7
      %v3794 = vsub.s32 0, %v3793
      %v3795 = vrot.slane %v2461, %v3794
      %3797 = vbcast.lane.b32.xlu0 %v3795, 256
      %v3798 = vpop.permute.xlu0 %3797
      %v3799 = vlaneseq
      %v3800 = vshrl.u32 %v3799, 7
      %v3801 = vsub.s32 1, %v3800
      %v3802 = vrot.slane %v2461, %v3801
      %3804 = vbcast.lane.b32.xlu0 %v3802, 256
      %v3805 = vpop.permute.xlu0 %3804
      %v3806 = vlaneseq
      %v3807 = vshrl.u32 %v3806, 7
      %v3808 = vsub.s32 2, %v3807
      %v3809 = vrot.slane %v2461, %v3808
      %3811 = vbcast.lane.b32.xlu0 %v3809, 256
      %v3812 = vpop.permute.xlu0 %3811
      %v3813 = vlaneseq
      %v3814 = vshrl.u32 %v3813, 7
      %v3815 = vsub.s32 3, %v3814
      %v3816 = vrot.slane %v2461, %v3815
      %3818 = vbcast.lane.b32.xlu0 %v3816, 256
      %v3819 = vpop.permute.xlu0 %3818
      %v3820 = vlaneseq
      %v3821 = vshrl.u32 %v3820, 7
      %v3822 = vsub.s32 4, %v3821
      %v3823 = vrot.slane %v2461, %v3822
      %3825 = vbcast.lane.b32.xlu0 %v3823, 256
      %v3826 = vpop.permute.xlu0 %3825
      %v3827 = vlaneseq
      %v3828 = vshrl.u32 %v3827, 7
      %v3829 = vsub.s32 5, %v3828
      %v3830 = vrot.slane %v2461, %v3829
      %3832 = vbcast.lane.b32.xlu0 %v3830, 256
      %v3833 = vpop.permute.xlu0 %3832
      %v3834 = vlaneseq
      %v3835 = vshrl.u32 %v3834, 7
      %v3836 = vsub.s32 6, %v3835
      %v3837 = vrot.slane %v2461, %v3836
      %3839 = vbcast.lane.b32.xlu0 %v3837, 256
      %v3840 = vpop.permute.xlu0 %3839
      %v3841 = vlaneseq
      %v3842 = vshrl.u32 %v3841, 7
      %v3843 = vsub.s32 7, %v3842
      %v3844 = vrot.slane %v2461, %v3843
      %3846 = vbcast.lane.b32.xlu0 %v3844, 256
      %v3847 = vpop.permute.xlu0 %3846
      %v3848 = vmul.f32 %v1937, %v3630
      %v3849 = vmul.f32 %v1938, %v3637
      %v3850 = vmul.f32 %v1939, %v3644
      %v3851 = vmul.f32 %v1940, %v3651
      %v3852 = vmul.f32 %v1941, %v3658
      %v3853 = vmul.f32 %v1942, %v3665
      %v3854 = vmul.f32 %v1943, %v3672
      %v3855 = vmul.f32 %v1944, %v3679
      %v3856 = vmul.f32 %v1945, %v3686
      %v3857 = vmul.f32 %v1946, %v3693
      %v3858 = vmul.f32 %v1947, %v3700
      %v3859 = vmul.f32 %v1948, %v3707
      %v3860 = vmul.f32 %v1949, %v3714
      %v3861 = vmul.f32 %v1950, %v3721
      %v3862 = vmul.f32 %v1951, %v3728
      %v3863 = vmul.f32 %v1952, %v3735
      %v3864 = vmul.f32 %v1953, %v3742
      %v3865 = vmul.f32 %v1954, %v3749
      %v3866 = vmul.f32 %v1955, %v3756
      %v3867 = vmul.f32 %v1956, %v3763
      %v3868 = vmul.f32 %v1957, %v3770
      %v3869 = vmul.f32 %v1958, %v3777
      %v3870 = vmul.f32 %v1959, %v3784
      %v3871 = vmul.f32 %v1960, %v3791
      %v3872 = vmul.f32 %v1961, %v3798
      %v3873 = vmul.f32 %v1962, %v3805
      %v3874 = vmul.f32 %v1963, %v3812
      %v3875 = vmul.f32 %v1964, %v3819
      %v3876 = vmul.f32 %v1965, %v3826
      %v3877 = vmul.f32 %v1966, %v3833
      %v3878 = vmul.f32 %v1967, %v3840
      %v3879 = vmul.f32 %v1968, %v3847
      %v3880 = vsel %vm2105, %v3848, 0.0
      %v3881 = vrot.slane %v3880, 4
      %v3882 = vadd.f32 %v3880, %v3881
      %v3883 = vrot.slane %v3882, 2
      %v3884 = vadd.f32 %v3882, %v3883
      %v3885 = vrot.slane %v3884, 1
      %v3886 = vadd.f32 %v3884, %v3885
      %v3887 = vsel %vm2105, %v3849, 0.0
      %v3888 = vrot.slane %v3887, 4
      %v3889 = vadd.f32 %v3887, %v3888
      %v3890 = vrot.slane %v3889, 2
      %v3891 = vadd.f32 %v3889, %v3890
      %v3892 = vrot.slane %v3891, 1
      %v3893 = vadd.f32 %v3891, %v3892
      %v3894 = vsel %vm2105, %v3850, 0.0
      %v3895 = vrot.slane %v3894, 4
      %v3896 = vadd.f32 %v3894, %v3895
      %v3897 = vrot.slane %v3896, 2
      %v3898 = vadd.f32 %v3896, %v3897
      %v3899 = vrot.slane %v3898, 1
      %v3900 = vadd.f32 %v3898, %v3899
      %v3901 = vsel %vm2105, %v3851, 0.0
      %v3902 = vrot.slane %v3901, 4
      %v3903 = vadd.f32 %v3901, %v3902
      %v3904 = vrot.slane %v3903, 2
      %v3905 = vadd.f32 %v3903, %v3904
      %v3906 = vrot.slane %v3905, 1
      %v3907 = vadd.f32 %v3905, %v3906
      %v3908 = vsel %vm2105, %v3852, 0.0
      %v3909 = vrot.slane %v3908, 4
      %v3910 = vadd.f32 %v3908, %v3909
      %v3911 = vrot.slane %v3910, 2
      %v3912 = vadd.f32 %v3910, %v3911
      %v3913 = vrot.slane %v3912, 1
      %v3914 = vadd.f32 %v3912, %v3913
      %v3915 = vsel %vm2105, %v3853, 0.0
      %v3916 = vrot.slane %v3915, 4
      %v3917 = vadd.f32 %v3915, %v3916
      %v3918 = vrot.slane %v3917, 2
      %v3919 = vadd.f32 %v3917, %v3918
      %v3920 = vrot.slane %v3919, 1
      %v3921 = vadd.f32 %v3919, %v3920
      %v3922 = vsel %vm2105, %v3854, 0.0
      %v3923 = vrot.slane %v3922, 4
      %v3924 = vadd.f32 %v3922, %v3923
      %v3925 = vrot.slane %v3924, 2
      %v3926 = vadd.f32 %v3924, %v3925
      %v3927 = vrot.slane %v3926, 1
      %v3928 = vadd.f32 %v3926, %v3927
      %v3929 = vsel %vm2105, %v3855, 0.0
      %v3930 = vrot.slane %v3929, 4
      %v3931 = vadd.f32 %v3929, %v3930
      %v3932 = vrot.slane %v3931, 2
      %v3933 = vadd.f32 %v3931, %v3932
      %v3934 = vrot.slane %v3933, 1
      %v3935 = vadd.f32 %v3933, %v3934
      %v3936 = vsel %vm2105, %v3856, 0.0
      %v3937 = vrot.slane %v3936, 4
      %v3938 = vadd.f32 %v3936, %v3937
      %v3939 = vrot.slane %v3938, 2
      %v3940 = vadd.f32 %v3938, %v3939
      %v3941 = vrot.slane %v3940, 1
      %v3942 = vadd.f32 %v3940, %v3941
      %v3943 = vsel %vm2105, %v3857, 0.0
      %v3944 = vrot.slane %v3943, 4
      %v3945 = vadd.f32 %v3943, %v3944
      %v3946 = vrot.slane %v3945, 2
      %v3947 = vadd.f32 %v3945, %v3946
      %v3948 = vrot.slane %v3947, 1
      %v3949 = vadd.f32 %v3947, %v3948
      %v3950 = vsel %vm2105, %v3858, 0.0
      %v3951 = vrot.slane %v3950, 4
      %v3952 = vadd.f32 %v3950, %v3951
      %v3953 = vrot.slane %v3952, 2
      %v3954 = vadd.f32 %v3952, %v3953
      %v3955 = vrot.slane %v3954, 1
      %v3956 = vadd.f32 %v3954, %v3955
      %v3957 = vsel %vm2105, %v3859, 0.0
      %v3958 = vrot.slane %v3957, 4
      %v3959 = vadd.f32 %v3957, %v3958
      %v3960 = vrot.slane %v3959, 2
      %v3961 = vadd.f32 %v3959, %v3960
      %v3962 = vrot.slane %v3961, 1
      %v3963 = vadd.f32 %v3961, %v3962
      %v3964 = vsel %vm2105, %v3860, 0.0
      %v3965 = vrot.slane %v3964, 4
      %v3966 = vadd.f32 %v3964, %v3965
      %v3967 = vrot.slane %v3966, 2
      %v3968 = vadd.f32 %v3966, %v3967
      %v3969 = vrot.slane %v3968, 1
      %v3970 = vadd.f32 %v3968, %v3969
      %v3971 = vsel %vm2105, %v3861, 0.0
      %v3972 = vrot.slane %v3971, 4
      %v3973 = vadd.f32 %v3971, %v3972
      %v3974 = vrot.slane %v3973, 2
      %v3975 = vadd.f32 %v3973, %v3974
      %v3976 = vrot.slane %v3975, 1
      %v3977 = vadd.f32 %v3975, %v3976
      %v3978 = vsel %vm2105, %v3862, 0.0
      %v3979 = vrot.slane %v3978, 4
      %v3980 = vadd.f32 %v3978, %v3979
      %v3981 = vrot.slane %v3980, 2
      %v3982 = vadd.f32 %v3980, %v3981
      %v3983 = vrot.slane %v3982, 1
      %v3984 = vadd.f32 %v3982, %v3983
      %v3985 = vsel %vm2105, %v3863, 0.0
      %v3986 = vrot.slane %v3985, 4
      %v3987 = vadd.f32 %v3985, %v3986
      %v3988 = vrot.slane %v3987, 2
      %v3989 = vadd.f32 %v3987, %v3988
      %v3990 = vrot.slane %v3989, 1
      %v3991 = vadd.f32 %v3989, %v3990
      %v3992 = vsel %vm2105, %v3864, 0.0
      %v3993 = vrot.slane %v3992, 4
      %v3994 = vadd.f32 %v3992, %v3993
      %v3995 = vrot.slane %v3994, 2
      %v3996 = vadd.f32 %v3994, %v3995
      %v3997 = vrot.slane %v3996, 1
      %v3998 = vadd.f32 %v3996, %v3997
      %v3999 = vsel %vm2105, %v3865, 0.0
      %v4000 = vrot.slane %v3999, 4
      %v4001 = vadd.f32 %v3999, %v4000
      %v4002 = vrot.slane %v4001, 2
      %v4003 = vadd.f32 %v4001, %v4002
      %v4004 = vrot.slane %v4003, 1
      %v4005 = vadd.f32 %v4003, %v4004
      %v4006 = vsel %vm2105, %v3866, 0.0
      %v4007 = vrot.slane %v4006, 4
      %v4008 = vadd.f32 %v4006, %v4007
      %v4009 = vrot.slane %v4008, 2
      %v4010 = vadd.f32 %v4008, %v4009
      %v4011 = vrot.slane %v4010, 1
      %v4012 = vadd.f32 %v4010, %v4011
      %v4013 = vsel %vm2105, %v3867, 0.0
      %v4014 = vrot.slane %v4013, 4
      %v4015 = vadd.f32 %v4013, %v4014
      %v4016 = vrot.slane %v4015, 2
      %v4017 = vadd.f32 %v4015, %v4016
      %v4018 = vrot.slane %v4017, 1
      %v4019 = vadd.f32 %v4017, %v4018
      %v4020 = vsel %vm2105, %v3868, 0.0
      %v4021 = vrot.slane %v4020, 4
      %v4022 = vadd.f32 %v4020, %v4021
      %v4023 = vrot.slane %v4022, 2
      %v4024 = vadd.f32 %v4022, %v4023
      %v4025 = vrot.slane %v4024, 1
      %v4026 = vadd.f32 %v4024, %v4025
      %v4027 = vsel %vm2105, %v3869, 0.0
      %v4028 = vrot.slane %v4027, 4
      %v4029 = vadd.f32 %v4027, %v4028
      %v4030 = vrot.slane %v4029, 2
      %v4031 = vadd.f32 %v4029, %v4030
      %v4032 = vrot.slane %v4031, 1
      %v4033 = vadd.f32 %v4031, %v4032
      %v4034 = vsel %vm2105, %v3870, 0.0
      %v4035 = vrot.slane %v4034, 4
      %v4036 = vadd.f32 %v4034, %v4035
      %v4037 = vrot.slane %v4036, 2
      %v4038 = vadd.f32 %v4036, %v4037
      %v4039 = vrot.slane %v4038, 1
      %v4040 = vadd.f32 %v4038, %v4039
      %v4041 = vsel %vm2105, %v3871, 0.0
      %v4042 = vrot.slane %v4041, 4
      %v4043 = vadd.f32 %v4041, %v4042
      %v4044 = vrot.slane %v4043, 2
      %v4045 = vadd.f32 %v4043, %v4044
      %v4046 = vrot.slane %v4045, 1
      %v4047 = vadd.f32 %v4045, %v4046
      %v4048 = vsel %vm2105, %v3872, 0.0
      %v4049 = vrot.slane %v4048, 4
      %v4050 = vadd.f32 %v4048, %v4049
      %v4051 = vrot.slane %v4050, 2
      %v4052 = vadd.f32 %v4050, %v4051
      %v4053 = vrot.slane %v4052, 1
      %v4054 = vadd.f32 %v4052, %v4053
      %v4055 = vsel %vm2105, %v3873, 0.0
      %v4056 = vrot.slane %v4055, 4
      %v4057 = vadd.f32 %v4055, %v4056
      %v4058 = vrot.slane %v4057, 2
      %v4059 = vadd.f32 %v4057, %v4058
      %v4060 = vrot.slane %v4059, 1
      %v4061 = vadd.f32 %v4059, %v4060
      %v4062 = vsel %vm2105, %v3874, 0.0
      %v4063 = vrot.slane %v4062, 4
      %v4064 = vadd.f32 %v4062, %v4063
      %v4065 = vrot.slane %v4064, 2
      %v4066 = vadd.f32 %v4064, %v4065
      %v4067 = vrot.slane %v4066, 1
      %v4068 = vadd.f32 %v4066, %v4067
      %v4069 = vsel %vm2105, %v3875, 0.0
      %v4070 = vrot.slane %v4069, 4
      %v4071 = vadd.f32 %v4069, %v4070
      %v4072 = vrot.slane %v4071, 2
      %v4073 = vadd.f32 %v4071, %v4072
      %v4074 = vrot.slane %v4073, 1
      %v4075 = vadd.f32 %v4073, %v4074
      %v4076 = vsel %vm2105, %v3876, 0.0
      %v4077 = vrot.slane %v4076, 4
      %v4078 = vadd.f32 %v4076, %v4077
      %v4079 = vrot.slane %v4078, 2
      %v4080 = vadd.f32 %v4078, %v4079
      %v4081 = vrot.slane %v4080, 1
      %v4082 = vadd.f32 %v4080, %v4081
      %v4083 = vsel %vm2105, %v3877, 0.0
      %v4084 = vrot.slane %v4083, 4
      %v4085 = vadd.f32 %v4083, %v4084
      %v4086 = vrot.slane %v4085, 2
      %v4087 = vadd.f32 %v4085, %v4086
      %v4088 = vrot.slane %v4087, 1
      %v4089 = vadd.f32 %v4087, %v4088
      %v4090 = vsel %vm2105, %v3878, 0.0
      %v4091 = vrot.slane %v4090, 4
      %v4092 = vadd.f32 %v4090, %v4091
      %v4093 = vrot.slane %v4092, 2
      %v4094 = vadd.f32 %v4092, %v4093
      %v4095 = vrot.slane %v4094, 1
      %v4096 = vadd.f32 %v4094, %v4095
      %v4097 = vsel %vm2105, %v3879, 0.0
      %v4098 = vrot.slane %v4097, 4
      %v4099 = vadd.f32 %v4097, %v4098
      %v4100 = vrot.slane %v4099, 2
      %v4101 = vadd.f32 %v4099, %v4100
      %v4102 = vrot.slane %v4101, 1
      %v4103 = vadd.f32 %v4101, %v4102
      %v4104 = vmul.f32 %v1973, %v3886
      %v4105 = vmul.f32 %v1974, %v3886
      %v4106 = vmul.f32 %v1975, %v3886
      %v4107 = vmul.f32 %v1976, %v3893
      %v4108 = vmul.f32 %v1977, %v3893
      %v4109 = vmul.f32 %v1978, %v3893
      %v4110 = vmul.f32 %v1979, %v3900
      %v4111 = vmul.f32 %v1980, %v3900
      %v4112 = vmul.f32 %v1981, %v3900
      %v4113 = vmul.f32 %v1982, %v3907
      %v4114 = vmul.f32 %v1983, %v3907
      %v4115 = vmul.f32 %v1984, %v3907
      %v4116 = vmul.f32 %v1985, %v3914
      %v4117 = vmul.f32 %v1986, %v3914
      %v4118 = vmul.f32 %v1987, %v3914
      %v4119 = vmul.f32 %v1988, %v3921
      %v4120 = vmul.f32 %v1989, %v3921
      %v4121 = vmul.f32 %v1990, %v3921
      %v4122 = vmul.f32 %v1991, %v3928
      %v4123 = vmul.f32 %v1992, %v3928
      %v4124 = vmul.f32 %v1993, %v3928
      %v4125 = vmul.f32 %v1994, %v3935
      %v4126 = vmul.f32 %v1995, %v3935
      %v4127 = vmul.f32 %v1996, %v3935
      %v4128 = vmul.f32 %v1997, %v3942
      %v4129 = vmul.f32 %v1998, %v3942
      %v4130 = vmul.f32 %v1999, %v3942
      %v4131 = vmul.f32 %v2000, %v3949
      %v4132 = vmul.f32 %v2001, %v3949
      %v4133 = vmul.f32 %v2002, %v3949
      %v4134 = vmul.f32 %v2003, %v3956
      %v4135 = vmul.f32 %v2004, %v3956
      %v4136 = vmul.f32 %v2005, %v3956
      %v4137 = vmul.f32 %v2006, %v3963
      %v4138 = vmul.f32 %v2007, %v3963
      %v4139 = vmul.f32 %v2008, %v3963
      %v4140 = vmul.f32 %v2009, %v3970
      %v4141 = vmul.f32 %v2010, %v3970
      %v4142 = vmul.f32 %v2011, %v3970
      %v4143 = vmul.f32 %v2012, %v3977
      %v4144 = vmul.f32 %v2013, %v3977
      %v4145 = vmul.f32 %v2014, %v3977
      %v4146 = vmul.f32 %v2015, %v3984
      %v4147 = vmul.f32 %v2016, %v3984
      %v4148 = vmul.f32 %v2017, %v3984
      %v4149 = vmul.f32 %v2018, %v3991
      %v4150 = vmul.f32 %v2019, %v3991
      %v4151 = vmul.f32 %v2020, %v3991
      %v4152 = vmul.f32 %v2021, %v3998
      %v4153 = vmul.f32 %v2022, %v3998
      %v4154 = vmul.f32 %v2023, %v3998
      %v4155 = vmul.f32 %v2024, %v4005
      %v4156 = vmul.f32 %v2025, %v4005
      %v4157 = vmul.f32 %v2026, %v4005
      %v4158 = vmul.f32 %v2027, %v4012
      %v4159 = vmul.f32 %v2028, %v4012
      %v4160 = vmul.f32 %v2029, %v4012
      %v4161 = vmul.f32 %v2030, %v4019
      %v4162 = vmul.f32 %v2031, %v4019
      %v4163 = vmul.f32 %v2032, %v4019
      %v4164 = vmul.f32 %v2033, %v4026
      %v4165 = vmul.f32 %v2034, %v4026
      %v4166 = vmul.f32 %v2035, %v4026
      %v4167 = vmul.f32 %v2036, %v4033
      %v4168 = vmul.f32 %v2037, %v4033
      %v4169 = vmul.f32 %v2038, %v4033
      %v4170 = vmul.f32 %v2039, %v4040
      %v4171 = vmul.f32 %v2040, %v4040
      %v4172 = vmul.f32 %v2041, %v4040
      %v4173 = vmul.f32 %v2042, %v4047
      %v4174 = vmul.f32 %v2043, %v4047
      %v4175 = vmul.f32 %v2044, %v4047
      %v4176 = vmul.f32 %v2045, %v4054
      %v4177 = vmul.f32 %v2046, %v4054
      %v4178 = vmul.f32 %v2047, %v4054
      %v4179 = vmul.f32 %v2048, %v4061
      %v4180 = vmul.f32 %v2049, %v4061
      %v4181 = vmul.f32 %v2050, %v4061
      %v4182 = vmul.f32 %v2051, %v4068
      %v4183 = vmul.f32 %v2052, %v4068
      %v4184 = vmul.f32 %v2053, %v4068
      %v4185 = vmul.f32 %v2054, %v4075
      %v4186 = vmul.f32 %v2055, %v4075
      %v4187 = vmul.f32 %v2056, %v4075
      %v4188 = vmul.f32 %v2057, %v4082
      %v4189 = vmul.f32 %v2058, %v4082
      %v4190 = vmul.f32 %v2059, %v4082
      %v4191 = vmul.f32 %v2060, %v4089
      %v4192 = vmul.f32 %v2061, %v4089
      %v4193 = vmul.f32 %v2062, %v4089
      %v4194 = vmul.f32 %v2063, %v4096
      %v4195 = vmul.f32 %v2064, %v4096
      %v4196 = vmul.f32 %v2065, %v4096
      %v4197 = vmul.f32 %v2066, %v4103
      %v4198 = vmul.f32 %v2067, %v4103
      %v4199 = vmul.f32 %v2068, %v4103
      %v4200 = vsel %vm2558, %v4104, 0.0
      %4201 = vadd.xlane.f32.xlu0 %v4200
      %v4202 = vpop.xlane.xlu0 %4201
      %v4203 = vsel %vm2558, %v4105, 0.0
      %4204 = vadd.xlane.f32.xlu0 %v4203
      %v4205 = vpop.xlane.xlu0 %4204
      %v4206 = vsel %vm2565, %v4106, 0.0
      %4207 = vadd.xlane.f32.xlu0 %v4206
      %v4208 = vpop.xlane.xlu0 %4207
      %v4209 = vsel %vm2558, %v4107, 0.0
      %4210 = vadd.xlane.f32.xlu0 %v4209
      %v4211 = vpop.xlane.xlu0 %4210
      %v4212 = vsel %vm2558, %v4108, 0.0
      %4213 = vadd.xlane.f32.xlu0 %v4212
      %v4214 = vpop.xlane.xlu0 %4213
      %v4215 = vsel %vm2565, %v4109, 0.0
      %4216 = vadd.xlane.f32.xlu0 %v4215
      %v4217 = vpop.xlane.xlu0 %4216
      %v4218 = vsel %vm2558, %v4110, 0.0
      %4219 = vadd.xlane.f32.xlu0 %v4218
      %v4220 = vpop.xlane.xlu0 %4219
      %v4221 = vsel %vm2558, %v4111, 0.0
      %4222 = vadd.xlane.f32.xlu0 %v4221
      %v4223 = vpop.xlane.xlu0 %4222
      %v4224 = vsel %vm2565, %v4112, 0.0
      %4225 = vadd.xlane.f32.xlu0 %v4224
      %v4226 = vpop.xlane.xlu0 %4225
      %v4227 = vsel %vm2558, %v4113, 0.0
      %4228 = vadd.xlane.f32.xlu0 %v4227
      %v4229 = vpop.xlane.xlu0 %4228
      %v4230 = vsel %vm2558, %v4114, 0.0
      %4231 = vadd.xlane.f32.xlu0 %v4230
      %v4232 = vpop.xlane.xlu0 %4231
      %v4233 = vsel %vm2565, %v4115, 0.0
      %4234 = vadd.xlane.f32.xlu0 %v4233
      %v4235 = vpop.xlane.xlu0 %4234
      %v4236 = vsel %vm2558, %v4116, 0.0
      %4237 = vadd.xlane.f32.xlu0 %v4236
      %v4238 = vpop.xlane.xlu0 %4237
      %v4239 = vsel %vm2558, %v4117, 0.0
      %4240 = vadd.xlane.f32.xlu0 %v4239
      %v4241 = vpop.xlane.xlu0 %4240
      %v4242 = vsel %vm2565, %v4118, 0.0
      %4243 = vadd.xlane.f32.xlu0 %v4242
      %v4244 = vpop.xlane.xlu0 %4243
      %v4245 = vsel %vm2558, %v4119, 0.0
      %4246 = vadd.xlane.f32.xlu0 %v4245
      %v4247 = vpop.xlane.xlu0 %4246
      %v4248 = vsel %vm2558, %v4120, 0.0
      %4249 = vadd.xlane.f32.xlu0 %v4248
      %v4250 = vpop.xlane.xlu0 %4249
      %v4251 = vsel %vm2565, %v4121, 0.0
      %4252 = vadd.xlane.f32.xlu0 %v4251
      %v4253 = vpop.xlane.xlu0 %4252
      %v4254 = vsel %vm2558, %v4122, 0.0
      %4255 = vadd.xlane.f32.xlu0 %v4254
      %v4256 = vpop.xlane.xlu0 %4255
      %v4257 = vsel %vm2558, %v4123, 0.0
      %4258 = vadd.xlane.f32.xlu0 %v4257
      %v4259 = vpop.xlane.xlu0 %4258
      %v4260 = vsel %vm2565, %v4124, 0.0
      %4261 = vadd.xlane.f32.xlu0 %v4260
      %v4262 = vpop.xlane.xlu0 %4261
      %v4263 = vsel %vm2558, %v4125, 0.0
      %4264 = vadd.xlane.f32.xlu0 %v4263
      %v4265 = vpop.xlane.xlu0 %4264
      %v4266 = vsel %vm2558, %v4126, 0.0
      %4267 = vadd.xlane.f32.xlu0 %v4266
      %v4268 = vpop.xlane.xlu0 %4267
      %v4269 = vsel %vm2565, %v4127, 0.0
      %4270 = vadd.xlane.f32.xlu0 %v4269
      %v4271 = vpop.xlane.xlu0 %4270
      %v4272 = vsel %vm2558, %v4128, 0.0
      %4273 = vadd.xlane.f32.xlu0 %v4272
      %v4274 = vpop.xlane.xlu0 %4273
      %v4275 = vsel %vm2558, %v4129, 0.0
      %4276 = vadd.xlane.f32.xlu0 %v4275
      %v4277 = vpop.xlane.xlu0 %4276
      %v4278 = vsel %vm2565, %v4130, 0.0
      %4279 = vadd.xlane.f32.xlu0 %v4278
      %v4280 = vpop.xlane.xlu0 %4279
      %v4281 = vsel %vm2558, %v4131, 0.0
      %4282 = vadd.xlane.f32.xlu0 %v4281
      %v4283 = vpop.xlane.xlu0 %4282
      %v4284 = vsel %vm2558, %v4132, 0.0
      %4285 = vadd.xlane.f32.xlu0 %v4284
      %v4286 = vpop.xlane.xlu0 %4285
      %v4287 = vsel %vm2565, %v4133, 0.0
      %4288 = vadd.xlane.f32.xlu0 %v4287
      %v4289 = vpop.xlane.xlu0 %4288
      %v4290 = vsel %vm2558, %v4134, 0.0
      %4291 = vadd.xlane.f32.xlu0 %v4290
      %v4292 = vpop.xlane.xlu0 %4291
      %v4293 = vsel %vm2558, %v4135, 0.0
      %4294 = vadd.xlane.f32.xlu0 %v4293
      %v4295 = vpop.xlane.xlu0 %4294
      %v4296 = vsel %vm2565, %v4136, 0.0
      %4297 = vadd.xlane.f32.xlu0 %v4296
      %v4298 = vpop.xlane.xlu0 %4297
      %v4299 = vsel %vm2558, %v4137, 0.0
      %4300 = vadd.xlane.f32.xlu0 %v4299
      %v4301 = vpop.xlane.xlu0 %4300
      %v4302 = vsel %vm2558, %v4138, 0.0
      %4303 = vadd.xlane.f32.xlu0 %v4302
      %v4304 = vpop.xlane.xlu0 %4303
      %v4305 = vsel %vm2565, %v4139, 0.0
      %4306 = vadd.xlane.f32.xlu0 %v4305
      %v4307 = vpop.xlane.xlu0 %4306
      %v4308 = vsel %vm2558, %v4140, 0.0
      %4309 = vadd.xlane.f32.xlu0 %v4308
      %v4310 = vpop.xlane.xlu0 %4309
      %v4311 = vsel %vm2558, %v4141, 0.0
      %4312 = vadd.xlane.f32.xlu0 %v4311
      %v4313 = vpop.xlane.xlu0 %4312
      %v4314 = vsel %vm2565, %v4142, 0.0
      %4315 = vadd.xlane.f32.xlu0 %v4314
      %v4316 = vpop.xlane.xlu0 %4315
      %v4317 = vsel %vm2558, %v4143, 0.0
      %4318 = vadd.xlane.f32.xlu0 %v4317
      %v4319 = vpop.xlane.xlu0 %4318
      %v4320 = vsel %vm2558, %v4144, 0.0
      %4321 = vadd.xlane.f32.xlu0 %v4320
      %v4322 = vpop.xlane.xlu0 %4321
      %v4323 = vsel %vm2565, %v4145, 0.0
      %4324 = vadd.xlane.f32.xlu0 %v4323
      %v4325 = vpop.xlane.xlu0 %4324
      %v4326 = vsel %vm2558, %v4146, 0.0
      %4327 = vadd.xlane.f32.xlu0 %v4326
      %v4328 = vpop.xlane.xlu0 %4327
      %v4329 = vsel %vm2558, %v4147, 0.0
      %4330 = vadd.xlane.f32.xlu0 %v4329
      %v4331 = vpop.xlane.xlu0 %4330
      %v4332 = vsel %vm2565, %v4148, 0.0
      %4333 = vadd.xlane.f32.xlu0 %v4332
      %v4334 = vpop.xlane.xlu0 %4333
      %v4335 = vsel %vm2558, %v4149, 0.0
      %4336 = vadd.xlane.f32.xlu0 %v4335
      %v4337 = vpop.xlane.xlu0 %4336
      %v4338 = vsel %vm2558, %v4150, 0.0
      %4339 = vadd.xlane.f32.xlu0 %v4338
      %v4340 = vpop.xlane.xlu0 %4339
      %v4341 = vsel %vm2565, %v4151, 0.0
      %4342 = vadd.xlane.f32.xlu0 %v4341
      %v4343 = vpop.xlane.xlu0 %4342
      %v4344 = vsel %vm2558, %v4152, 0.0
      %4345 = vadd.xlane.f32.xlu0 %v4344
      %v4346 = vpop.xlane.xlu0 %4345
      %v4347 = vsel %vm2558, %v4153, 0.0
      %4348 = vadd.xlane.f32.xlu0 %v4347
      %v4349 = vpop.xlane.xlu0 %4348
      %v4350 = vsel %vm2565, %v4154, 0.0
      %4351 = vadd.xlane.f32.xlu0 %v4350
      %v4352 = vpop.xlane.xlu0 %4351
      %v4353 = vsel %vm2558, %v4155, 0.0
      %4354 = vadd.xlane.f32.xlu0 %v4353
      %v4355 = vpop.xlane.xlu0 %4354
      %v4356 = vsel %vm2558, %v4156, 0.0
      %4357 = vadd.xlane.f32.xlu0 %v4356
      %v4358 = vpop.xlane.xlu0 %4357
      %v4359 = vsel %vm2565, %v4157, 0.0
      %4360 = vadd.xlane.f32.xlu0 %v4359
      %v4361 = vpop.xlane.xlu0 %4360
      %v4362 = vsel %vm2558, %v4158, 0.0
      %4363 = vadd.xlane.f32.xlu0 %v4362
      %v4364 = vpop.xlane.xlu0 %4363
      %v4365 = vsel %vm2558, %v4159, 0.0
      %4366 = vadd.xlane.f32.xlu0 %v4365
      %v4367 = vpop.xlane.xlu0 %4366
      %v4368 = vsel %vm2565, %v4160, 0.0
      %4369 = vadd.xlane.f32.xlu0 %v4368
      %v4370 = vpop.xlane.xlu0 %4369
      %v4371 = vsel %vm2558, %v4161, 0.0
      %4372 = vadd.xlane.f32.xlu0 %v4371
      %v4373 = vpop.xlane.xlu0 %4372
      %v4374 = vsel %vm2558, %v4162, 0.0
      %4375 = vadd.xlane.f32.xlu0 %v4374
      %v4376 = vpop.xlane.xlu0 %4375
      %v4377 = vsel %vm2565, %v4163, 0.0
      %4378 = vadd.xlane.f32.xlu0 %v4377
      %v4379 = vpop.xlane.xlu0 %4378
      %v4380 = vsel %vm2558, %v4164, 0.0
      %4381 = vadd.xlane.f32.xlu0 %v4380
      %v4382 = vpop.xlane.xlu0 %4381
      %v4383 = vsel %vm2558, %v4165, 0.0
      %4384 = vadd.xlane.f32.xlu0 %v4383
      %v4385 = vpop.xlane.xlu0 %4384
      %v4386 = vsel %vm2565, %v4166, 0.0
      %4387 = vadd.xlane.f32.xlu0 %v4386
      %v4388 = vpop.xlane.xlu0 %4387
      %v4389 = vsel %vm2558, %v4167, 0.0
      %4390 = vadd.xlane.f32.xlu0 %v4389
      %v4391 = vpop.xlane.xlu0 %4390
      %v4392 = vsel %vm2558, %v4168, 0.0
      %4393 = vadd.xlane.f32.xlu0 %v4392
      %v4394 = vpop.xlane.xlu0 %4393
      %v4395 = vsel %vm2565, %v4169, 0.0
      %4396 = vadd.xlane.f32.xlu0 %v4395
      %v4397 = vpop.xlane.xlu0 %4396
      %v4398 = vsel %vm2558, %v4170, 0.0
      %4399 = vadd.xlane.f32.xlu0 %v4398
      %v4400 = vpop.xlane.xlu0 %4399
      %v4401 = vsel %vm2558, %v4171, 0.0
      %4402 = vadd.xlane.f32.xlu0 %v4401
      %v4403 = vpop.xlane.xlu0 %4402
      %v4404 = vsel %vm2565, %v4172, 0.0
      %4405 = vadd.xlane.f32.xlu0 %v4404
      %v4406 = vpop.xlane.xlu0 %4405
      %v4407 = vsel %vm2558, %v4173, 0.0
      %4408 = vadd.xlane.f32.xlu0 %v4407
      %v4409 = vpop.xlane.xlu0 %4408
      %v4410 = vsel %vm2558, %v4174, 0.0
      %4411 = vadd.xlane.f32.xlu0 %v4410
      %v4412 = vpop.xlane.xlu0 %4411
      %v4413 = vsel %vm2565, %v4175, 0.0
      %4414 = vadd.xlane.f32.xlu0 %v4413
      %v4415 = vpop.xlane.xlu0 %4414
      %v4416 = vsel %vm2558, %v4176, 0.0
      %4417 = vadd.xlane.f32.xlu0 %v4416
      %v4418 = vpop.xlane.xlu0 %4417
      %v4419 = vsel %vm2558, %v4177, 0.0
      %4420 = vadd.xlane.f32.xlu0 %v4419
      %v4421 = vpop.xlane.xlu0 %4420
      %v4422 = vsel %vm2565, %v4178, 0.0
      %4423 = vadd.xlane.f32.xlu0 %v4422
      %v4424 = vpop.xlane.xlu0 %4423
      %v4425 = vsel %vm2558, %v4179, 0.0
      %4426 = vadd.xlane.f32.xlu0 %v4425
      %v4427 = vpop.xlane.xlu0 %4426
      %v4428 = vsel %vm2558, %v4180, 0.0
      %4429 = vadd.xlane.f32.xlu0 %v4428
      %v4430 = vpop.xlane.xlu0 %4429
      %v4431 = vsel %vm2565, %v4181, 0.0
      %4432 = vadd.xlane.f32.xlu0 %v4431
      %v4433 = vpop.xlane.xlu0 %4432
      %v4434 = vsel %vm2558, %v4182, 0.0
      %4435 = vadd.xlane.f32.xlu0 %v4434
      %v4436 = vpop.xlane.xlu0 %4435
      %v4437 = vsel %vm2558, %v4183, 0.0
      %4438 = vadd.xlane.f32.xlu0 %v4437
      %v4439 = vpop.xlane.xlu0 %4438
      %v4440 = vsel %vm2565, %v4184, 0.0
      %4441 = vadd.xlane.f32.xlu0 %v4440
      %v4442 = vpop.xlane.xlu0 %4441
      %v4443 = vsel %vm2558, %v4185, 0.0
      %4444 = vadd.xlane.f32.xlu0 %v4443
      %v4445 = vpop.xlane.xlu0 %4444
      %v4446 = vsel %vm2558, %v4186, 0.0
      %4447 = vadd.xlane.f32.xlu0 %v4446
      %v4448 = vpop.xlane.xlu0 %4447
      %v4449 = vsel %vm2565, %v4187, 0.0
      %4450 = vadd.xlane.f32.xlu0 %v4449
      %v4451 = vpop.xlane.xlu0 %4450
      %v4452 = vsel %vm2558, %v4188, 0.0
      %4453 = vadd.xlane.f32.xlu0 %v4452
      %v4454 = vpop.xlane.xlu0 %4453
      %v4455 = vsel %vm2558, %v4189, 0.0
      %4456 = vadd.xlane.f32.xlu0 %v4455
      %v4457 = vpop.xlane.xlu0 %4456
      %v4458 = vsel %vm2565, %v4190, 0.0
      %4459 = vadd.xlane.f32.xlu0 %v4458
      %v4460 = vpop.xlane.xlu0 %4459
      %v4461 = vsel %vm2558, %v4191, 0.0
      %4462 = vadd.xlane.f32.xlu0 %v4461
      %v4463 = vpop.xlane.xlu0 %4462
      %v4464 = vsel %vm2558, %v4192, 0.0
      %4465 = vadd.xlane.f32.xlu0 %v4464
      %v4466 = vpop.xlane.xlu0 %4465
      %v4467 = vsel %vm2565, %v4193, 0.0
      %4468 = vadd.xlane.f32.xlu0 %v4467
      %v4469 = vpop.xlane.xlu0 %4468
      %v4470 = vsel %vm2558, %v4194, 0.0
      %4471 = vadd.xlane.f32.xlu0 %v4470
      %v4472 = vpop.xlane.xlu0 %4471
      %v4473 = vsel %vm2558, %v4195, 0.0
      %4474 = vadd.xlane.f32.xlu0 %v4473
      %v4475 = vpop.xlane.xlu0 %4474
      %v4476 = vsel %vm2565, %v4196, 0.0
      %4477 = vadd.xlane.f32.xlu0 %v4476
      %v4478 = vpop.xlane.xlu0 %4477
      %v4479 = vsel %vm2558, %v4197, 0.0
      %4480 = vadd.xlane.f32.xlu0 %v4479
      %v4481 = vpop.xlane.xlu0 %4480
      %v4482 = vsel %vm2558, %v4198, 0.0
      %4483 = vadd.xlane.f32.xlu0 %v4482
      %v4484 = vpop.xlane.xlu0 %4483
      %v4485 = vsel %vm2565, %v4199, 0.0
      %4486 = vadd.xlane.f32.xlu0 %v4485
      %v4487 = vpop.xlane.xlu0 %4486
      %v4584 = vlaneseq
      %v4585 = vshrl.u32 %v4584, 7
      %v4586 = vsub.s32 %v1771, %v4585
      %v4587 = vrot.slane %v4202, %v4586
      %v4588 = vlaneseq
      %v4589 = vshrl.u32 %v4588, 7
      %v4590 = vsub.s32 %v3140, %v4589
      %v4591 = vrot.slane %v4205, %v4590
      %v4592 = vsel %vm3145, %v4591, %v4587
      %v4593 = vlaneseq
      %v4594 = vshrl.u32 %v4593, 7
      %v4595 = vsub.s32 %v3147, %v4594
      %v4596 = vrot.slane %v4208, %v4595
      %v4597 = vsel %vm3152, %v4596, %v4592
      %v4598 = vlaneseq
      %v4599 = vshrl.u32 %v4598, 7
      %v4600 = vsub.s32 %v1771, %v4599
      %v4601 = vrot.slane %v4211, %v4600
      %v4602 = vlaneseq
      %v4603 = vshrl.u32 %v4602, 7
      %v4604 = vsub.s32 %v3140, %v4603
      %v4605 = vrot.slane %v4214, %v4604
      %v4606 = vsel %vm3145, %v4605, %v4601
      %v4607 = vlaneseq
      %v4608 = vshrl.u32 %v4607, 7
      %v4609 = vsub.s32 %v3147, %v4608
      %v4610 = vrot.slane %v4217, %v4609
      %v4611 = vsel %vm3152, %v4610, %v4606
      %v4612 = vlaneseq
      %v4613 = vshrl.u32 %v4612, 7
      %v4614 = vsub.s32 %v1771, %v4613
      %v4615 = vrot.slane %v4220, %v4614
      %v4616 = vlaneseq
      %v4617 = vshrl.u32 %v4616, 7
      %v4618 = vsub.s32 %v3140, %v4617
      %v4619 = vrot.slane %v4223, %v4618
      %v4620 = vsel %vm3145, %v4619, %v4615
      %v4621 = vlaneseq
      %v4622 = vshrl.u32 %v4621, 7
      %v4623 = vsub.s32 %v3147, %v4622
      %v4624 = vrot.slane %v4226, %v4623
      %v4625 = vsel %vm3152, %v4624, %v4620
      %v4626 = vlaneseq
      %v4627 = vshrl.u32 %v4626, 7
      %v4628 = vsub.s32 %v1771, %v4627
      %v4629 = vrot.slane %v4229, %v4628
      %v4630 = vlaneseq
      %v4631 = vshrl.u32 %v4630, 7
      %v4632 = vsub.s32 %v3140, %v4631
      %v4633 = vrot.slane %v4232, %v4632
      %v4634 = vsel %vm3145, %v4633, %v4629
      %v4635 = vlaneseq
      %v4636 = vshrl.u32 %v4635, 7
      %v4637 = vsub.s32 %v3147, %v4636
      %v4638 = vrot.slane %v4235, %v4637
      %v4639 = vsel %vm3152, %v4638, %v4634
      %v4640 = vlaneseq
      %v4641 = vshrl.u32 %v4640, 7
      %v4642 = vsub.s32 %v1771, %v4641
      %v4643 = vrot.slane %v4238, %v4642
      %v4644 = vlaneseq
      %v4645 = vshrl.u32 %v4644, 7
      %v4646 = vsub.s32 %v3140, %v4645
      %v4647 = vrot.slane %v4241, %v4646
      %v4648 = vsel %vm3145, %v4647, %v4643
      %v4649 = vlaneseq
      %v4650 = vshrl.u32 %v4649, 7
      %v4651 = vsub.s32 %v3147, %v4650
      %v4652 = vrot.slane %v4244, %v4651
      %v4653 = vsel %vm3152, %v4652, %v4648
      %v4654 = vlaneseq
      %v4655 = vshrl.u32 %v4654, 7
      %v4656 = vsub.s32 %v1771, %v4655
      %v4657 = vrot.slane %v4247, %v4656
      %v4658 = vlaneseq
      %v4659 = vshrl.u32 %v4658, 7
      %v4660 = vsub.s32 %v3140, %v4659
      %v4661 = vrot.slane %v4250, %v4660
      %v4662 = vsel %vm3145, %v4661, %v4657
      %v4663 = vlaneseq
      %v4664 = vshrl.u32 %v4663, 7
      %v4665 = vsub.s32 %v3147, %v4664
      %v4666 = vrot.slane %v4253, %v4665
      %v4667 = vsel %vm3152, %v4666, %v4662
      %v4668 = vlaneseq
      %v4669 = vshrl.u32 %v4668, 7
      %v4670 = vsub.s32 %v1771, %v4669
      %v4671 = vrot.slane %v4256, %v4670
      %v4672 = vlaneseq
      %v4673 = vshrl.u32 %v4672, 7
      %v4674 = vsub.s32 %v3140, %v4673
      %v4675 = vrot.slane %v4259, %v4674
      %v4676 = vsel %vm3145, %v4675, %v4671
      %v4677 = vlaneseq
      %v4678 = vshrl.u32 %v4677, 7
      %v4679 = vsub.s32 %v3147, %v4678
      %v4680 = vrot.slane %v4262, %v4679
      %v4681 = vsel %vm3152, %v4680, %v4676
      %v4682 = vlaneseq
      %v4683 = vshrl.u32 %v4682, 7
      %v4684 = vsub.s32 %v1771, %v4683
      %v4685 = vrot.slane %v4265, %v4684
      %v4686 = vlaneseq
      %v4687 = vshrl.u32 %v4686, 7
      %v4688 = vsub.s32 %v3140, %v4687
      %v4689 = vrot.slane %v4268, %v4688
      %v4690 = vsel %vm3145, %v4689, %v4685
      %v4691 = vlaneseq
      %v4692 = vshrl.u32 %v4691, 7
      %v4693 = vsub.s32 %v3147, %v4692
      %v4694 = vrot.slane %v4271, %v4693
      %v4695 = vsel %vm3152, %v4694, %v4690
      %v4696 = vlaneseq
      %v4697 = vshrl.u32 %v4696, 7
      %v4698 = vsub.s32 %v1771, %v4697
      %v4699 = vrot.slane %v4274, %v4698
      %v4700 = vlaneseq
      %v4701 = vshrl.u32 %v4700, 7
      %v4702 = vsub.s32 %v3140, %v4701
      %v4703 = vrot.slane %v4277, %v4702
      %v4704 = vsel %vm3145, %v4703, %v4699
      %v4705 = vlaneseq
      %v4706 = vshrl.u32 %v4705, 7
      %v4707 = vsub.s32 %v3147, %v4706
      %v4708 = vrot.slane %v4280, %v4707
      %v4709 = vsel %vm3152, %v4708, %v4704
      %v4710 = vlaneseq
      %v4711 = vshrl.u32 %v4710, 7
      %v4712 = vsub.s32 %v1771, %v4711
      %v4713 = vrot.slane %v4283, %v4712
      %v4714 = vlaneseq
      %v4715 = vshrl.u32 %v4714, 7
      %v4716 = vsub.s32 %v3140, %v4715
      %v4717 = vrot.slane %v4286, %v4716
      %v4718 = vsel %vm3145, %v4717, %v4713
      %v4719 = vlaneseq
      %v4720 = vshrl.u32 %v4719, 7
      %v4721 = vsub.s32 %v3147, %v4720
      %v4722 = vrot.slane %v4289, %v4721
      %v4723 = vsel %vm3152, %v4722, %v4718
      %v4724 = vlaneseq
      %v4725 = vshrl.u32 %v4724, 7
      %v4726 = vsub.s32 %v1771, %v4725
      %v4727 = vrot.slane %v4292, %v4726
      %v4728 = vlaneseq
      %v4729 = vshrl.u32 %v4728, 7
      %v4730 = vsub.s32 %v3140, %v4729
      %v4731 = vrot.slane %v4295, %v4730
      %v4732 = vsel %vm3145, %v4731, %v4727
      %v4733 = vlaneseq
      %v4734 = vshrl.u32 %v4733, 7
      %v4735 = vsub.s32 %v3147, %v4734
      %v4736 = vrot.slane %v4298, %v4735
      %v4737 = vsel %vm3152, %v4736, %v4732
      %v4738 = vlaneseq
      %v4739 = vshrl.u32 %v4738, 7
      %v4740 = vsub.s32 %v1771, %v4739
      %v4741 = vrot.slane %v4301, %v4740
      %v4742 = vlaneseq
      %v4743 = vshrl.u32 %v4742, 7
      %v4744 = vsub.s32 %v3140, %v4743
      %v4745 = vrot.slane %v4304, %v4744
      %v4746 = vsel %vm3145, %v4745, %v4741
      %v4747 = vlaneseq
      %v4748 = vshrl.u32 %v4747, 7
      %v4749 = vsub.s32 %v3147, %v4748
      %v4750 = vrot.slane %v4307, %v4749
      %v4751 = vsel %vm3152, %v4750, %v4746
      %v4752 = vlaneseq
      %v4753 = vshrl.u32 %v4752, 7
      %v4754 = vsub.s32 %v1771, %v4753
      %v4755 = vrot.slane %v4310, %v4754
      %v4756 = vlaneseq
      %v4757 = vshrl.u32 %v4756, 7
      %v4758 = vsub.s32 %v3140, %v4757
      %v4759 = vrot.slane %v4313, %v4758
      %v4760 = vsel %vm3145, %v4759, %v4755
      %v4761 = vlaneseq
      %v4762 = vshrl.u32 %v4761, 7
      %v4763 = vsub.s32 %v3147, %v4762
      %v4764 = vrot.slane %v4316, %v4763
      %v4765 = vsel %vm3152, %v4764, %v4760
      %v4766 = vlaneseq
      %v4767 = vshrl.u32 %v4766, 7
      %v4768 = vsub.s32 %v1771, %v4767
      %v4769 = vrot.slane %v4319, %v4768
      %v4770 = vlaneseq
      %v4771 = vshrl.u32 %v4770, 7
      %v4772 = vsub.s32 %v3140, %v4771
      %v4773 = vrot.slane %v4322, %v4772
      %v4774 = vsel %vm3145, %v4773, %v4769
      %v4775 = vlaneseq
      %v4776 = vshrl.u32 %v4775, 7
      %v4777 = vsub.s32 %v3147, %v4776
      %v4778 = vrot.slane %v4325, %v4777
      %v4779 = vsel %vm3152, %v4778, %v4774
      %v4780 = vlaneseq
      %v4781 = vshrl.u32 %v4780, 7
      %v4782 = vsub.s32 %v1771, %v4781
      %v4783 = vrot.slane %v4328, %v4782
      %v4784 = vlaneseq
      %v4785 = vshrl.u32 %v4784, 7
      %v4786 = vsub.s32 %v3140, %v4785
      %v4787 = vrot.slane %v4331, %v4786
      %v4788 = vsel %vm3145, %v4787, %v4783
      %v4789 = vlaneseq
      %v4790 = vshrl.u32 %v4789, 7
      %v4791 = vsub.s32 %v3147, %v4790
      %v4792 = vrot.slane %v4334, %v4791
      %v4793 = vsel %vm3152, %v4792, %v4788
      %v4794 = vlaneseq
      %v4795 = vshrl.u32 %v4794, 7
      %v4796 = vsub.s32 %v1771, %v4795
      %v4797 = vrot.slane %v4337, %v4796
      %v4798 = vlaneseq
      %v4799 = vshrl.u32 %v4798, 7
      %v4800 = vsub.s32 %v3140, %v4799
      %v4801 = vrot.slane %v4340, %v4800
      %v4802 = vsel %vm3145, %v4801, %v4797
      %v4803 = vlaneseq
      %v4804 = vshrl.u32 %v4803, 7
      %v4805 = vsub.s32 %v3147, %v4804
      %v4806 = vrot.slane %v4343, %v4805
      %v4807 = vsel %vm3152, %v4806, %v4802
      %v4808 = vlaneseq
      %v4809 = vshrl.u32 %v4808, 7
      %v4810 = vsub.s32 %v1771, %v4809
      %v4811 = vrot.slane %v4346, %v4810
      %v4812 = vlaneseq
      %v4813 = vshrl.u32 %v4812, 7
      %v4814 = vsub.s32 %v3140, %v4813
      %v4815 = vrot.slane %v4349, %v4814
      %v4816 = vsel %vm3145, %v4815, %v4811
      %v4817 = vlaneseq
      %v4818 = vshrl.u32 %v4817, 7
      %v4819 = vsub.s32 %v3147, %v4818
      %v4820 = vrot.slane %v4352, %v4819
      %v4821 = vsel %vm3152, %v4820, %v4816
      %v4822 = vlaneseq
      %v4823 = vshrl.u32 %v4822, 7
      %v4824 = vsub.s32 %v1771, %v4823
      %v4825 = vrot.slane %v4355, %v4824
      %v4826 = vlaneseq
      %v4827 = vshrl.u32 %v4826, 7
      %v4828 = vsub.s32 %v3140, %v4827
      %v4829 = vrot.slane %v4358, %v4828
      %v4830 = vsel %vm3145, %v4829, %v4825
      %v4831 = vlaneseq
      %v4832 = vshrl.u32 %v4831, 7
      %v4833 = vsub.s32 %v3147, %v4832
      %v4834 = vrot.slane %v4361, %v4833
      %v4835 = vsel %vm3152, %v4834, %v4830
      %v4836 = vlaneseq
      %v4837 = vshrl.u32 %v4836, 7
      %v4838 = vsub.s32 %v1771, %v4837
      %v4839 = vrot.slane %v4364, %v4838
      %v4840 = vlaneseq
      %v4841 = vshrl.u32 %v4840, 7
      %v4842 = vsub.s32 %v3140, %v4841
      %v4843 = vrot.slane %v4367, %v4842
      %v4844 = vsel %vm3145, %v4843, %v4839
      %v4845 = vlaneseq
      %v4846 = vshrl.u32 %v4845, 7
      %v4847 = vsub.s32 %v3147, %v4846
      %v4848 = vrot.slane %v4370, %v4847
      %v4849 = vsel %vm3152, %v4848, %v4844
      %v4850 = vlaneseq
      %v4851 = vshrl.u32 %v4850, 7
      %v4852 = vsub.s32 %v1771, %v4851
      %v4853 = vrot.slane %v4373, %v4852
      %v4854 = vlaneseq
      %v4855 = vshrl.u32 %v4854, 7
      %v4856 = vsub.s32 %v3140, %v4855
      %v4857 = vrot.slane %v4376, %v4856
      %v4858 = vsel %vm3145, %v4857, %v4853
      %v4859 = vlaneseq
      %v4860 = vshrl.u32 %v4859, 7
      %v4861 = vsub.s32 %v3147, %v4860
      %v4862 = vrot.slane %v4379, %v4861
      %v4863 = vsel %vm3152, %v4862, %v4858
      %v4864 = vlaneseq
      %v4865 = vshrl.u32 %v4864, 7
      %v4866 = vsub.s32 %v1771, %v4865
      %v4867 = vrot.slane %v4382, %v4866
      %v4868 = vlaneseq
      %v4869 = vshrl.u32 %v4868, 7
      %v4870 = vsub.s32 %v3140, %v4869
      %v4871 = vrot.slane %v4385, %v4870
      %v4872 = vsel %vm3145, %v4871, %v4867
      %v4873 = vlaneseq
      %v4874 = vshrl.u32 %v4873, 7
      %v4875 = vsub.s32 %v3147, %v4874
      %v4876 = vrot.slane %v4388, %v4875
      %v4877 = vsel %vm3152, %v4876, %v4872
      %v4878 = vlaneseq
      %v4879 = vshrl.u32 %v4878, 7
      %v4880 = vsub.s32 %v1771, %v4879
      %v4881 = vrot.slane %v4391, %v4880
      %v4882 = vlaneseq
      %v4883 = vshrl.u32 %v4882, 7
      %v4884 = vsub.s32 %v3140, %v4883
      %v4885 = vrot.slane %v4394, %v4884
      %v4886 = vsel %vm3145, %v4885, %v4881
      %v4887 = vlaneseq
      %v4888 = vshrl.u32 %v4887, 7
      %v4889 = vsub.s32 %v3147, %v4888
      %v4890 = vrot.slane %v4397, %v4889
      %v4891 = vsel %vm3152, %v4890, %v4886
      %v4892 = vlaneseq
      %v4893 = vshrl.u32 %v4892, 7
      %v4894 = vsub.s32 %v1771, %v4893
      %v4895 = vrot.slane %v4400, %v4894
      %v4896 = vlaneseq
      %v4897 = vshrl.u32 %v4896, 7
      %v4898 = vsub.s32 %v3140, %v4897
      %v4899 = vrot.slane %v4403, %v4898
      %v4900 = vsel %vm3145, %v4899, %v4895
      %v4901 = vlaneseq
      %v4902 = vshrl.u32 %v4901, 7
      %v4903 = vsub.s32 %v3147, %v4902
      %v4904 = vrot.slane %v4406, %v4903
      %v4905 = vsel %vm3152, %v4904, %v4900
      %v4906 = vlaneseq
      %v4907 = vshrl.u32 %v4906, 7
      %v4908 = vsub.s32 %v1771, %v4907
      %v4909 = vrot.slane %v4409, %v4908
      %v4910 = vlaneseq
      %v4911 = vshrl.u32 %v4910, 7
      %v4912 = vsub.s32 %v3140, %v4911
      %v4913 = vrot.slane %v4412, %v4912
      %v4914 = vsel %vm3145, %v4913, %v4909
      %v4915 = vlaneseq
      %v4916 = vshrl.u32 %v4915, 7
      %v4917 = vsub.s32 %v3147, %v4916
      %v4918 = vrot.slane %v4415, %v4917
      %v4919 = vsel %vm3152, %v4918, %v4914
      %v4920 = vlaneseq
      %v4921 = vshrl.u32 %v4920, 7
      %v4922 = vsub.s32 %v1771, %v4921
      %v4923 = vrot.slane %v4418, %v4922
      %v4924 = vlaneseq
      %v4925 = vshrl.u32 %v4924, 7
      %v4926 = vsub.s32 %v3140, %v4925
      %v4927 = vrot.slane %v4421, %v4926
      %v4928 = vsel %vm3145, %v4927, %v4923
      %v4929 = vlaneseq
      %v4930 = vshrl.u32 %v4929, 7
      %v4931 = vsub.s32 %v3147, %v4930
      %v4932 = vrot.slane %v4424, %v4931
      %v4933 = vsel %vm3152, %v4932, %v4928
      %v4934 = vlaneseq
      %v4935 = vshrl.u32 %v4934, 7
      %v4936 = vsub.s32 %v1771, %v4935
      %v4937 = vrot.slane %v4427, %v4936
      %v4938 = vlaneseq
      %v4939 = vshrl.u32 %v4938, 7
      %v4940 = vsub.s32 %v3140, %v4939
      %v4941 = vrot.slane %v4430, %v4940
      %v4942 = vsel %vm3145, %v4941, %v4937
      %v4943 = vlaneseq
      %v4944 = vshrl.u32 %v4943, 7
      %v4945 = vsub.s32 %v3147, %v4944
      %v4946 = vrot.slane %v4433, %v4945
      %v4947 = vsel %vm3152, %v4946, %v4942
      %v4948 = vlaneseq
      %v4949 = vshrl.u32 %v4948, 7
      %v4950 = vsub.s32 %v1771, %v4949
      %v4951 = vrot.slane %v4436, %v4950
      %v4952 = vlaneseq
      %v4953 = vshrl.u32 %v4952, 7
      %v4954 = vsub.s32 %v3140, %v4953
      %v4955 = vrot.slane %v4439, %v4954
      %v4956 = vsel %vm3145, %v4955, %v4951
      %v4957 = vlaneseq
      %v4958 = vshrl.u32 %v4957, 7
      %v4959 = vsub.s32 %v3147, %v4958
      %v4960 = vrot.slane %v4442, %v4959
      %v4961 = vsel %vm3152, %v4960, %v4956
      %v4962 = vlaneseq
      %v4963 = vshrl.u32 %v4962, 7
      %v4964 = vsub.s32 %v1771, %v4963
      %v4965 = vrot.slane %v4445, %v4964
      %v4966 = vlaneseq
      %v4967 = vshrl.u32 %v4966, 7
      %v4968 = vsub.s32 %v3140, %v4967
      %v4969 = vrot.slane %v4448, %v4968
      %v4970 = vsel %vm3145, %v4969, %v4965
      %v4971 = vlaneseq
      %v4972 = vshrl.u32 %v4971, 7
      %v4973 = vsub.s32 %v3147, %v4972
      %v4974 = vrot.slane %v4451, %v4973
      %v4975 = vsel %vm3152, %v4974, %v4970
      %v4976 = vlaneseq
      %v4977 = vshrl.u32 %v4976, 7
      %v4978 = vsub.s32 %v1771, %v4977
      %v4979 = vrot.slane %v4454, %v4978
      %v4980 = vlaneseq
      %v4981 = vshrl.u32 %v4980, 7
      %v4982 = vsub.s32 %v3140, %v4981
      %v4983 = vrot.slane %v4457, %v4982
      %v4984 = vsel %vm3145, %v4983, %v4979
      %v4985 = vlaneseq
      %v4986 = vshrl.u32 %v4985, 7
      %v4987 = vsub.s32 %v3147, %v4986
      %v4988 = vrot.slane %v4460, %v4987
      %v4989 = vsel %vm3152, %v4988, %v4984
      %v4990 = vlaneseq
      %v4991 = vshrl.u32 %v4990, 7
      %v4992 = vsub.s32 %v1771, %v4991
      %v4993 = vrot.slane %v4463, %v4992
      %v4994 = vlaneseq
      %v4995 = vshrl.u32 %v4994, 7
      %v4996 = vsub.s32 %v3140, %v4995
      %v4997 = vrot.slane %v4466, %v4996
      %v4998 = vsel %vm3145, %v4997, %v4993
      %v4999 = vlaneseq
      %v5000 = vshrl.u32 %v4999, 7
      %v5001 = vsub.s32 %v3147, %v5000
      %v5002 = vrot.slane %v4469, %v5001
      %v5003 = vsel %vm3152, %v5002, %v4998
      %v5004 = vlaneseq
      %v5005 = vshrl.u32 %v5004, 7
      %v5006 = vsub.s32 %v1771, %v5005
      %v5007 = vrot.slane %v4472, %v5006
      %v5008 = vlaneseq
      %v5009 = vshrl.u32 %v5008, 7
      %v5010 = vsub.s32 %v3140, %v5009
      %v5011 = vrot.slane %v4475, %v5010
      %v5012 = vsel %vm3145, %v5011, %v5007
      %v5013 = vlaneseq
      %v5014 = vshrl.u32 %v5013, 7
      %v5015 = vsub.s32 %v3147, %v5014
      %v5016 = vrot.slane %v4478, %v5015
      %v5017 = vsel %vm3152, %v5016, %v5012
      %v5018 = vlaneseq
      %v5019 = vshrl.u32 %v5018, 7
      %v5020 = vsub.s32 %v1771, %v5019
      %v5021 = vrot.slane %v4481, %v5020
      %v5022 = vlaneseq
      %v5023 = vshrl.u32 %v5022, 7
      %v5024 = vsub.s32 %v3140, %v5023
      %v5025 = vrot.slane %v4484, %v5024
      %v5026 = vsel %vm3145, %v5025, %v5021
      %v5027 = vlaneseq
      %v5028 = vshrl.u32 %v5027, 7
      %v5029 = vsub.s32 %v3147, %v5028
      %v5030 = vrot.slane %v4487, %v5029
      %v5031 = vsel %vm3152, %v5030, %v5026
      %v5032 = vsel %vm1038, %v4611, %v4597
      %v5033 = vsel %vm1040, %v4625, %v5032
      %v5034 = vsel %vm1042, %v4639, %v5033
      %v5035 = vsel %vm1044, %v4653, %v5034
      %v5036 = vsel %vm1046, %v4667, %v5035
      %v5037 = vsel %vm1048, %v4681, %v5036
      %v5038 = vsel %vm1050, %v4695, %v5037
      %v5039 = vsel %vm1038, %v4723, %v4709
      %v5040 = vsel %vm1040, %v4737, %v5039
      %v5041 = vsel %vm1042, %v4751, %v5040
      %v5042 = vsel %vm1044, %v4765, %v5041
      %v5043 = vsel %vm1046, %v4779, %v5042
      %v5044 = vsel %vm1048, %v4793, %v5043
      %v5045 = vsel %vm1050, %v4807, %v5044
      %v5046 = vsel %vm1038, %v4835, %v4821
      %v5047 = vsel %vm1040, %v4849, %v5046
      %v5048 = vsel %vm1042, %v4863, %v5047
      %v5049 = vsel %vm1044, %v4877, %v5048
      %v5050 = vsel %vm1046, %v4891, %v5049
      %v5051 = vsel %vm1048, %v4905, %v5050
      %v5052 = vsel %vm1050, %v4919, %v5051
      %v5053 = vsel %vm1038, %v4947, %v4933
      %v5054 = vsel %vm1040, %v4961, %v5053
      %v5055 = vsel %vm1042, %v4975, %v5054
      %v5056 = vsel %vm1044, %v4989, %v5055
      %v5057 = vsel %vm1046, %v5003, %v5056
      %v5058 = vsel %vm1048, %v5017, %v5057
      %v5059 = vsel %vm1050, %v5031, %v5058
      %v5064 = vmul.f32 %v3620, %v5038
      %v5065 = vmul.f32 %v3621, %v5045
      %v5066 = vmul.f32 %v3622, %v5052
      %v5067 = vmul.f32 %v3623, %v5059
      %5072 = vrot.lane.b32.xlu0 %v5064, 123
      %v5073 = vpop.permute.xlu0 %5072
      %5074 = vrot.lane.b32.xlu0 %v5065, 123
      %v5075 = vpop.permute.xlu0 %5074
      %5076 = vrot.lane.b32.xlu0 %v5066, 123
      %v5077 = vpop.permute.xlu0 %5076
      %5078 = vrot.lane.b32.xlu0 %v5067, 123
      %v5079 = vpop.permute.xlu0 %5078
      %5084 = vrot.lane.b32.xlu0 %v5064, 118
      %v5085 = vpop.permute.xlu0 %5084
      %5086 = vrot.lane.b32.xlu0 %v5065, 118
      %v5087 = vpop.permute.xlu0 %5086
      %5088 = vrot.lane.b32.xlu0 %v5066, 118
      %v5089 = vpop.permute.xlu0 %5088
      %5090 = vrot.lane.b32.xlu0 %v5067, 118
      %v5091 = vpop.permute.xlu0 %5090
      %5096 = vrot.lane.b32.xlu0 %v5064, 113
      %v5097 = vpop.permute.xlu0 %5096
      %5098 = vrot.lane.b32.xlu0 %v5065, 113
      %v5099 = vpop.permute.xlu0 %5098
      %5100 = vrot.lane.b32.xlu0 %v5066, 113
      %v5101 = vpop.permute.xlu0 %5100
      %5102 = vrot.lane.b32.xlu0 %v5067, 113
      %v5103 = vpop.permute.xlu0 %5102
      %v5108 = vcombine.low %v5064, %v5085
      %v5109 = vcombine.high %v5064, %v5085
      %v5111 = vunpack.c.l.s4 1983009808
      %v5112 = vunpack.c.0.s8 %v5111
      %v5113 = vlaneseq
      %v5114 = vshrl.u32 %v5113, 7
      %v5115 = vsub.s32 %v5112, %v5114
      %v5116 = vrot.slane %v5108, %v5115
      %v5118 = vunpack.c.l.s4 1983009808
      %v5119 = vunpack.c.0.s8 %v5118
      %v5120 = vlaneseq
      %v5121 = vshrl.u32 %v5120, 7
      %v5122 = vsub.s32 %v5119, %v5121
      %v5123 = vrot.slane %v5109, %v5122
      %v5124 = vcombine.low %v5073, %v5097
      %v5125 = vcombine.high %v5073, %v5097
      %v5127 = vunpack.c.l.s4 1983009808
      %v5128 = vunpack.c.0.s8 %v5127
      %v5129 = vlaneseq
      %v5130 = vshrl.u32 %v5129, 7
      %v5131 = vsub.s32 %v5128, %v5130
      %v5132 = vrot.slane %v5124, %v5131
      %v5134 = vunpack.c.l.s4 1983009808
      %v5135 = vunpack.c.0.s8 %v5134
      %v5136 = vlaneseq
      %v5137 = vshrl.u32 %v5136, 7
      %v5138 = vsub.s32 %v5135, %v5137
      %v5139 = vrot.slane %v5125, %v5138
      %v5140 = vcombine.low %v5116, %v5132
      %v5141 = vcombine.high %v5116, %v5132
      %v5143 = vunpack.c.l.s4 1934713408
      %v5144 = vunpack.c.0.s8 %v5143
      %v5145 = vlaneseq
      %v5146 = vshrl.u32 %v5145, 7
      %v5147 = vsub.s32 %v5144, %v5146
      %v5148 = vrot.slane %v5140, %v5147
      %v5150 = vunpack.c.l.s4 1934713408
      %v5151 = vunpack.c.0.s8 %v5150
      %v5152 = vlaneseq
      %v5153 = vshrl.u32 %v5152, 7
      %v5154 = vsub.s32 %v5151, %v5153
      %v5155 = vrot.slane %v5141, %v5154
      %v5156 = vcombine.low %v5123, %v5139
      %v5157 = vcombine.high %v5123, %v5139
      %v5159 = vunpack.c.l.s4 1934713408
      %v5160 = vunpack.c.0.s8 %v5159
      %v5161 = vlaneseq
      %v5162 = vshrl.u32 %v5161, 7
      %v5163 = vsub.s32 %v5160, %v5162
      %v5164 = vrot.slane %v5156, %v5163
      %v5166 = vunpack.c.l.s4 1934713408
      %v5167 = vunpack.c.0.s8 %v5166
      %v5168 = vlaneseq
      %v5169 = vshrl.u32 %v5168, 7
      %v5170 = vsub.s32 %v5167, %v5169
      %v5171 = vrot.slane %v5157, %v5170
      %v5172 = vcombine.high %v5148, 0.0
      %v5173 = vcombine.high %v5155, 0.0
      %v5174 = vcombine.high %v5164, 0.0
      %v5175 = vcombine.high %v5171, 0.0
      %v5176 = vcombine.low %v5065, %v5087
      %v5177 = vcombine.high %v5065, %v5087
      %v5179 = vunpack.c.l.s4 1983009808
      %v5180 = vunpack.c.0.s8 %v5179
      %v5181 = vlaneseq
      %v5182 = vshrl.u32 %v5181, 7
      %v5183 = vsub.s32 %v5180, %v5182
      %v5184 = vrot.slane %v5176, %v5183
      %v5186 = vunpack.c.l.s4 1983009808
      %v5187 = vunpack.c.0.s8 %v5186
      %v5188 = vlaneseq
      %v5189 = vshrl.u32 %v5188, 7
      %v5190 = vsub.s32 %v5187, %v5189
      %v5191 = vrot.slane %v5177, %v5190
      %v5192 = vcombine.low %v5075, %v5099
      %v5193 = vcombine.high %v5075, %v5099
      %v5195 = vunpack.c.l.s4 1983009808
      %v5196 = vunpack.c.0.s8 %v5195
      %v5197 = vlaneseq
      %v5198 = vshrl.u32 %v5197, 7
      %v5199 = vsub.s32 %v5196, %v5198
      %v5200 = vrot.slane %v5192, %v5199
      %v5202 = vunpack.c.l.s4 1983009808
      %v5203 = vunpack.c.0.s8 %v5202
      %v5204 = vlaneseq
      %v5205 = vshrl.u32 %v5204, 7
      %v5206 = vsub.s32 %v5203, %v5205
      %v5207 = vrot.slane %v5193, %v5206
      %v5208 = vcombine.low %v5184, %v5200
      %v5209 = vcombine.high %v5184, %v5200
      %v5211 = vunpack.c.l.s4 1934713408
      %v5212 = vunpack.c.0.s8 %v5211
      %v5213 = vlaneseq
      %v5214 = vshrl.u32 %v5213, 7
      %v5215 = vsub.s32 %v5212, %v5214
      %v5216 = vrot.slane %v5208, %v5215
      %v5218 = vunpack.c.l.s4 1934713408
      %v5219 = vunpack.c.0.s8 %v5218
      %v5220 = vlaneseq
      %v5221 = vshrl.u32 %v5220, 7
      %v5222 = vsub.s32 %v5219, %v5221
      %v5223 = vrot.slane %v5209, %v5222
      %v5224 = vcombine.low %v5191, %v5207
      %v5225 = vcombine.high %v5191, %v5207
      %v5227 = vunpack.c.l.s4 1934713408
      %v5228 = vunpack.c.0.s8 %v5227
      %v5229 = vlaneseq
      %v5230 = vshrl.u32 %v5229, 7
      %v5231 = vsub.s32 %v5228, %v5230
      %v5232 = vrot.slane %v5224, %v5231
      %v5234 = vunpack.c.l.s4 1934713408
      %v5235 = vunpack.c.0.s8 %v5234
      %v5236 = vlaneseq
      %v5237 = vshrl.u32 %v5236, 7
      %v5238 = vsub.s32 %v5235, %v5237
      %v5239 = vrot.slane %v5225, %v5238
      %v5240 = vcombine.high %v5216, 0.0
      %v5241 = vcombine.high %v5223, 0.0
      %v5242 = vcombine.high %v5232, 0.0
      %v5243 = vcombine.high %v5239, 0.0
      %v5244 = vcombine.low %v5066, %v5089
      %v5245 = vcombine.high %v5066, %v5089
      %v5247 = vunpack.c.l.s4 1983009808
      %v5248 = vunpack.c.0.s8 %v5247
      %v5249 = vlaneseq
      %v5250 = vshrl.u32 %v5249, 7
      %v5251 = vsub.s32 %v5248, %v5250
      %v5252 = vrot.slane %v5244, %v5251
      %v5254 = vunpack.c.l.s4 1983009808
      %v5255 = vunpack.c.0.s8 %v5254
      %v5256 = vlaneseq
      %v5257 = vshrl.u32 %v5256, 7
      %v5258 = vsub.s32 %v5255, %v5257
      %v5259 = vrot.slane %v5245, %v5258
      %v5260 = vcombine.low %v5077, %v5101
      %v5261 = vcombine.high %v5077, %v5101
      %v5263 = vunpack.c.l.s4 1983009808
      %v5264 = vunpack.c.0.s8 %v5263
      %v5265 = vlaneseq
      %v5266 = vshrl.u32 %v5265, 7
      %v5267 = vsub.s32 %v5264, %v5266
      %v5268 = vrot.slane %v5260, %v5267
      %v5270 = vunpack.c.l.s4 1983009808
      %v5271 = vunpack.c.0.s8 %v5270
      %v5272 = vlaneseq
      %v5273 = vshrl.u32 %v5272, 7
      %v5274 = vsub.s32 %v5271, %v5273
      %v5275 = vrot.slane %v5261, %v5274
      %v5276 = vcombine.low %v5252, %v5268
      %v5277 = vcombine.high %v5252, %v5268
      %v5279 = vunpack.c.l.s4 1934713408
      %v5280 = vunpack.c.0.s8 %v5279
      %v5281 = vlaneseq
      %v5282 = vshrl.u32 %v5281, 7
      %v5283 = vsub.s32 %v5280, %v5282
      %v5284 = vrot.slane %v5276, %v5283
      %v5286 = vunpack.c.l.s4 1934713408
      %v5287 = vunpack.c.0.s8 %v5286
      %v5288 = vlaneseq
      %v5289 = vshrl.u32 %v5288, 7
      %v5290 = vsub.s32 %v5287, %v5289
      %v5291 = vrot.slane %v5277, %v5290
      %v5292 = vcombine.low %v5259, %v5275
      %v5293 = vcombine.high %v5259, %v5275
      %v5295 = vunpack.c.l.s4 1934713408
      %v5296 = vunpack.c.0.s8 %v5295
      %v5297 = vlaneseq
      %v5298 = vshrl.u32 %v5297, 7
      %v5299 = vsub.s32 %v5296, %v5298
      %v5300 = vrot.slane %v5292, %v5299
      %v5302 = vunpack.c.l.s4 1934713408
      %v5303 = vunpack.c.0.s8 %v5302
      %v5304 = vlaneseq
      %v5305 = vshrl.u32 %v5304, 7
      %v5306 = vsub.s32 %v5303, %v5305
      %v5307 = vrot.slane %v5293, %v5306
      %v5308 = vcombine.high %v5284, 0.0
      %v5309 = vcombine.high %v5291, 0.0
      %v5310 = vcombine.high %v5300, 0.0
      %v5311 = vcombine.high %v5307, 0.0
      %v5312 = vcombine.low %v5067, %v5091
      %v5313 = vcombine.high %v5067, %v5091
      %v5315 = vunpack.c.l.s4 1983009808
      %v5316 = vunpack.c.0.s8 %v5315
      %v5317 = vlaneseq
      %v5318 = vshrl.u32 %v5317, 7
      %v5319 = vsub.s32 %v5316, %v5318
      %v5320 = vrot.slane %v5312, %v5319
      %v5322 = vunpack.c.l.s4 1983009808
      %v5323 = vunpack.c.0.s8 %v5322
      %v5324 = vlaneseq
      %v5325 = vshrl.u32 %v5324, 7
      %v5326 = vsub.s32 %v5323, %v5325
      %v5327 = vrot.slane %v5313, %v5326
      %v5328 = vcombine.low %v5079, %v5103
      %v5329 = vcombine.high %v5079, %v5103
      %v5331 = vunpack.c.l.s4 1983009808
      %v5332 = vunpack.c.0.s8 %v5331
      %v5333 = vlaneseq
      %v5334 = vshrl.u32 %v5333, 7
      %v5335 = vsub.s32 %v5332, %v5334
      %v5336 = vrot.slane %v5328, %v5335
      %v5338 = vunpack.c.l.s4 1983009808
      %v5339 = vunpack.c.0.s8 %v5338
      %v5340 = vlaneseq
      %v5341 = vshrl.u32 %v5340, 7
      %v5342 = vsub.s32 %v5339, %v5341
      %v5343 = vrot.slane %v5329, %v5342
      %v5344 = vcombine.low %v5320, %v5336
      %v5345 = vcombine.high %v5320, %v5336
      %v5347 = vunpack.c.l.s4 1934713408
      %v5348 = vunpack.c.0.s8 %v5347
      %v5349 = vlaneseq
      %v5350 = vshrl.u32 %v5349, 7
      %v5351 = vsub.s32 %v5348, %v5350
      %v5352 = vrot.slane %v5344, %v5351
      %v5354 = vunpack.c.l.s4 1934713408
      %v5355 = vunpack.c.0.s8 %v5354
      %v5356 = vlaneseq
      %v5357 = vshrl.u32 %v5356, 7
      %v5358 = vsub.s32 %v5355, %v5357
      %v5359 = vrot.slane %v5345, %v5358
      %v5360 = vcombine.low %v5327, %v5343
      %v5361 = vcombine.high %v5327, %v5343
      %v5363 = vunpack.c.l.s4 1934713408
      %v5364 = vunpack.c.0.s8 %v5363
      %v5365 = vlaneseq
      %v5366 = vshrl.u32 %v5365, 7
      %v5367 = vsub.s32 %v5364, %v5366
      %v5368 = vrot.slane %v5360, %v5367
      %v5370 = vunpack.c.l.s4 1934713408
      %v5371 = vunpack.c.0.s8 %v5370
      %v5372 = vlaneseq
      %v5373 = vshrl.u32 %v5372, 7
      %v5374 = vsub.s32 %v5371, %v5373
      %v5375 = vrot.slane %v5361, %v5374
      %v5376 = vcombine.high %v5352, 0.0
      %v5377 = vcombine.high %v5359, 0.0
      %v5378 = vcombine.high %v5368, 0.0
      %v5379 = vcombine.high %v5375, 0.0
      %vm5380 = vcmask 35840
      %v5381 = vsel %vm5380, %v5148, 0.0
      %5382 = vadd.xlane.f32.xlu0 %v5381
      %v5383 = vpop.xlane.xlu0 %5382
      %v5384 = vsel %vm5380, %v5172, 0.0
      %5385 = vadd.xlane.f32.xlu0 %v5384
      %v5386 = vpop.xlane.xlu0 %5385
      %v5387 = vsel %vm5380, %v5155, 0.0
      %5388 = vadd.xlane.f32.xlu0 %v5387
      %v5389 = vpop.xlane.xlu0 %5388
      %v5390 = vsel %vm5380, %v5173, 0.0
      %5391 = vadd.xlane.f32.xlu0 %v5390
      %v5392 = vpop.xlane.xlu0 %5391
      %v5393 = vsel %vm5380, %v5164, 0.0
      %5394 = vadd.xlane.f32.xlu0 %v5393
      %v5395 = vpop.xlane.xlu0 %5394
      %v5396 = vsel %vm5380, %v5174, 0.0
      %5397 = vadd.xlane.f32.xlu0 %v5396
      %v5398 = vpop.xlane.xlu0 %5397
      %v5399 = vsel %vm5380, %v5171, 0.0
      %5400 = vadd.xlane.f32.xlu0 %v5399
      %v5401 = vpop.xlane.xlu0 %5400
      %v5402 = vsel %vm5380, %v5175, 0.0
      %5403 = vadd.xlane.f32.xlu0 %v5402
      %v5404 = vpop.xlane.xlu0 %5403
      %v5405 = vsel %vm5380, %v5216, 0.0
      %5406 = vadd.xlane.f32.xlu0 %v5405
      %v5407 = vpop.xlane.xlu0 %5406
      %v5408 = vsel %vm5380, %v5240, 0.0
      %5409 = vadd.xlane.f32.xlu0 %v5408
      %v5410 = vpop.xlane.xlu0 %5409
      %v5411 = vsel %vm5380, %v5223, 0.0
      %5412 = vadd.xlane.f32.xlu0 %v5411
      %v5413 = vpop.xlane.xlu0 %5412
      %v5414 = vsel %vm5380, %v5241, 0.0
      %5415 = vadd.xlane.f32.xlu0 %v5414
      %v5416 = vpop.xlane.xlu0 %5415
      %v5417 = vsel %vm5380, %v5232, 0.0
      %5418 = vadd.xlane.f32.xlu0 %v5417
      %v5419 = vpop.xlane.xlu0 %5418
      %v5420 = vsel %vm5380, %v5242, 0.0
      %5421 = vadd.xlane.f32.xlu0 %v5420
      %v5422 = vpop.xlane.xlu0 %5421
      %v5423 = vsel %vm5380, %v5239, 0.0
      %5424 = vadd.xlane.f32.xlu0 %v5423
      %v5425 = vpop.xlane.xlu0 %5424
      %v5426 = vsel %vm5380, %v5243, 0.0
      %5427 = vadd.xlane.f32.xlu0 %v5426
      %v5428 = vpop.xlane.xlu0 %5427
      %v5429 = vsel %vm5380, %v5284, 0.0
      %5430 = vadd.xlane.f32.xlu0 %v5429
      %v5431 = vpop.xlane.xlu0 %5430
      %v5432 = vsel %vm5380, %v5308, 0.0
      %5433 = vadd.xlane.f32.xlu0 %v5432
      %v5434 = vpop.xlane.xlu0 %5433
      %v5435 = vsel %vm5380, %v5291, 0.0
      %5436 = vadd.xlane.f32.xlu0 %v5435
      %v5437 = vpop.xlane.xlu0 %5436
      %v5438 = vsel %vm5380, %v5309, 0.0
      %5439 = vadd.xlane.f32.xlu0 %v5438
      %v5440 = vpop.xlane.xlu0 %5439
      %v5441 = vsel %vm5380, %v5300, 0.0
      %5442 = vadd.xlane.f32.xlu0 %v5441
      %v5443 = vpop.xlane.xlu0 %5442
      %v5444 = vsel %vm5380, %v5310, 0.0
      %5445 = vadd.xlane.f32.xlu0 %v5444
      %v5446 = vpop.xlane.xlu0 %5445
      %v5447 = vsel %vm5380, %v5307, 0.0
      %5448 = vadd.xlane.f32.xlu0 %v5447
      %v5449 = vpop.xlane.xlu0 %5448
      %v5450 = vsel %vm5380, %v5311, 0.0
      %5451 = vadd.xlane.f32.xlu0 %v5450
      %v5452 = vpop.xlane.xlu0 %5451
      %v5453 = vsel %vm5380, %v5352, 0.0
      %5454 = vadd.xlane.f32.xlu0 %v5453
      %v5455 = vpop.xlane.xlu0 %5454
      %v5456 = vsel %vm5380, %v5376, 0.0
      %5457 = vadd.xlane.f32.xlu0 %v5456
      %v5458 = vpop.xlane.xlu0 %5457
      %v5459 = vsel %vm5380, %v5359, 0.0
      %5460 = vadd.xlane.f32.xlu0 %v5459
      %v5461 = vpop.xlane.xlu0 %5460
      %v5462 = vsel %vm5380, %v5377, 0.0
      %5463 = vadd.xlane.f32.xlu0 %v5462
      %v5464 = vpop.xlane.xlu0 %5463
      %v5465 = vsel %vm5380, %v5368, 0.0
      %5466 = vadd.xlane.f32.xlu0 %v5465
      %v5467 = vpop.xlane.xlu0 %5466
      %v5468 = vsel %vm5380, %v5378, 0.0
      %5469 = vadd.xlane.f32.xlu0 %v5468
      %v5470 = vpop.xlane.xlu0 %5469
      %v5471 = vsel %vm5380, %v5375, 0.0
      %5472 = vadd.xlane.f32.xlu0 %v5471
      %v5473 = vpop.xlane.xlu0 %5472
      %v5474 = vsel %vm5380, %v5379, 0.0
      %5475 = vadd.xlane.f32.xlu0 %v5474
      %v5476 = vpop.xlane.xlu0 %5475
      %vm5477 = vcmask 23552
      %v5478 = vsel %vm5477, %v1969, 0.0
      %5479 = vadd.xlane.f32.xlu0 %v5478
      %v5480 = vpop.xlane.xlu0 %5479
      %v5481 = vsel %vm5477, %v1970, 0.0
      %5482 = vadd.xlane.f32.xlu0 %v5481
      %v5483 = vpop.xlane.xlu0 %5482
      %v5484 = vsel %vm5477, %v1971, 0.0
      %5485 = vadd.xlane.f32.xlu0 %v5484
      %v5486 = vpop.xlane.xlu0 %5485
      %v5487 = vsel %vm5477, %v1972, 0.0
      %5488 = vadd.xlane.f32.xlu0 %v5487
      %v5489 = vpop.xlane.xlu0 %5488
      %5494 = vrot.lane.b32.xlu0 %v2069, 123
      %v5495 = vpop.permute.xlu0 %5494
      %5496 = vrot.lane.b32.xlu0 %v2070, 123
      %v5497 = vpop.permute.xlu0 %5496
      %5498 = vrot.lane.b32.xlu0 %v2071, 123
      %v5499 = vpop.permute.xlu0 %5498
      %5500 = vrot.lane.b32.xlu0 %v2072, 123
      %v5501 = vpop.permute.xlu0 %5500
      %5506 = vrot.lane.b32.xlu0 %v2069, 118
      %v5507 = vpop.permute.xlu0 %5506
      %5508 = vrot.lane.b32.xlu0 %v2070, 118
      %v5509 = vpop.permute.xlu0 %5508
      %5510 = vrot.lane.b32.xlu0 %v2071, 118
      %v5511 = vpop.permute.xlu0 %5510
      %5512 = vrot.lane.b32.xlu0 %v2072, 118
      %v5513 = vpop.permute.xlu0 %5512
      %5518 = vrot.lane.b32.xlu0 %v2069, 113
      %v5519 = vpop.permute.xlu0 %5518
      %5520 = vrot.lane.b32.xlu0 %v2070, 113
      %v5521 = vpop.permute.xlu0 %5520
      %5522 = vrot.lane.b32.xlu0 %v2071, 113
      %v5523 = vpop.permute.xlu0 %5522
      %5524 = vrot.lane.b32.xlu0 %v2072, 113
      %v5525 = vpop.permute.xlu0 %5524
      %v5530 = vcombine.low %v2069, %v5507
      %v5531 = vcombine.high %v2069, %v5507
      %v5533 = vunpack.c.l.s4 1983009808
      %v5534 = vunpack.c.0.s8 %v5533
      %v5535 = vlaneseq
      %v5536 = vshrl.u32 %v5535, 7
      %v5537 = vsub.s32 %v5534, %v5536
      %v5538 = vrot.slane %v5530, %v5537
      %v5540 = vunpack.c.l.s4 1983009808
      %v5541 = vunpack.c.0.s8 %v5540
      %v5542 = vlaneseq
      %v5543 = vshrl.u32 %v5542, 7
      %v5544 = vsub.s32 %v5541, %v5543
      %v5545 = vrot.slane %v5531, %v5544
      %v5546 = vcombine.low %v5495, %v5519
      %v5547 = vcombine.high %v5495, %v5519
      %v5549 = vunpack.c.l.s4 1983009808
      %v5550 = vunpack.c.0.s8 %v5549
      %v5551 = vlaneseq
      %v5552 = vshrl.u32 %v5551, 7
      %v5553 = vsub.s32 %v5550, %v5552
      %v5554 = vrot.slane %v5546, %v5553
      %v5556 = vunpack.c.l.s4 1983009808
      %v5557 = vunpack.c.0.s8 %v5556
      %v5558 = vlaneseq
      %v5559 = vshrl.u32 %v5558, 7
      %v5560 = vsub.s32 %v5557, %v5559
      %v5561 = vrot.slane %v5547, %v5560
      %v5562 = vcombine.low %v5538, %v5554
      %v5563 = vcombine.high %v5538, %v5554
      %v5565 = vunpack.c.l.s4 1934713408
      %v5566 = vunpack.c.0.s8 %v5565
      %v5567 = vlaneseq
      %v5568 = vshrl.u32 %v5567, 7
      %v5569 = vsub.s32 %v5566, %v5568
      %v5570 = vrot.slane %v5562, %v5569
      %v5572 = vunpack.c.l.s4 1934713408
      %v5573 = vunpack.c.0.s8 %v5572
      %v5574 = vlaneseq
      %v5575 = vshrl.u32 %v5574, 7
      %v5576 = vsub.s32 %v5573, %v5575
      %v5577 = vrot.slane %v5563, %v5576
      %v5578 = vcombine.low %v5545, %v5561
      %v5579 = vcombine.high %v5545, %v5561
      %v5581 = vunpack.c.l.s4 1934713408
      %v5582 = vunpack.c.0.s8 %v5581
      %v5583 = vlaneseq
      %v5584 = vshrl.u32 %v5583, 7
      %v5585 = vsub.s32 %v5582, %v5584
      %v5586 = vrot.slane %v5578, %v5585
      %v5588 = vunpack.c.l.s4 1934713408
      %v5589 = vunpack.c.0.s8 %v5588
      %v5590 = vlaneseq
      %v5591 = vshrl.u32 %v5590, 7
      %v5592 = vsub.s32 %v5589, %v5591
      %v5593 = vrot.slane %v5579, %v5592
      %v5594 = vcombine.high %v5570, 0.0
      %v5595 = vcombine.high %v5577, 0.0
      %v5596 = vcombine.high %v5586, 0.0
      %v5597 = vcombine.high %v5593, 0.0
      %v5598 = vcombine.low %v2070, %v5509
      %v5599 = vcombine.high %v2070, %v5509
      %v5601 = vunpack.c.l.s4 1983009808
      %v5602 = vunpack.c.0.s8 %v5601
      %v5603 = vlaneseq
      %v5604 = vshrl.u32 %v5603, 7
      %v5605 = vsub.s32 %v5602, %v5604
      %v5606 = vrot.slane %v5598, %v5605
      %v5608 = vunpack.c.l.s4 1983009808
      %v5609 = vunpack.c.0.s8 %v5608
      %v5610 = vlaneseq
      %v5611 = vshrl.u32 %v5610, 7
      %v5612 = vsub.s32 %v5609, %v5611
      %v5613 = vrot.slane %v5599, %v5612
      %v5614 = vcombine.low %v5497, %v5521
      %v5615 = vcombine.high %v5497, %v5521
      %v5617 = vunpack.c.l.s4 1983009808
      %v5618 = vunpack.c.0.s8 %v5617
      %v5619 = vlaneseq
      %v5620 = vshrl.u32 %v5619, 7
      %v5621 = vsub.s32 %v5618, %v5620
      %v5622 = vrot.slane %v5614, %v5621
      %v5624 = vunpack.c.l.s4 1983009808
      %v5625 = vunpack.c.0.s8 %v5624
      %v5626 = vlaneseq
      %v5627 = vshrl.u32 %v5626, 7
      %v5628 = vsub.s32 %v5625, %v5627
      %v5629 = vrot.slane %v5615, %v5628
      %v5630 = vcombine.low %v5606, %v5622
      %v5631 = vcombine.high %v5606, %v5622
      %v5633 = vunpack.c.l.s4 1934713408
      %v5634 = vunpack.c.0.s8 %v5633
      %v5635 = vlaneseq
      %v5636 = vshrl.u32 %v5635, 7
      %v5637 = vsub.s32 %v5634, %v5636
      %v5638 = vrot.slane %v5630, %v5637
      %v5640 = vunpack.c.l.s4 1934713408
      %v5641 = vunpack.c.0.s8 %v5640
      %v5642 = vlaneseq
      %v5643 = vshrl.u32 %v5642, 7
      %v5644 = vsub.s32 %v5641, %v5643
      %v5645 = vrot.slane %v5631, %v5644
      %v5646 = vcombine.low %v5613, %v5629
      %v5647 = vcombine.high %v5613, %v5629
      %v5649 = vunpack.c.l.s4 1934713408
      %v5650 = vunpack.c.0.s8 %v5649
      %v5651 = vlaneseq
      %v5652 = vshrl.u32 %v5651, 7
      %v5653 = vsub.s32 %v5650, %v5652
      %v5654 = vrot.slane %v5646, %v5653
      %v5656 = vunpack.c.l.s4 1934713408
      %v5657 = vunpack.c.0.s8 %v5656
      %v5658 = vlaneseq
      %v5659 = vshrl.u32 %v5658, 7
      %v5660 = vsub.s32 %v5657, %v5659
      %v5661 = vrot.slane %v5647, %v5660
      %v5662 = vcombine.high %v5638, 0.0
      %v5663 = vcombine.high %v5645, 0.0
      %v5664 = vcombine.high %v5654, 0.0
      %v5665 = vcombine.high %v5661, 0.0
      %v5666 = vcombine.low %v2071, %v5511
      %v5667 = vcombine.high %v2071, %v5511
      %v5669 = vunpack.c.l.s4 1983009808
      %v5670 = vunpack.c.0.s8 %v5669
      %v5671 = vlaneseq
      %v5672 = vshrl.u32 %v5671, 7
      %v5673 = vsub.s32 %v5670, %v5672
      %v5674 = vrot.slane %v5666, %v5673
      %v5676 = vunpack.c.l.s4 1983009808
      %v5677 = vunpack.c.0.s8 %v5676
      %v5678 = vlaneseq
      %v5679 = vshrl.u32 %v5678, 7
      %v5680 = vsub.s32 %v5677, %v5679
      %v5681 = vrot.slane %v5667, %v5680
      %v5682 = vcombine.low %v5499, %v5523
      %v5683 = vcombine.high %v5499, %v5523
      %v5685 = vunpack.c.l.s4 1983009808
      %v5686 = vunpack.c.0.s8 %v5685
      %v5687 = vlaneseq
      %v5688 = vshrl.u32 %v5687, 7
      %v5689 = vsub.s32 %v5686, %v5688
      %v5690 = vrot.slane %v5682, %v5689
      %v5692 = vunpack.c.l.s4 1983009808
      %v5693 = vunpack.c.0.s8 %v5692
      %v5694 = vlaneseq
      %v5695 = vshrl.u32 %v5694, 7
      %v5696 = vsub.s32 %v5693, %v5695
      %v5697 = vrot.slane %v5683, %v5696
      %v5698 = vcombine.low %v5674, %v5690
      %v5699 = vcombine.high %v5674, %v5690
      %v5701 = vunpack.c.l.s4 1934713408
      %v5702 = vunpack.c.0.s8 %v5701
      %v5703 = vlaneseq
      %v5704 = vshrl.u32 %v5703, 7
      %v5705 = vsub.s32 %v5702, %v5704
      %v5706 = vrot.slane %v5698, %v5705
      %v5708 = vunpack.c.l.s4 1934713408
      %v5709 = vunpack.c.0.s8 %v5708
      %v5710 = vlaneseq
      %v5711 = vshrl.u32 %v5710, 7
      %v5712 = vsub.s32 %v5709, %v5711
      %v5713 = vrot.slane %v5699, %v5712
      %v5714 = vcombine.low %v5681, %v5697
      %v5715 = vcombine.high %v5681, %v5697
      %v5717 = vunpack.c.l.s4 1934713408
      %v5718 = vunpack.c.0.s8 %v5717
      %v5719 = vlaneseq
      %v5720 = vshrl.u32 %v5719, 7
      %v5721 = vsub.s32 %v5718, %v5720
      %v5722 = vrot.slane %v5714, %v5721
      %v5724 = vunpack.c.l.s4 1934713408
      %v5725 = vunpack.c.0.s8 %v5724
      %v5726 = vlaneseq
      %v5727 = vshrl.u32 %v5726, 7
      %v5728 = vsub.s32 %v5725, %v5727
      %v5729 = vrot.slane %v5715, %v5728
      %v5730 = vcombine.high %v5706, 0.0
      %v5731 = vcombine.high %v5713, 0.0
      %v5732 = vcombine.high %v5722, 0.0
      %v5733 = vcombine.high %v5729, 0.0
      %v5734 = vcombine.low %v2072, %v5513
      %v5735 = vcombine.high %v2072, %v5513
      %v5737 = vunpack.c.l.s4 1983009808
      %v5738 = vunpack.c.0.s8 %v5737
      %v5739 = vlaneseq
      %v5740 = vshrl.u32 %v5739, 7
      %v5741 = vsub.s32 %v5738, %v5740
      %v5742 = vrot.slane %v5734, %v5741
      %v5744 = vunpack.c.l.s4 1983009808
      %v5745 = vunpack.c.0.s8 %v5744
      %v5746 = vlaneseq
      %v5747 = vshrl.u32 %v5746, 7
      %v5748 = vsub.s32 %v5745, %v5747
      %v5749 = vrot.slane %v5735, %v5748
      %v5750 = vcombine.low %v5501, %v5525
      %v5751 = vcombine.high %v5501, %v5525
      %v5753 = vunpack.c.l.s4 1983009808
      %v5754 = vunpack.c.0.s8 %v5753
      %v5755 = vlaneseq
      %v5756 = vshrl.u32 %v5755, 7
      %v5757 = vsub.s32 %v5754, %v5756
      %v5758 = vrot.slane %v5750, %v5757
      %v5760 = vunpack.c.l.s4 1983009808
      %v5761 = vunpack.c.0.s8 %v5760
      %v5762 = vlaneseq
      %v5763 = vshrl.u32 %v5762, 7
      %v5764 = vsub.s32 %v5761, %v5763
      %v5765 = vrot.slane %v5751, %v5764
      %v5766 = vcombine.low %v5742, %v5758
      %v5767 = vcombine.high %v5742, %v5758
      %v5769 = vunpack.c.l.s4 1934713408
      %v5770 = vunpack.c.0.s8 %v5769
      %v5771 = vlaneseq
      %v5772 = vshrl.u32 %v5771, 7
      %v5773 = vsub.s32 %v5770, %v5772
      %v5774 = vrot.slane %v5766, %v5773
      %v5776 = vunpack.c.l.s4 1934713408
      %v5777 = vunpack.c.0.s8 %v5776
      %v5778 = vlaneseq
      %v5779 = vshrl.u32 %v5778, 7
      %v5780 = vsub.s32 %v5777, %v5779
      %v5781 = vrot.slane %v5767, %v5780
      %v5782 = vcombine.low %v5749, %v5765
      %v5783 = vcombine.high %v5749, %v5765
      %v5785 = vunpack.c.l.s4 1934713408
      %v5786 = vunpack.c.0.s8 %v5785
      %v5787 = vlaneseq
      %v5788 = vshrl.u32 %v5787, 7
      %v5789 = vsub.s32 %v5786, %v5788
      %v5790 = vrot.slane %v5782, %v5789
      %v5792 = vunpack.c.l.s4 1934713408
      %v5793 = vunpack.c.0.s8 %v5792
      %v5794 = vlaneseq
      %v5795 = vshrl.u32 %v5794, 7
      %v5796 = vsub.s32 %v5793, %v5795
      %v5797 = vrot.slane %v5783, %v5796
      %v5798 = vcombine.high %v5774, 0.0
      %v5799 = vcombine.high %v5781, 0.0
      %v5800 = vcombine.high %v5790, 0.0
      %v5801 = vcombine.high %v5797, 0.0
      %v5802 = vsel %vm5380, %v5570, 0.0
      %5803 = vadd.xlane.f32.xlu0 %v5802
      %v5804 = vpop.xlane.xlu0 %5803
      %v5805 = vsel %vm5380, %v5594, 0.0
      %5806 = vadd.xlane.f32.xlu0 %v5805
      %v5807 = vpop.xlane.xlu0 %5806
      %v5808 = vsel %vm5380, %v5577, 0.0
      %5809 = vadd.xlane.f32.xlu0 %v5808
      %v5810 = vpop.xlane.xlu0 %5809
      %v5811 = vsel %vm5380, %v5595, 0.0
      %5812 = vadd.xlane.f32.xlu0 %v5811
      %v5813 = vpop.xlane.xlu0 %5812
      %v5814 = vsel %vm5380, %v5586, 0.0
      %5815 = vadd.xlane.f32.xlu0 %v5814
      %v5816 = vpop.xlane.xlu0 %5815
      %v5817 = vsel %vm5380, %v5596, 0.0
      %5818 = vadd.xlane.f32.xlu0 %v5817
      %v5819 = vpop.xlane.xlu0 %5818
      %v5820 = vsel %vm5380, %v5593, 0.0
      %5821 = vadd.xlane.f32.xlu0 %v5820
      %v5822 = vpop.xlane.xlu0 %5821
      %v5823 = vsel %vm5380, %v5597, 0.0
      %5824 = vadd.xlane.f32.xlu0 %v5823
      %v5825 = vpop.xlane.xlu0 %5824
      %v5826 = vsel %vm5380, %v5638, 0.0
      %5827 = vadd.xlane.f32.xlu0 %v5826
      %v5828 = vpop.xlane.xlu0 %5827
      %v5829 = vsel %vm5380, %v5662, 0.0
      %5830 = vadd.xlane.f32.xlu0 %v5829
      %v5831 = vpop.xlane.xlu0 %5830
      %v5832 = vsel %vm5380, %v5645, 0.0
      %5833 = vadd.xlane.f32.xlu0 %v5832
      %v5834 = vpop.xlane.xlu0 %5833
      %v5835 = vsel %vm5380, %v5663, 0.0
      %5836 = vadd.xlane.f32.xlu0 %v5835
      %v5837 = vpop.xlane.xlu0 %5836
      %v5838 = vsel %vm5380, %v5654, 0.0
      %5839 = vadd.xlane.f32.xlu0 %v5838
      %v5840 = vpop.xlane.xlu0 %5839
      %v5841 = vsel %vm5380, %v5664, 0.0
      %5842 = vadd.xlane.f32.xlu0 %v5841
      %v5843 = vpop.xlane.xlu0 %5842
      %v5844 = vsel %vm5380, %v5661, 0.0
      %5845 = vadd.xlane.f32.xlu0 %v5844
      %v5846 = vpop.xlane.xlu0 %5845
      %v5847 = vsel %vm5380, %v5665, 0.0
      %5848 = vadd.xlane.f32.xlu0 %v5847
      %v5849 = vpop.xlane.xlu0 %5848
      %v5850 = vsel %vm5380, %v5706, 0.0
      %5851 = vadd.xlane.f32.xlu0 %v5850
      %v5852 = vpop.xlane.xlu0 %5851
      %v5853 = vsel %vm5380, %v5730, 0.0
      %5854 = vadd.xlane.f32.xlu0 %v5853
      %v5855 = vpop.xlane.xlu0 %5854
      %v5856 = vsel %vm5380, %v5713, 0.0
      %5857 = vadd.xlane.f32.xlu0 %v5856
      %v5858 = vpop.xlane.xlu0 %5857
      %v5859 = vsel %vm5380, %v5731, 0.0
      %5860 = vadd.xlane.f32.xlu0 %v5859
      %v5861 = vpop.xlane.xlu0 %5860
      %v5862 = vsel %vm5380, %v5722, 0.0
      %5863 = vadd.xlane.f32.xlu0 %v5862
      %v5864 = vpop.xlane.xlu0 %5863
      %v5865 = vsel %vm5380, %v5732, 0.0
      %5866 = vadd.xlane.f32.xlu0 %v5865
      %v5867 = vpop.xlane.xlu0 %5866
      %v5868 = vsel %vm5380, %v5729, 0.0
      %5869 = vadd.xlane.f32.xlu0 %v5868
      %v5870 = vpop.xlane.xlu0 %5869
      %v5871 = vsel %vm5380, %v5733, 0.0
      %5872 = vadd.xlane.f32.xlu0 %v5871
      %v5873 = vpop.xlane.xlu0 %5872
      %v5874 = vsel %vm5380, %v5774, 0.0
      %5875 = vadd.xlane.f32.xlu0 %v5874
      %v5876 = vpop.xlane.xlu0 %5875
      %v5877 = vsel %vm5380, %v5798, 0.0
      %5878 = vadd.xlane.f32.xlu0 %v5877
      %v5879 = vpop.xlane.xlu0 %5878
      %v5880 = vsel %vm5380, %v5781, 0.0
      %5881 = vadd.xlane.f32.xlu0 %v5880
      %v5882 = vpop.xlane.xlu0 %5881
      %v5883 = vsel %vm5380, %v5799, 0.0
      %5884 = vadd.xlane.f32.xlu0 %v5883
      %v5885 = vpop.xlane.xlu0 %5884
      %v5886 = vsel %vm5380, %v5790, 0.0
      %5887 = vadd.xlane.f32.xlu0 %v5886
      %v5888 = vpop.xlane.xlu0 %5887
      %v5889 = vsel %vm5380, %v5800, 0.0
      %5890 = vadd.xlane.f32.xlu0 %v5889
      %v5891 = vpop.xlane.xlu0 %5890
      %v5892 = vsel %vm5380, %v5797, 0.0
      %5893 = vadd.xlane.f32.xlu0 %v5892
      %v5894 = vpop.xlane.xlu0 %5893
      %v5895 = vsel %vm5380, %v5801, 0.0
      %5896 = vadd.xlane.f32.xlu0 %v5895
      %v5897 = vpop.xlane.xlu0 %5896
      %v5930 = vlaneseq
      %v5931 = vshrl.u32 %v5930, 7
      %v5932 = vsub.s32 %v1771, %v5931
      %v5933 = vrot.slane %v5804, %v5932
      %v5934 = vlaneseq
      %v5935 = vshrl.u32 %v5934, 7
      %v5936 = vsub.s32 %v1771, %v5935
      %v5937 = vrot.slane %v5807, %v5936
      %v5938 = vlaneseq
      %v5939 = vshrl.u32 %v5938, 7
      %v5940 = vsub.s32 %v1771, %v5939
      %v5941 = vrot.slane %v5810, %v5940
      %v5942 = vlaneseq
      %v5943 = vshrl.u32 %v5942, 7
      %v5944 = vsub.s32 %v1771, %v5943
      %v5945 = vrot.slane %v5813, %v5944
      %v5946 = vlaneseq
      %v5947 = vshrl.u32 %v5946, 7
      %v5948 = vsub.s32 %v1771, %v5947
      %v5949 = vrot.slane %v5816, %v5948
      %v5950 = vlaneseq
      %v5951 = vshrl.u32 %v5950, 7
      %v5952 = vsub.s32 %v1771, %v5951
      %v5953 = vrot.slane %v5819, %v5952
      %v5954 = vlaneseq
      %v5955 = vshrl.u32 %v5954, 7
      %v5956 = vsub.s32 %v1771, %v5955
      %v5957 = vrot.slane %v5822, %v5956
      %v5958 = vlaneseq
      %v5959 = vshrl.u32 %v5958, 7
      %v5960 = vsub.s32 %v1771, %v5959
      %v5961 = vrot.slane %v5825, %v5960
      %v5962 = vlaneseq
      %v5963 = vshrl.u32 %v5962, 7
      %v5964 = vsub.s32 %v1771, %v5963
      %v5965 = vrot.slane %v5828, %v5964
      %v5966 = vlaneseq
      %v5967 = vshrl.u32 %v5966, 7
      %v5968 = vsub.s32 %v1771, %v5967
      %v5969 = vrot.slane %v5831, %v5968
      %v5970 = vlaneseq
      %v5971 = vshrl.u32 %v5970, 7
      %v5972 = vsub.s32 %v1771, %v5971
      %v5973 = vrot.slane %v5834, %v5972
      %v5974 = vlaneseq
      %v5975 = vshrl.u32 %v5974, 7
      %v5976 = vsub.s32 %v1771, %v5975
      %v5977 = vrot.slane %v5837, %v5976
      %v5978 = vlaneseq
      %v5979 = vshrl.u32 %v5978, 7
      %v5980 = vsub.s32 %v1771, %v5979
      %v5981 = vrot.slane %v5840, %v5980
      %v5982 = vlaneseq
      %v5983 = vshrl.u32 %v5982, 7
      %v5984 = vsub.s32 %v1771, %v5983
      %v5985 = vrot.slane %v5843, %v5984
      %v5986 = vlaneseq
      %v5987 = vshrl.u32 %v5986, 7
      %v5988 = vsub.s32 %v1771, %v5987
      %v5989 = vrot.slane %v5846, %v5988
      %v5990 = vlaneseq
      %v5991 = vshrl.u32 %v5990, 7
      %v5992 = vsub.s32 %v1771, %v5991
      %v5993 = vrot.slane %v5849, %v5992
      %v5994 = vlaneseq
      %v5995 = vshrl.u32 %v5994, 7
      %v5996 = vsub.s32 %v1771, %v5995
      %v5997 = vrot.slane %v5852, %v5996
      %v5998 = vlaneseq
      %v5999 = vshrl.u32 %v5998, 7
      %v6000 = vsub.s32 %v1771, %v5999
      %v6001 = vrot.slane %v5855, %v6000
      %v6002 = vlaneseq
      %v6003 = vshrl.u32 %v6002, 7
      %v6004 = vsub.s32 %v1771, %v6003
      %v6005 = vrot.slane %v5858, %v6004
      %v6006 = vlaneseq
      %v6007 = vshrl.u32 %v6006, 7
      %v6008 = vsub.s32 %v1771, %v6007
      %v6009 = vrot.slane %v5861, %v6008
      %v6010 = vlaneseq
      %v6011 = vshrl.u32 %v6010, 7
      %v6012 = vsub.s32 %v1771, %v6011
      %v6013 = vrot.slane %v5864, %v6012
      %v6014 = vlaneseq
      %v6015 = vshrl.u32 %v6014, 7
      %v6016 = vsub.s32 %v1771, %v6015
      %v6017 = vrot.slane %v5867, %v6016
      %v6018 = vlaneseq
      %v6019 = vshrl.u32 %v6018, 7
      %v6020 = vsub.s32 %v1771, %v6019
      %v6021 = vrot.slane %v5870, %v6020
      %v6022 = vlaneseq
      %v6023 = vshrl.u32 %v6022, 7
      %v6024 = vsub.s32 %v1771, %v6023
      %v6025 = vrot.slane %v5873, %v6024
      %v6026 = vlaneseq
      %v6027 = vshrl.u32 %v6026, 7
      %v6028 = vsub.s32 %v1771, %v6027
      %v6029 = vrot.slane %v5876, %v6028
      %v6030 = vlaneseq
      %v6031 = vshrl.u32 %v6030, 7
      %v6032 = vsub.s32 %v1771, %v6031
      %v6033 = vrot.slane %v5879, %v6032
      %v6034 = vlaneseq
      %v6035 = vshrl.u32 %v6034, 7
      %v6036 = vsub.s32 %v1771, %v6035
      %v6037 = vrot.slane %v5882, %v6036
      %v6038 = vlaneseq
      %v6039 = vshrl.u32 %v6038, 7
      %v6040 = vsub.s32 %v1771, %v6039
      %v6041 = vrot.slane %v5885, %v6040
      %v6042 = vlaneseq
      %v6043 = vshrl.u32 %v6042, 7
      %v6044 = vsub.s32 %v1771, %v6043
      %v6045 = vrot.slane %v5888, %v6044
      %v6046 = vlaneseq
      %v6047 = vshrl.u32 %v6046, 7
      %v6048 = vsub.s32 %v1771, %v6047
      %v6049 = vrot.slane %v5891, %v6048
      %v6050 = vlaneseq
      %v6051 = vshrl.u32 %v6050, 7
      %v6052 = vsub.s32 %v1771, %v6051
      %v6053 = vrot.slane %v5894, %v6052
      %v6054 = vlaneseq
      %v6055 = vshrl.u32 %v6054, 7
      %v6056 = vsub.s32 %v1771, %v6055
      %v6057 = vrot.slane %v5897, %v6056
      %v6058 = vsel %vm1038, %v5937, %v5933
      %v6059 = vsel %vm1040, %v5941, %v6058
      %v6060 = vsel %vm1042, %v5945, %v6059
      %v6061 = vsel %vm1044, %v5949, %v6060
      %v6062 = vsel %vm1046, %v5953, %v6061
      %v6063 = vsel %vm1048, %v5957, %v6062
      %v6064 = vsel %vm1050, %v5961, %v6063
      %v6065 = vsel %vm1038, %v5969, %v5965
      %v6066 = vsel %vm1040, %v5973, %v6065
      %v6067 = vsel %vm1042, %v5977, %v6066
      %v6068 = vsel %vm1044, %v5981, %v6067
      %v6069 = vsel %vm1046, %v5985, %v6068
      %v6070 = vsel %vm1048, %v5989, %v6069
      %v6071 = vsel %vm1050, %v5993, %v6070
      %v6072 = vsel %vm1038, %v6001, %v5997
      %v6073 = vsel %vm1040, %v6005, %v6072
      %v6074 = vsel %vm1042, %v6009, %v6073
      %v6075 = vsel %vm1044, %v6013, %v6074
      %v6076 = vsel %vm1046, %v6017, %v6075
      %v6077 = vsel %vm1048, %v6021, %v6076
      %v6078 = vsel %vm1050, %v6025, %v6077
      %v6079 = vsel %vm1038, %v6033, %v6029
      %v6080 = vsel %vm1040, %v6037, %v6079
      %v6081 = vsel %vm1042, %v6041, %v6080
      %v6082 = vsel %vm1044, %v6045, %v6081
      %v6083 = vsel %vm1046, %v6049, %v6082
      %v6084 = vsel %vm1048, %v6053, %v6083
      %v6085 = vsel %vm1050, %v6057, %v6084
      %v6090 = vmul.f32 %v5480, %v6064
      %v6091 = vmul.f32 %v5483, %v6071
      %v6092 = vmul.f32 %v5486, %v6078
      %v6093 = vmul.f32 %v5489, %v6085
      %v6094 = vadd.f32 %v6090, 1e-09
      %v6095 = vadd.f32 %v6091, 1e-09
      %v6096 = vadd.f32 %v6092, 1e-09
      %v6097 = vadd.f32 %v6093, 1e-09
      %v6098 = vrcp.pop %v6094
      %v6099 = vrcp.pop %v6095
      %v6100 = vrcp.pop %v6096
      %v6101 = vrcp.pop %v6097
      %v6106 = vlaneseq
      %v6107 = vshrl.u32 %v6106, 7
      %v6108 = vsub.s32 0, %v6107
      %v6109 = vrot.slane %v6098, %v6108
      %6111 = vbcast.lane.b32.xlu0 %v6109, 256
      %v6112 = vpop.permute.xlu0 %6111
      %v6113 = vlaneseq
      %v6114 = vshrl.u32 %v6113, 7
      %v6115 = vsub.s32 1, %v6114
      %v6116 = vrot.slane %v6098, %v6115
      %6118 = vbcast.lane.b32.xlu0 %v6116, 256
      %v6119 = vpop.permute.xlu0 %6118
      %v6120 = vlaneseq
      %v6121 = vshrl.u32 %v6120, 7
      %v6122 = vsub.s32 2, %v6121
      %v6123 = vrot.slane %v6098, %v6122
      %6125 = vbcast.lane.b32.xlu0 %v6123, 256
      %v6126 = vpop.permute.xlu0 %6125
      %v6127 = vlaneseq
      %v6128 = vshrl.u32 %v6127, 7
      %v6129 = vsub.s32 3, %v6128
      %v6130 = vrot.slane %v6098, %v6129
      %6132 = vbcast.lane.b32.xlu0 %v6130, 256
      %v6133 = vpop.permute.xlu0 %6132
      %v6134 = vlaneseq
      %v6135 = vshrl.u32 %v6134, 7
      %v6136 = vsub.s32 4, %v6135
      %v6137 = vrot.slane %v6098, %v6136
      %6139 = vbcast.lane.b32.xlu0 %v6137, 256
      %v6140 = vpop.permute.xlu0 %6139
      %v6141 = vlaneseq
      %v6142 = vshrl.u32 %v6141, 7
      %v6143 = vsub.s32 5, %v6142
      %v6144 = vrot.slane %v6098, %v6143
      %6146 = vbcast.lane.b32.xlu0 %v6144, 256
      %v6147 = vpop.permute.xlu0 %6146
      %v6148 = vlaneseq
      %v6149 = vshrl.u32 %v6148, 7
      %v6150 = vsub.s32 6, %v6149
      %v6151 = vrot.slane %v6098, %v6150
      %6153 = vbcast.lane.b32.xlu0 %v6151, 256
      %v6154 = vpop.permute.xlu0 %6153
      %v6155 = vlaneseq
      %v6156 = vshrl.u32 %v6155, 7
      %v6157 = vsub.s32 7, %v6156
      %v6158 = vrot.slane %v6098, %v6157
      %6160 = vbcast.lane.b32.xlu0 %v6158, 256
      %v6161 = vpop.permute.xlu0 %6160
      %v6162 = vlaneseq
      %v6163 = vshrl.u32 %v6162, 7
      %v6164 = vsub.s32 0, %v6163
      %v6165 = vrot.slane %v6099, %v6164
      %6167 = vbcast.lane.b32.xlu0 %v6165, 256
      %v6168 = vpop.permute.xlu0 %6167
      %v6169 = vlaneseq
      %v6170 = vshrl.u32 %v6169, 7
      %v6171 = vsub.s32 1, %v6170
      %v6172 = vrot.slane %v6099, %v6171
      %6174 = vbcast.lane.b32.xlu0 %v6172, 256
      %v6175 = vpop.permute.xlu0 %6174
      %v6176 = vlaneseq
      %v6177 = vshrl.u32 %v6176, 7
      %v6178 = vsub.s32 2, %v6177
      %v6179 = vrot.slane %v6099, %v6178
      %6181 = vbcast.lane.b32.xlu0 %v6179, 256
      %v6182 = vpop.permute.xlu0 %6181
      %v6183 = vlaneseq
      %v6184 = vshrl.u32 %v6183, 7
      %v6185 = vsub.s32 3, %v6184
      %v6186 = vrot.slane %v6099, %v6185
      %6188 = vbcast.lane.b32.xlu0 %v6186, 256
      %v6189 = vpop.permute.xlu0 %6188
      %v6190 = vlaneseq
      %v6191 = vshrl.u32 %v6190, 7
      %v6192 = vsub.s32 4, %v6191
      %v6193 = vrot.slane %v6099, %v6192
      %6195 = vbcast.lane.b32.xlu0 %v6193, 256
      %v6196 = vpop.permute.xlu0 %6195
      %v6197 = vlaneseq
      %v6198 = vshrl.u32 %v6197, 7
      %v6199 = vsub.s32 5, %v6198
      %v6200 = vrot.slane %v6099, %v6199
      %6202 = vbcast.lane.b32.xlu0 %v6200, 256
      %v6203 = vpop.permute.xlu0 %6202
      %v6204 = vlaneseq
      %v6205 = vshrl.u32 %v6204, 7
      %v6206 = vsub.s32 6, %v6205
      %v6207 = vrot.slane %v6099, %v6206
      %6209 = vbcast.lane.b32.xlu0 %v6207, 256
      %v6210 = vpop.permute.xlu0 %6209
      %v6211 = vlaneseq
      %v6212 = vshrl.u32 %v6211, 7
      %v6213 = vsub.s32 7, %v6212
      %v6214 = vrot.slane %v6099, %v6213
      %6216 = vbcast.lane.b32.xlu0 %v6214, 256
      %v6217 = vpop.permute.xlu0 %6216
      %v6218 = vlaneseq
      %v6219 = vshrl.u32 %v6218, 7
      %v6220 = vsub.s32 0, %v6219
      %v6221 = vrot.slane %v6100, %v6220
      %6223 = vbcast.lane.b32.xlu0 %v6221, 256
      %v6224 = vpop.permute.xlu0 %6223
      %v6225 = vlaneseq
      %v6226 = vshrl.u32 %v6225, 7
      %v6227 = vsub.s32 1, %v6226
      %v6228 = vrot.slane %v6100, %v6227
      %6230 = vbcast.lane.b32.xlu0 %v6228, 256
      %v6231 = vpop.permute.xlu0 %6230
      %v6232 = vlaneseq
      %v6233 = vshrl.u32 %v6232, 7
      %v6234 = vsub.s32 2, %v6233
      %v6235 = vrot.slane %v6100, %v6234
      %6237 = vbcast.lane.b32.xlu0 %v6235, 256
      %v6238 = vpop.permute.xlu0 %6237
      %v6239 = vlaneseq
      %v6240 = vshrl.u32 %v6239, 7
      %v6241 = vsub.s32 3, %v6240
      %v6242 = vrot.slane %v6100, %v6241
      %6244 = vbcast.lane.b32.xlu0 %v6242, 256
      %v6245 = vpop.permute.xlu0 %6244
      %v6246 = vlaneseq
      %v6247 = vshrl.u32 %v6246, 7
      %v6248 = vsub.s32 4, %v6247
      %v6249 = vrot.slane %v6100, %v6248
      %6251 = vbcast.lane.b32.xlu0 %v6249, 256
      %v6252 = vpop.permute.xlu0 %6251
      %v6253 = vlaneseq
      %v6254 = vshrl.u32 %v6253, 7
      %v6255 = vsub.s32 5, %v6254
      %v6256 = vrot.slane %v6100, %v6255
      %6258 = vbcast.lane.b32.xlu0 %v6256, 256
      %v6259 = vpop.permute.xlu0 %6258
      %v6260 = vlaneseq
      %v6261 = vshrl.u32 %v6260, 7
      %v6262 = vsub.s32 6, %v6261
      %v6263 = vrot.slane %v6100, %v6262
      %6265 = vbcast.lane.b32.xlu0 %v6263, 256
      %v6266 = vpop.permute.xlu0 %6265
      %v6267 = vlaneseq
      %v6268 = vshrl.u32 %v6267, 7
      %v6269 = vsub.s32 7, %v6268
      %v6270 = vrot.slane %v6100, %v6269
      %6272 = vbcast.lane.b32.xlu0 %v6270, 256
      %v6273 = vpop.permute.xlu0 %6272
      %v6274 = vlaneseq
      %v6275 = vshrl.u32 %v6274, 7
      %v6276 = vsub.s32 0, %v6275
      %v6277 = vrot.slane %v6101, %v6276
      %6279 = vbcast.lane.b32.xlu0 %v6277, 256
      %v6280 = vpop.permute.xlu0 %6279
      %v6281 = vlaneseq
      %v6282 = vshrl.u32 %v6281, 7
      %v6283 = vsub.s32 1, %v6282
      %v6284 = vrot.slane %v6101, %v6283
      %6286 = vbcast.lane.b32.xlu0 %v6284, 256
      %v6287 = vpop.permute.xlu0 %6286
      %v6288 = vlaneseq
      %v6289 = vshrl.u32 %v6288, 7
      %v6290 = vsub.s32 2, %v6289
      %v6291 = vrot.slane %v6101, %v6290
      %6293 = vbcast.lane.b32.xlu0 %v6291, 256
      %v6294 = vpop.permute.xlu0 %6293
      %v6295 = vlaneseq
      %v6296 = vshrl.u32 %v6295, 7
      %v6297 = vsub.s32 3, %v6296
      %v6298 = vrot.slane %v6101, %v6297
      %6300 = vbcast.lane.b32.xlu0 %v6298, 256
      %v6301 = vpop.permute.xlu0 %6300
      %v6302 = vlaneseq
      %v6303 = vshrl.u32 %v6302, 7
      %v6304 = vsub.s32 4, %v6303
      %v6305 = vrot.slane %v6101, %v6304
      %6307 = vbcast.lane.b32.xlu0 %v6305, 256
      %v6308 = vpop.permute.xlu0 %6307
      %v6309 = vlaneseq
      %v6310 = vshrl.u32 %v6309, 7
      %v6311 = vsub.s32 5, %v6310
      %v6312 = vrot.slane %v6101, %v6311
      %6314 = vbcast.lane.b32.xlu0 %v6312, 256
      %v6315 = vpop.permute.xlu0 %6314
      %v6316 = vlaneseq
      %v6317 = vshrl.u32 %v6316, 7
      %v6318 = vsub.s32 6, %v6317
      %v6319 = vrot.slane %v6101, %v6318
      %6321 = vbcast.lane.b32.xlu0 %v6319, 256
      %v6322 = vpop.permute.xlu0 %6321
      %v6323 = vlaneseq
      %v6324 = vshrl.u32 %v6323, 7
      %v6325 = vsub.s32 7, %v6324
      %v6326 = vrot.slane %v6101, %v6325
      %6328 = vbcast.lane.b32.xlu0 %v6326, 256
      %v6329 = vpop.permute.xlu0 %6328
      %v6362 = vmul.f32 %v5383, %v6112
      %v6363 = vmul.f32 %v5386, %v6119
      %v6364 = vmul.f32 %v5389, %v6126
      %v6365 = vmul.f32 %v5392, %v6133
      %v6366 = vmul.f32 %v5395, %v6140
      %v6367 = vmul.f32 %v5398, %v6147
      %v6368 = vmul.f32 %v5401, %v6154
      %v6369 = vmul.f32 %v5404, %v6161
      %v6370 = vmul.f32 %v5407, %v6168
      %v6371 = vmul.f32 %v5410, %v6175
      %v6372 = vmul.f32 %v5413, %v6182
      %v6373 = vmul.f32 %v5416, %v6189
      %v6374 = vmul.f32 %v5419, %v6196
      %v6375 = vmul.f32 %v5422, %v6203
      %v6376 = vmul.f32 %v5425, %v6210
      %v6377 = vmul.f32 %v5428, %v6217
      %v6378 = vmul.f32 %v5431, %v6224
      %v6379 = vmul.f32 %v5434, %v6231
      %v6380 = vmul.f32 %v5437, %v6238
      %v6381 = vmul.f32 %v5440, %v6245
      %v6382 = vmul.f32 %v5443, %v6252
      %v6383 = vmul.f32 %v5446, %v6259
      %v6384 = vmul.f32 %v5449, %v6266
      %v6385 = vmul.f32 %v5452, %v6273
      %v6386 = vmul.f32 %v5455, %v6280
      %v6387 = vmul.f32 %v5458, %v6287
      %v6388 = vmul.f32 %v5461, %v6294
      %v6389 = vmul.f32 %v5464, %v6301
      %v6390 = vmul.f32 %v5467, %v6308
      %v6391 = vmul.f32 %v5470, %v6315
      %v6392 = vmul.f32 %v5473, %v6322
      %v6393 = vmul.f32 %v5476, %v6329
      %6426 = vset.pattern.permute.xlu0 0
      %6427 = vperm.xlu0 %6426, %v6362
      %v6428 = vpop.permute.xlu0 %6427
      %6429 = vset.pattern.permute.xlu0 0
      %6430 = vperm.xlu0 %6429, %v6363
      %v6431 = vpop.permute.xlu0 %6430
      %6432 = vset.pattern.permute.xlu0 0
      %6433 = vperm.xlu0 %6432, %v6364
      %v6434 = vpop.permute.xlu0 %6433
      %6435 = vset.pattern.permute.xlu0 0
      %6436 = vperm.xlu0 %6435, %v6365
      %v6437 = vpop.permute.xlu0 %6436
      %6438 = vset.pattern.permute.xlu0 0
      %6439 = vperm.xlu0 %6438, %v6366
      %v6440 = vpop.permute.xlu0 %6439
      %6441 = vset.pattern.permute.xlu0 0
      %6442 = vperm.xlu0 %6441, %v6367
      %v6443 = vpop.permute.xlu0 %6442
      %6444 = vset.pattern.permute.xlu0 0
      %6445 = vperm.xlu0 %6444, %v6368
      %v6446 = vpop.permute.xlu0 %6445
      %6447 = vset.pattern.permute.xlu0 0
      %6448 = vperm.xlu0 %6447, %v6369
      %v6449 = vpop.permute.xlu0 %6448
      %6450 = vset.pattern.permute.xlu0 0
      %6451 = vperm.xlu0 %6450, %v6370
      %v6452 = vpop.permute.xlu0 %6451
      %6453 = vset.pattern.permute.xlu0 0
      %6454 = vperm.xlu0 %6453, %v6371
      %v6455 = vpop.permute.xlu0 %6454
      %6456 = vset.pattern.permute.xlu0 0
      %6457 = vperm.xlu0 %6456, %v6372
      %v6458 = vpop.permute.xlu0 %6457
      %6459 = vset.pattern.permute.xlu0 0
      %6460 = vperm.xlu0 %6459, %v6373
      %v6461 = vpop.permute.xlu0 %6460
      %6462 = vset.pattern.permute.xlu0 0
      %6463 = vperm.xlu0 %6462, %v6374
      %v6464 = vpop.permute.xlu0 %6463
      %6465 = vset.pattern.permute.xlu0 0
      %6466 = vperm.xlu0 %6465, %v6375
      %v6467 = vpop.permute.xlu0 %6466
      %6468 = vset.pattern.permute.xlu0 0
      %6469 = vperm.xlu0 %6468, %v6376
      %v6470 = vpop.permute.xlu0 %6469
      %6471 = vset.pattern.permute.xlu0 0
      %6472 = vperm.xlu0 %6471, %v6377
      %v6473 = vpop.permute.xlu0 %6472
      %6474 = vset.pattern.permute.xlu0 0
      %6475 = vperm.xlu0 %6474, %v6378
      %v6476 = vpop.permute.xlu0 %6475
      %6477 = vset.pattern.permute.xlu0 0
      %6478 = vperm.xlu0 %6477, %v6379
      %v6479 = vpop.permute.xlu0 %6478
      %6480 = vset.pattern.permute.xlu0 0
      %6481 = vperm.xlu0 %6480, %v6380
      %v6482 = vpop.permute.xlu0 %6481
      %6483 = vset.pattern.permute.xlu0 0
      %6484 = vperm.xlu0 %6483, %v6381
      %v6485 = vpop.permute.xlu0 %6484
      %6486 = vset.pattern.permute.xlu0 0
      %6487 = vperm.xlu0 %6486, %v6382
      %v6488 = vpop.permute.xlu0 %6487
      %6489 = vset.pattern.permute.xlu0 0
      %6490 = vperm.xlu0 %6489, %v6383
      %v6491 = vpop.permute.xlu0 %6490
      %6492 = vset.pattern.permute.xlu0 0
      %6493 = vperm.xlu0 %6492, %v6384
      %v6494 = vpop.permute.xlu0 %6493
      %6495 = vset.pattern.permute.xlu0 0
      %6496 = vperm.xlu0 %6495, %v6385
      %v6497 = vpop.permute.xlu0 %6496
      %6498 = vset.pattern.permute.xlu0 0
      %6499 = vperm.xlu0 %6498, %v6386
      %v6500 = vpop.permute.xlu0 %6499
      %6501 = vset.pattern.permute.xlu0 0
      %6502 = vperm.xlu0 %6501, %v6387
      %v6503 = vpop.permute.xlu0 %6502
      %6504 = vset.pattern.permute.xlu0 0
      %6505 = vperm.xlu0 %6504, %v6388
      %v6506 = vpop.permute.xlu0 %6505
      %6507 = vset.pattern.permute.xlu0 0
      %6508 = vperm.xlu0 %6507, %v6389
      %v6509 = vpop.permute.xlu0 %6508
      %6510 = vset.pattern.permute.xlu0 0
      %6511 = vperm.xlu0 %6510, %v6390
      %v6512 = vpop.permute.xlu0 %6511
      %6513 = vset.pattern.permute.xlu0 0
      %6514 = vperm.xlu0 %6513, %v6391
      %v6515 = vpop.permute.xlu0 %6514
      %6516 = vset.pattern.permute.xlu0 0
      %6517 = vperm.xlu0 %6516, %v6392
      %v6518 = vpop.permute.xlu0 %6517
      %6519 = vset.pattern.permute.xlu0 0
      %6520 = vperm.xlu0 %6519, %v6393
      %v6521 = vpop.permute.xlu0 %6520
      %v6522 = vlaneseq
      %v6523 = vshrl.u32 %v6522, 7
      %v6524 = vsub.s32 %v1771, %v6523
      %v6525 = vrot.slane %v6428, %v6524
      %v6526 = vlaneseq
      %v6527 = vshrl.u32 %v6526, 7
      %v6528 = vsub.s32 %v1771, %v6527
      %v6529 = vrot.slane %v6431, %v6528
      %v6530 = vlaneseq
      %v6531 = vshrl.u32 %v6530, 7
      %v6532 = vsub.s32 %v1771, %v6531
      %v6533 = vrot.slane %v6434, %v6532
      %v6534 = vlaneseq
      %v6535 = vshrl.u32 %v6534, 7
      %v6536 = vsub.s32 %v1771, %v6535
      %v6537 = vrot.slane %v6437, %v6536
      %v6538 = vlaneseq
      %v6539 = vshrl.u32 %v6538, 7
      %v6540 = vsub.s32 %v1771, %v6539
      %v6541 = vrot.slane %v6440, %v6540
      %v6542 = vlaneseq
      %v6543 = vshrl.u32 %v6542, 7
      %v6544 = vsub.s32 %v1771, %v6543
      %v6545 = vrot.slane %v6443, %v6544
      %v6546 = vlaneseq
      %v6547 = vshrl.u32 %v6546, 7
      %v6548 = vsub.s32 %v1771, %v6547
      %v6549 = vrot.slane %v6446, %v6548
      %v6550 = vlaneseq
      %v6551 = vshrl.u32 %v6550, 7
      %v6552 = vsub.s32 %v1771, %v6551
      %v6553 = vrot.slane %v6449, %v6552
      %v6554 = vlaneseq
      %v6555 = vshrl.u32 %v6554, 7
      %v6556 = vsub.s32 %v1771, %v6555
      %v6557 = vrot.slane %v6452, %v6556
      %v6558 = vlaneseq
      %v6559 = vshrl.u32 %v6558, 7
      %v6560 = vsub.s32 %v1771, %v6559
      %v6561 = vrot.slane %v6455, %v6560
      %v6562 = vlaneseq
      %v6563 = vshrl.u32 %v6562, 7
      %v6564 = vsub.s32 %v1771, %v6563
      %v6565 = vrot.slane %v6458, %v6564
      %v6566 = vlaneseq
      %v6567 = vshrl.u32 %v6566, 7
      %v6568 = vsub.s32 %v1771, %v6567
      %v6569 = vrot.slane %v6461, %v6568
      %v6570 = vlaneseq
      %v6571 = vshrl.u32 %v6570, 7
      %v6572 = vsub.s32 %v1771, %v6571
      %v6573 = vrot.slane %v6464, %v6572
      %v6574 = vlaneseq
      %v6575 = vshrl.u32 %v6574, 7
      %v6576 = vsub.s32 %v1771, %v6575
      %v6577 = vrot.slane %v6467, %v6576
      %v6578 = vlaneseq
      %v6579 = vshrl.u32 %v6578, 7
      %v6580 = vsub.s32 %v1771, %v6579
      %v6581 = vrot.slane %v6470, %v6580
      %v6582 = vlaneseq
      %v6583 = vshrl.u32 %v6582, 7
      %v6584 = vsub.s32 %v1771, %v6583
      %v6585 = vrot.slane %v6473, %v6584
      %v6586 = vlaneseq
      %v6587 = vshrl.u32 %v6586, 7
      %v6588 = vsub.s32 %v1771, %v6587
      %v6589 = vrot.slane %v6476, %v6588
      %v6590 = vlaneseq
      %v6591 = vshrl.u32 %v6590, 7
      %v6592 = vsub.s32 %v1771, %v6591
      %v6593 = vrot.slane %v6479, %v6592
      %v6594 = vlaneseq
      %v6595 = vshrl.u32 %v6594, 7
      %v6596 = vsub.s32 %v1771, %v6595
      %v6597 = vrot.slane %v6482, %v6596
      %v6598 = vlaneseq
      %v6599 = vshrl.u32 %v6598, 7
      %v6600 = vsub.s32 %v1771, %v6599
      %v6601 = vrot.slane %v6485, %v6600
      %v6602 = vlaneseq
      %v6603 = vshrl.u32 %v6602, 7
      %v6604 = vsub.s32 %v1771, %v6603
      %v6605 = vrot.slane %v6488, %v6604
      %v6606 = vlaneseq
      %v6607 = vshrl.u32 %v6606, 7
      %v6608 = vsub.s32 %v1771, %v6607
      %v6609 = vrot.slane %v6491, %v6608
      %v6610 = vlaneseq
      %v6611 = vshrl.u32 %v6610, 7
      %v6612 = vsub.s32 %v1771, %v6611
      %v6613 = vrot.slane %v6494, %v6612
      %v6614 = vlaneseq
      %v6615 = vshrl.u32 %v6614, 7
      %v6616 = vsub.s32 %v1771, %v6615
      %v6617 = vrot.slane %v6497, %v6616
      %v6618 = vlaneseq
      %v6619 = vshrl.u32 %v6618, 7
      %v6620 = vsub.s32 %v1771, %v6619
      %v6621 = vrot.slane %v6500, %v6620
      %v6622 = vlaneseq
      %v6623 = vshrl.u32 %v6622, 7
      %v6624 = vsub.s32 %v1771, %v6623
      %v6625 = vrot.slane %v6503, %v6624
      %v6626 = vlaneseq
      %v6627 = vshrl.u32 %v6626, 7
      %v6628 = vsub.s32 %v1771, %v6627
      %v6629 = vrot.slane %v6506, %v6628
      %v6630 = vlaneseq
      %v6631 = vshrl.u32 %v6630, 7
      %v6632 = vsub.s32 %v1771, %v6631
      %v6633 = vrot.slane %v6509, %v6632
      %v6634 = vlaneseq
      %v6635 = vshrl.u32 %v6634, 7
      %v6636 = vsub.s32 %v1771, %v6635
      %v6637 = vrot.slane %v6512, %v6636
      %v6638 = vlaneseq
      %v6639 = vshrl.u32 %v6638, 7
      %v6640 = vsub.s32 %v1771, %v6639
      %v6641 = vrot.slane %v6515, %v6640
      %v6642 = vlaneseq
      %v6643 = vshrl.u32 %v6642, 7
      %v6644 = vsub.s32 %v1771, %v6643
      %v6645 = vrot.slane %v6518, %v6644
      %v6646 = vlaneseq
      %v6647 = vshrl.u32 %v6646, 7
      %v6648 = vsub.s32 %v1771, %v6647
      %v6649 = vrot.slane %v6521, %v6648
      %v6650 = vsel %vm1038, %v6529, %v6525
      %v6651 = vsel %vm1040, %v6533, %v6650
      %v6652 = vsel %vm1042, %v6537, %v6651
      %v6653 = vsel %vm1044, %v6541, %v6652
      %v6654 = vsel %vm1046, %v6545, %v6653
      %v6655 = vsel %vm1048, %v6549, %v6654
      %v6656 = vsel %vm1050, %v6553, %v6655
      %v6657 = vsel %vm1038, %v6561, %v6557
      %v6658 = vsel %vm1040, %v6565, %v6657
      %v6659 = vsel %vm1042, %v6569, %v6658
      %v6660 = vsel %vm1044, %v6573, %v6659
      %v6661 = vsel %vm1046, %v6577, %v6660
      %v6662 = vsel %vm1048, %v6581, %v6661
      %v6663 = vsel %vm1050, %v6585, %v6662
      %v6664 = vsel %vm1038, %v6593, %v6589
      %v6665 = vsel %vm1040, %v6597, %v6664
      %v6666 = vsel %vm1042, %v6601, %v6665
      %v6667 = vsel %vm1044, %v6605, %v6666
      %v6668 = vsel %vm1046, %v6609, %v6667
      %v6669 = vsel %vm1048, %v6613, %v6668
      %v6670 = vsel %vm1050, %v6617, %v6669
      %v6671 = vsel %vm1038, %v6625, %v6621
      %v6672 = vsel %vm1040, %v6629, %v6671
      %v6673 = vsel %vm1042, %v6633, %v6672
      %v6674 = vsel %vm1044, %v6637, %v6673
      %v6675 = vsel %vm1046, %v6641, %v6674
      %v6676 = vsel %vm1048, %v6645, %v6675
      %v6677 = vsel %vm1050, %v6649, %v6676
      %6682 = vst.msk [vmem:[%s456] sm:$0xff] %vm1932, %v6656
      %6683 = vst.msk [vmem:[%s456 + $0x8] sm:$0xff] %vm1932, %v6663
      %6684 = vst.msk [vmem:[%s456 + $0x10] sm:$0xff] %vm1932, %v6670
      %6685 = vst.msk [vmem:[%s456 + $0x18] sm:$0xff] %vm1932, %v6677
      %s6686 = smul.u32 4, %s20
      %p6687 = scmp.lt.s32.totalorder %s6686, 7
      %s6688 = scalar_select %p6687, %s6686, 7
      %s6689 = smul.addr %s6688, 8
      %s6690 = scalar_lea.vmem %s7, %s6689
      %s6691 = smul.u32 4, %s20
      %p6692 = scmp.lt.s32.totalorder %s6691, 7
      %s6693 = scalar_select %p6692, %s6691, 7
      %s6694 = smul.addr %s6693, 8
      %s6695 = scalar_lea.vmem %s8, %s6694
      // Predicated region
      $region49: #{edge_encoder_forward.1} parent=47 // pred_check
        %p6696 = pneg %p220
      $region50: #{edge_encoder_forward.1} parent=47 // pred_check_branch
        %6698 = sbr.rel (%p6696) target = $region52
      $region51: #{edge_encoder_forward.1} parent=47 // pred_region
        %s6699 = smul.u32 4, %s20
      $region52: #{edge_encoder_forward.1} parent=47 // pred_fallthru
        _
      // Predicated region
      $region53: #{edge_encoder_forward.1} parent=47 // pred_check
        %p6700 = pneg %p246
      $region54: #{edge_encoder_forward.1} parent=47 // pred_check_branch
        %6702 = sbr.rel (%p6700) target = $region56
      $region55: #{edge_encoder_forward.1} parent=47 // pred_region
        %s6703 = smul.u32 4, %s20
      $region56: #{edge_encoder_forward.1} parent=47 // pred_fallthru
        _
    $region48: #{edge_encoder_forward.1} parent=5 // pred_fallthru
      _
    %p6704 = scmp.le.s32.totalorder 2, %s15
    // Predicated region
    $region57: #{edge_encoder_forward.1} parent=5 // pred_check
      %p6705 = pneg %p6704
    $region58: #{edge_encoder_forward.1} parent=5 // pred_check_branch
      %6707 = sbr.rel (%p6705) target = $region60
    $region59: #{edge_encoder_forward.1} parent=5 // pred_region
      %s6708 = ssub.s32 %s15, 2
      // Predicated region
      $region61: #{edge_encoder_forward.1} parent=59 // pred_check
        %p6709 = pneg %p226
      $region62: #{edge_encoder_forward.1} parent=59 // pred_check_branch
        %6711 = sbr.rel (%p6709) target = $region64
      $region63: #{edge_encoder_forward.1} parent=59 // pred_region
        %s6712 = smul.u32 4, %s21
        %p6713 = scmp.lt.s32.totalorder %s6712, 7
        %s6714 = scalar_select %p6713, %s6712, 7
        %s6715 = smul.addr %s6714, 8
        %s6716 = scalar_lea.vmem %s7, %s6715
      $region64: #{edge_encoder_forward.1} parent=59 // pred_fallthru
        _
      // Predicated region
      $region65: #{edge_encoder_forward.1} parent=59 // pred_check
        %p6717 = pneg %p252
      $region66: #{edge_encoder_forward.1} parent=59 // pred_check_branch
        %6719 = sbr.rel (%p6717) target = $region68
      $region67: #{edge_encoder_forward.1} parent=59 // pred_region
        %s6720 = smul.u32 4, %s21
        %p6721 = scmp.lt.s32.totalorder %s6720, 7
        %s6722 = scalar_select %p6721, %s6720, 7
        %s6723 = smul.addr %s6722, 8
        %s6724 = scalar_lea.vmem %s8, %s6723
      $region68: #{edge_encoder_forward.1} parent=59 // pred_fallthru
        _
    $region60: #{edge_encoder_forward.1} parent=5 // pred_fallthru
      _
  $region6: #{edge_encoder_forward.1} parent=0 // loop_footer
    %s19 = sadd.s32 1, %s15
  $region7: #{edge_encoder_forward.1} parent=0 // loop_footer_branch
    %14 = sbr.rel target = $region3
  $region8: #{edge_encoder_forward.1} parent=0 // loop_exit
    _

</llo_original>
